<compile_context>
chip_gen: v7x
topology: tpu7x:2x2x1
jax: 0.10.0
libtpu: 0.0.40
codegen_flags: <defaults>
</compile_context>

<pallas_src>
import functools

import jax
import jax.numpy as jnp
from jax.experimental import pallas as pl
from jax.experimental.pallas import tpu as pltpu

LN_EPS = 1e-5
MASK_BIAS = -1e10
LANE = 128


def _round_up(x, m):
    return ((x + m - 1) // m) * m


@functools.lru_cache(maxsize=None)
def _vmem_limit_bytes():
    """Generation-aware scoped-VMEM budget (~3/4 of per-core physical VMEM)."""
    try:
        cap = int(pltpu.get_tpu_info().vmem_capacity_bytes)
        if cap > 0:
            return max(32 << 20, min(3 * cap // 4, 112 << 20))
    except Exception:
        pass
    return 64 << 20            # safe fallback on v5e/v6e (128 MiB) and v7x (64 MiB)


def _pick_batch_block(B, T, S_pad, D, F, H, vmem_limit):
    """Largest batch block that (a) yields >=2 (ideally >=4) batch grid blocks
    and (b) keeps one pipelined step within ~half the VMEM budget."""
    if B == 1:
        return 1
    divisors = [d for d in range(1, B + 1) if B % d == 0]
    target = max(1, B // 4) if B >= 4 else 1
    bb = max(d for d in divisors if d <= target)

    def step_bytes(b):
        wts = (8 * D * D + 2 * D * F) * 2 + (8 * D + F + 6 * D) * 4
        io = (2 * b * T * D * 4 + b * S_pad * D * 2
              + b * (T * T + S_pad) * 4 + b * H * T * S_pad * 4)
        scratch = b * T * D * 6
        return 2 * (io + wts) + scratch       # inputs/outputs double-buffered

    while bb > 1 and step_bytes(bb) > vmem_limit // 2:
        bb = max(d for d in divisors if d < bb)
    return bb


def _layer_norm(v, gamma, beta):
    # single-pass statistics (sum + sum-of-squares); variance clamped at 0
    d = v.shape[-1]
    s = jnp.sum(v, axis=-1, keepdims=True)
    ss = jnp.sum(v * v, axis=-1, keepdims=True)
    mu = s * (1.0 / d)
    var = jnp.maximum(ss * (1.0 / d) - mu * mu, 0.0)
    return (v - mu) * jax.lax.rsqrt(var + LN_EPS) * gamma + beta


def decoder_stack_kernel(x_ref, enc_ref, tb_ref, ib_ref,
                         sw_qkv_ref, sb_qkv_ref, sw_o_ref, sb_o_ref,
                         cw_q_ref, cb_q_ref, cw_kv_ref, cb_kv_ref,
                         cw_o_ref, cb_o_ref, ln_ref,
                         w1_ref, b1_ref, w2_ref, b2_ref,
                         out_ref, attn_ref,
                         x_carry, ctx_scr,
                         *, num_heads, b_blk, tgt_len, src_len, num_layers,
                         tbias_per_batch):
    """One decoder layer per grid step; grid = (batch_block, layer).

    The [b_blk*T, D] activation lives in `x_carry` (VMEM scratch) across the
    layer axis; layer l+1 weights stream in behind layer l's compute."""
    D = x_ref.shape[-1]
    H = num_heads
    hd = D // H
    T, S = tgt_len, src_len
    scale = 1.0 / float(hd) ** 0.5
    layer = pl.program_id(1)
    is_last = layer == num_layers - 1

    @pl.when(layer == 0)
    def _():
        x_carry[...] = x_ref[...]

    xf = x_carry[...]                        # [b_blk*T, D] f32
    enc_bf = enc_ref[...]                    # [b_blk*S, D] bf16
    lnp = ln_ref[0]                          # [6, D]  (g1,b1,g2,b2,g3,b3)

    def attend(q_all, k_all, v_all, t_k, bias_for, write_attn):
        # Per-(batch, head) masked softmax attention. Each head's context is
        # written into ctx_scr at its lane offset so the caller can run ONE
        # K=D output projection for the whole batch block.
        # TODO(synk): for long sequences switch to a key-tiled online-softmax
        # (flash) accumulator and a lax.fori_loop over heads instead of the
        # static unroll.
        q_bf = (q_all * scale).astype(jnp.bfloat16)    # scale + cast hoisted
        k_bf = k_all.astype(jnp.bfloat16)
        v_bf = v_all.astype(jnp.bfloat16)
        for bb in range(b_blk):
            qb = q_bf[bb * T:(bb + 1) * T]
            kb = k_bf[bb * t_k:(bb + 1) * t_k]
            vb = v_bf[bb * t_k:(bb + 1) * t_k]
            bias = bias_for(bb)                        # [T, t_k] f32
            for h in range(H):
                sl = slice(h * hd, (h + 1) * hd)
                e = jnp.dot(qb[:, sl], kb[:, sl].T,
                            preferred_element_type=jnp.float32) + bias
                m = jnp.max(e, axis=-1, keepdims=True)
                p = jnp.exp(e - m)                     # unnormalized probs
                r = pl.reciprocal(jnp.sum(p, axis=-1, keepdims=True),
                                  approx=True)
                # deferred normalization: scale the [T, hd] context, not p
                ctx = jnp.dot(p.astype(jnp.bfloat16), vb[:, sl],
                              preferred_element_type=jnp.float32) * r
                ctx_scr[bb * T:(bb + 1) * T, sl] = ctx.astype(jnp.bfloat16)
                if write_attn:
                    @pl.when(is_last)      # only the last layer emits weights
                    def _(p=p, r=r, bb=bb, h=h):
                        attn_ref[bb, h, :, :] = p * r
        return ctx_scr[...]                            # [b_blk*T, D] bf16

    # ---------------- masked self-attention ----------------
    x_bf = xf.astype(jnp.bfloat16)
    qkv = (jnp.dot(x_bf, sw_qkv_ref[0], preferred_element_type=jnp.float32)
           + sb_qkv_ref[0])                            # fused QKV, [.., 3D]
    if tbias_per_batch:
        self_bias = lambda bb: tb_ref[bb]
    else:
        tb_shared = tb_ref[0]
        self_bias = lambda bb: tb_shared
    ctx1 = attend(qkv[:, :D], qkv[:, D:2 * D], qkv[:, 2 * D:], T,
                  self_bias, write_attn=False)
    a1 = (jnp.dot(ctx1, sw_o_ref[0], preferred_element_type=jnp.float32)
          + sb_o_ref[0])
    x1 = _layer_norm(xf + a1, lnp[0:1], lnp[1:2])

    # ---------------- cross-attention ----------------
    q2 = (jnp.dot(x1.astype(jnp.bfloat16), cw_q_ref[0],
                  preferred_element_type=jnp.float32) + cb_q_ref[0])
    kv2 = (jnp.dot(enc_bf, cw_kv_ref[0],
                   preferred_element_type=jnp.float32) + cb_kv_ref[0])
    ib = ib_ref[...]                                   # [b_blk, 1, S]
    cross_bias = lambda bb: jnp.broadcast_to(ib[bb], (T, S))
    ctx2 = attend(q2, kv2[:, :D], kv2[:, D:], S, cross_bias, write_attn=True)
    a2 = (jnp.dot(ctx2, cw_o_ref[0], preferred_element_type=jnp.float32)
          + cb_o_ref[0])
    x2 = _layer_norm(x1 + a2, lnp[2:3], lnp[3:4])

    # ---------------- feed-forward ----------------
    h1 = jnp.maximum(
        jnp.dot(x2.astype(jnp.bfloat16), w1_ref[0],
                preferred_element_type=jnp.float32) + b1_ref[0], 0.0)
    ff = (jnp.dot(h1.astype(jnp.bfloat16), w2_ref[0],
                  preferred_element_type=jnp.float32) + b2_ref[0])
    x3 = _layer_norm(x2 + ff, lnp[4:5], lnp[5:6])

    x_carry[...] = x3                                  # carry to next layer

    @pl.when(is_last)
    def _():
        # TODO(synk): for D not a multiple of 128 this single final store is a
        # masked vst; pad D wrapper-side if it ever shows up in profiles.
        out_ref[...] = x3


def decoder_stack_call(x_flat, enc_flat, tbias, ibias, stack, num_heads,
                       batch, tgt_len, src_len, num_layers,
                       batch_block=None, vmem_limit=None):
    B, T, S, L, H = batch, tgt_len, src_len, num_layers, num_heads
    D = x_flat.shape[-1]
    F = stack["w1"].shape[-1]
    tbias_per_batch = tbias.shape[0] != 1

    if vmem_limit is None:
        vmem_limit = _vmem_limit_bytes()
    if batch_block is None:
        batch_block = _pick_batch_block(B, T, S, D, F, H, vmem_limit)
    if (batch_block * T) % 8 != 0:         # (8, 128) sublane rule for x block
        batch_block = B
    assert B % batch_block == 0
    nb = B // batch_block

    kernel = functools.partial(
        decoder_stack_kernel, num_heads=H, b_blk=batch_block, tgt_len=T,
        src_len=S, num_layers=L, tbias_per_batch=tbias_per_batch)

    bmap2 = lambda b, l: (b, 0)
    lmap3 = lambda b, l: (l, 0, 0)
    in_specs = [
        pl.BlockSpec((batch_block * T, D), bmap2),                  # x (f32)
        pl.BlockSpec((batch_block * S, D), bmap2),                  # enc (bf16)
        (pl.BlockSpec((batch_block, T, T), lambda b, l: (b, 0, 0))
         if tbias_per_batch else
         pl.BlockSpec((1, T, T), lambda b, l: (0, 0, 0))),          # target bias
        pl.BlockSpec((batch_block, 1, S), lambda b, l: (b, 0, 0)),  # input bias
        pl.BlockSpec((1, D, 3 * D), lmap3), pl.BlockSpec((1, 1, 3 * D), lmap3),
        pl.BlockSpec((1, D, D), lmap3),     pl.BlockSpec((1, 1, D), lmap3),
        pl.BlockSpec((1, D, D), lmap3),     pl.BlockSpec((1, 1, D), lmap3),
        pl.BlockSpec((1, D, 2 * D), lmap3), pl.BlockSpec((1, 1, 2 * D), lmap3),
        pl.BlockSpec((1, D, D), lmap3),     pl.BlockSpec((1, 1, D), lmap3),
        pl.BlockSpec((1, 6, D), lmap3),                             # layer norms
        pl.BlockSpec((1, D, F), lmap3),     pl.BlockSpec((1, 1, F), lmap3),
        pl.BlockSpec((1, F, D), lmap3),     pl.BlockSpec((1, 1, D), lmap3),
    ]
    out_specs = (
        pl.BlockSpec((batch_block * T, D), bmap2),
        pl.BlockSpec((batch_block, H, T, S), lambda b, l: (b, 0, 0, 0)),
    )
    out_shape = (
        jax.ShapeDtypeStruct((B * T, D), jnp.float32),
        jax.ShapeDtypeStruct((B, H, T, S), jnp.float32),
    )
    return pl.pallas_call(
        kernel,
        grid=(nb, L),
        in_specs=in_specs,
        out_specs=out_specs,
        out_shape=out_shape,
        scratch_shapes=[pltpu.VMEM((batch_block * T, D), jnp.float32),    # carry
                        pltpu.VMEM((batch_block * T, D), jnp.bfloat16)],  # ctx
        compiler_params=pltpu.CompilerParams(
            dimension_semantics=("parallel", "arbitrary"),
            vmem_limit_bytes=int(vmem_limit)),
    )(x_flat, enc_flat, tbias, ibias,
      stack["sw_qkv"], stack["sb_qkv"], stack["sw_o"], stack["sb_o"],
      stack["cw_q"], stack["cb_q"], stack["cw_kv"], stack["cb_kv"],
      stack["cw_o"], stack["cb_o"], stack["ln"],
      stack["w1"], stack["b1"], stack["w2"], stack["b2"])


def vocab_proj_kernel(x_ref, w_ref, b_ref, o_ref):
    o_ref[...] = (jnp.dot(x_ref[...], w_ref[...],
                          preferred_element_type=jnp.float32) + b_ref[...])


def vocab_projection_call(x_bf16, w_pad, b_pad, tile_n=None, vmem_limit=None):
    M, D = x_bf16.shape
    Vp = w_pad.shape[1]
    if vmem_limit is None:
        vmem_limit = _vmem_limit_bytes()
    if tile_n is None:
        tile_n = 512                    # lane-dense; amortizes per-step overhead
        while Vp % tile_n:
            tile_n -= LANE
    # TODO(synk): single-buffer the constant x slab via pipeline_mode=pl.Buffered(1)
    # once verified on the deployed jax version.
    return pl.pallas_call(
        vocab_proj_kernel,
        grid=(Vp // tile_n,),
        in_specs=[pl.BlockSpec((M, D), lambda j: (0, 0)),
                  pl.BlockSpec((D, tile_n), lambda j: (0, j)),
                  pl.BlockSpec((1, tile_n), lambda j: (0, j))],
        out_specs=pl.BlockSpec((M, tile_n), lambda j: (0, j)),
        out_shape=jax.ShapeDtypeStruct((M, Vp), jnp.float32),
        compiler_params=pltpu.CompilerParams(
            dimension_semantics=("parallel",),
            vmem_limit_bytes=int(vmem_limit)),
    )(x_bf16, w_pad, b_pad)


def positional_encoding(seq_len, d_model):
    pos = jnp.arange(seq_len, dtype=jnp.float32)[:, None]
    i = jnp.arange(0, d_model, 2, dtype=jnp.float32)
    div = jnp.exp(-jnp.log(10000.0) * i / d_model)
    pe = jnp.zeros((seq_len, d_model), dtype=jnp.float32)
    pe = pe.at[:, 0::2].set(jnp.sin(pos * div))
    pe = pe.at[:, 1::2].set(jnp.cos(pos * div))
    return pe


def transformer_decoder(target_ids, encoded_input, target_mask, input_mask,
                        params, num_heads):
    D = params["embedding"].shape[1]
    B, T = target_ids.shape
    S = encoded_input.shape[1]
    S_pad = _round_up(S, LANE)
    L = params["num_layers"]
    assert D % num_heads == 0

    emb = params["embedding"][target_ids]                  # gather (JAX glue)
    x = emb * jnp.sqrt(jnp.float32(D)) + positional_encoding(T, D)[None]
    # TODO(synk): nn.Dropout is identity in eval mode; training-mode RNG dropout not implemented.

    # pad the source axis to a lane-dense multiple of 128, cast the encoder slab
    # to bf16 (it is only ever a matmul operand) and turn the multiplicative
    # masks into additive biases once, outside the kernels.
    enc_bf = jnp.pad(encoded_input, ((0, 0), (0, S_pad - S), (0, 0))
                     ).astype(jnp.bfloat16).reshape(B * S_pad, D)
    imask_pad = jnp.pad(input_mask, ((0, 0), (0, 0), (0, S_pad - S)))
    ibias = (1.0 - imask_pad) * MASK_BIAS                  # [B, 1, S_pad]

    tm = target_mask
    if tm.ndim == 2:                                       # shared causal mask
        tm = tm[None]
    tbias = (1.0 - tm) * MASK_BIAS                         # [1 or B, T, T]

    x_flat = x.reshape(B * T, D)
    out_flat, attention = decoder_stack_call(
        x_flat, enc_bf, tbias, ibias, params["stack"], num_heads,
        batch=B, tgt_len=T, src_len=S_pad, num_layers=L)
    attention = attention[:, :, :, :S]                     # drop lane padding

    logits_pad = vocab_projection_call(out_flat.astype(jnp.bfloat16),
                                       params["out_w_pad"], params["out_b_pad"])
    logits = logits_pad.reshape(B, T, -1)[:, :, :params["vocab_size"]]
    return logits, attention


def init_params(key, vocab, D, num_layers, F):
    V_pad = _round_up(vocab, LANE)
    keys = jax.random.split(key, 2 + num_layers)
    out_w = jax.random.normal(keys[1], (D, vocab), jnp.float32) * 0.02
    ln_one = jnp.stack([jnp.ones((D,), jnp.float32),
                        jnp.zeros((D,), jnp.float32)] * 3)        # [6, D]

    def one_layer(k):
        ks = jax.random.split(k, 14)
        w = lambda kk, shape: (jax.random.normal(kk, shape) * 0.05
                               ).astype(jnp.bfloat16)
        b = lambda kk, shape: jax.random.normal(kk, shape, jnp.float32) * 0.01
        return dict(
            sw_qkv=w(ks[0], (D, 3 * D)), sb_qkv=b(ks[1], (1, 3 * D)),
            sw_o=w(ks[2], (D, D)),       sb_o=b(ks[3], (1, D)),
            cw_q=w(ks[4], (D, D)),       cb_q=b(ks[5], (1, D)),
            cw_kv=w(ks[6], (D, 2 * D)),  cb_kv=b(ks[7], (1, 2 * D)),
            cw_o=w(ks[8], (D, D)),       cb_o=b(ks[9], (1, D)),
            ln=ln_one,
            w1=w(ks[10], (D, F)),        b1=b(ks[11], (1, F)),
            w2=w(ks[12], (F, D)),        b2=b(ks[13], (1, D)),
        )

    layers = [one_layer(keys[2 + l]) for l in range(num_layers)]
    stack = {name: jnp.stack([lp[name] for lp in layers]) for name in layers[0]}
    return {
        "embedding": jax.random.normal(keys[0], (vocab, D), jnp.float32) * 0.02,
        "out_w_pad": jnp.pad(out_w,
                             ((0, 0), (0, V_pad - vocab))).astype(jnp.bfloat16),
        "out_b_pad": jnp.zeros((1, V_pad), jnp.float32),
        "vocab_size": vocab,
        "num_layers": num_layers,
        "stack": stack,
    }


if __name__ == "__main__":
    B, T, S = 2, 8, 8                 # batch, target seq, source seq
    D, H, F = 32, 4, 64               # dim_model, num_heads, dim_feedforward
    V, L = 50, 2                      # tgt_vocab_size, num_layers

    key = jax.random.PRNGKey(0)
    k_par, k_tgt, k_enc = jax.random.split(key, 3)

    params = init_params(k_par, V, D, L, F)
    target = jax.random.randint(k_tgt, (B, T), 0, V, dtype=jnp.int32)
    encoded_input = jax.random.normal(k_enc, (B, S, D), jnp.float32)

    # shared causal target mask [T, T] (broadcast across batch, same semantics
    # as a [B, T, T] mask) and batch-dependent padding input mask [B, 1, S]
    target_mask = jnp.tril(jnp.ones((T, T), jnp.float32))
    input_mask = jnp.ones((B, 1, S), jnp.float32).at[1, 0, S - 2:].set(0.0)

    logits, attention = transformer_decoder(
        target, encoded_input, target_mask, input_mask, params, H)
    jax.block_until_ready((logits, attention))

    assert logits.shape == (B, T, V)
    assert attention.shape == (B, H, T, S)
    assert bool(jnp.all(jnp.isfinite(logits)))
    assert bool(jnp.all(jnp.isfinite(attention)))
    print("KERNEL_OK")
</pallas_src>

<mosaic_0001>
module attributes {stable_mosaic.version = 11 : i64} {
  func.func @decoder_stack_kernel(%arg0: i32, %arg1: i32, %arg2: memref<8x32xf32, #tpu.memory_space<vmem>>, %arg3: memref<128x32xbf16, #tpu.memory_space<vmem>>, %arg4: memref<1x8x8xf32, #tpu.memory_space<vmem>>, %arg5: memref<1x1x128xf32, #tpu.memory_space<vmem>>, %arg6: memref<1x32x96xbf16, #tpu.memory_space<vmem>>, %arg7: memref<1x1x96xf32, #tpu.memory_space<vmem>>, %arg8: memref<1x32x32xbf16, #tpu.memory_space<vmem>>, %arg9: memref<1x1x32xf32, #tpu.memory_space<vmem>>, %arg10: memref<1x32x32xbf16, #tpu.memory_space<vmem>>, %arg11: memref<1x1x32xf32, #tpu.memory_space<vmem>>, %arg12: memref<1x32x64xbf16, #tpu.memory_space<vmem>>, %arg13: memref<1x1x64xf32, #tpu.memory_space<vmem>>, %arg14: memref<1x32x32xbf16, #tpu.memory_space<vmem>>, %arg15: memref<1x1x32xf32, #tpu.memory_space<vmem>>, %arg16: memref<1x6x32xf32, #tpu.memory_space<vmem>>, %arg17: memref<1x32x64xbf16, #tpu.memory_space<vmem>>, %arg18: memref<1x1x64xf32, #tpu.memory_space<vmem>>, %arg19: memref<1x64x32xbf16, #tpu.memory_space<vmem>>, %arg20: memref<1x1x32xf32, #tpu.memory_space<vmem>>, %arg21: memref<8x32xf32, #tpu.memory_space<vmem>>, %arg22: memref<1x4x8x128xf32, #tpu.memory_space<vmem>>, %arg23: memref<8x32xf32, #tpu.memory_space<vmem>>, %arg24: memref<8x32xbf16, #tpu.memory_space<vmem>>) attributes {dimension_semantics = [#tpu.dimension_semantics<parallel>, #tpu.dimension_semantics<arbitrary>], iteration_bounds = array<i64: 2, 2>, scalar_prefetch = 0 : i64, scratch_operands = 2 : i64, tpu.core_type = #tpu.core_type<tc>, window_params = [{transform_indices = @transform_0, window_bounds = array<i64: 8, 32>}, {transform_indices = @transform_1, window_bounds = array<i64: 128, 32>}, {pipeline_mode = #tpu.pipeline_mode<synchronous>, transform_indices = @transform_2, window_bounds = array<i64: 1, 8, 8>}, {transform_indices = @transform_3, window_bounds = array<i64: 1, 1, 128>}, {transform_indices = @transform_4, window_bounds = array<i64: 1, 32, 96>}, {transform_indices = @transform_5, window_bounds = array<i64: 1, 1, 96>}, {transform_indices = @transform_6, window_bounds = array<i64: 1, 32, 32>}, {transform_indices = @transform_7, window_bounds = array<i64: 1, 1, 32>}, {transform_indices = @transform_8, window_bounds = array<i64: 1, 32, 32>}, {transform_indices = @transform_9, window_bounds = array<i64: 1, 1, 32>}, {transform_indices = @transform_10, window_bounds = array<i64: 1, 32, 64>}, {transform_indices = @transform_11, window_bounds = array<i64: 1, 1, 64>}, {transform_indices = @transform_12, window_bounds = array<i64: 1, 32, 32>}, {transform_indices = @transform_13, window_bounds = array<i64: 1, 1, 32>}, {transform_indices = @transform_14, window_bounds = array<i64: 1, 6, 32>}, {transform_indices = @transform_15, window_bounds = array<i64: 1, 32, 64>}, {transform_indices = @transform_16, window_bounds = array<i64: 1, 1, 64>}, {transform_indices = @transform_17, window_bounds = array<i64: 1, 64, 32>}, {transform_indices = @transform_18, window_bounds = array<i64: 1, 1, 32>}, {transform_indices = @transform_19, window_bounds = array<i64: 8, 32>}, {transform_indices = @transform_20, window_bounds = array<i64: 1, 4, 8, 128>}]} {
    %c1_i32 = arith.constant 1 : i32
    %0 = arith.cmpi eq, %arg1, %c1_i32 : i32
    %c0_i32 = arith.constant 0 : i32
    %1 = arith.cmpi eq, %arg1, %c0_i32 : i32
    %2 = arith.extui %1 : i1 to i32
    %c0_i32_0 = arith.constant 0 : i32
    %3 = arith.cmpi ne, %2, %c0_i32_0 : i32
    scf.if %3 {
      %c0_138 = arith.constant 0 : index
      %c0_139 = arith.constant 0 : index
      %338 = vector.load %arg2[%c0_138, %c0_139] : memref<8x32xf32, #tpu.memory_space<vmem>>, vector<8x32xf32>
      %c0_140 = arith.constant 0 : index
      %c0_141 = arith.constant 0 : index
      %339 = vector.load %arg23[%c0_140, %c0_141] : memref<8x32xf32, #tpu.memory_space<vmem>>, vector<8x32xf32>
      tpu.vector_store %arg23[%c0_140, %c0_141], %338 {strides = array<i32>} : memref<8x32xf32, #tpu.memory_space<vmem>>, vector<8x32xf32>,
    } else {
    }
    %c0 = arith.constant 0 : index
    %c0_1 = arith.constant 0 : index
    %4 = vector.load %arg23[%c0, %c0_1] : memref<8x32xf32, #tpu.memory_space<vmem>>, vector<8x32xf32>
    %c0_2 = arith.constant 0 : index
    %c0_3 = arith.constant 0 : index
    %5 = vector.load %arg3[%c0_2, %c0_3] : memref<128x32xbf16, #tpu.memory_space<vmem>>, vector<128x32xbf16>
    %c0_4 = arith.constant 0 : index
    %c0_5 = arith.constant 0 : index
    %c0_6 = arith.constant 0 : index
    %6 = vector.load %arg16[%c0_4, %c0_5, %c0_6] : memref<1x6x32xf32, #tpu.memory_space<vmem>>, vector<1x6x32xf32>
    %7 = vector.shape_cast %6 : vector<1x6x32xf32> to vector<6x32xf32>
    %8 = arith.truncf %4 : vector<8x32xf32> to vector<8x32xbf16>
    %c0_7 = arith.constant 0 : index
    %c0_8 = arith.constant 0 : index
    %c0_9 = arith.constant 0 : index
    %9 = vector.load %arg6[%c0_7, %c0_8, %c0_9] : memref<1x32x96xbf16, #tpu.memory_space<vmem>>, vector<1x32x96xbf16>
    %10 = vector.shape_cast %9 : vector<1x32x96xbf16> to vector<32x96xbf16>
    %cst = arith.constant dense<0.000000e+00> : vector<8x96xf32>
    %11 = tpu.matmul %8, %10, %cst {dimension_numbers = #tpu.dot_dimension_numbers<[1], [0], [0], [1], [0, 0, 1, 1], [], []>} : vector<8x32xbf16>, vector<32x96xbf16>, vector<8x96xf32> -> vector<8x96xf32>
    %c0_10 = arith.constant 0 : index
    %c0_11 = arith.constant 0 : index
    %c0_12 = arith.constant 0 : index
    %12 = vector.load %arg7[%c0_10, %c0_11, %c0_12] : memref<1x1x96xf32, #tpu.memory_space<vmem>>, vector<1x1x96xf32>
    %13 = vector.shape_cast %12 : vector<1x1x96xf32> to vector<1x96xf32>
    %14 = vector.broadcast %13 : vector<1x96xf32> to vector<8x96xf32>
    %15 = arith.addf %11, %14 : vector<8x96xf32>
    %c0_13 = arith.constant 0 : index
    %c0_14 = arith.constant 0 : index
    %c0_15 = arith.constant 0 : index
    %16 = vector.load %arg4[%c0_13, %c0_14, %c0_15] : memref<1x8x8xf32, #tpu.memory_space<vmem>>, vector<1x8x8xf32>
    %17 = vector.shape_cast %16 : vector<1x8x8xf32> to vector<8x8xf32>
    %18 = vector.extract_strided_slice %15 {offsets = [0, 0], sizes = [8, 32], strides = [1, 1]} : vector<8x96xf32> to vector<8x32xf32>
    %19 = vector.extract_strided_slice %15 {offsets = [0, 32], sizes = [8, 32], strides = [1, 1]} : vector<8x96xf32> to vector<8x32xf32>
    %20 = vector.extract_strided_slice %15 {offsets = [0, 64], sizes = [8, 32], strides = [1, 1]} : vector<8x96xf32> to vector<8x32xf32>
    %cst_16 = arith.constant 0.353553385 : f32
    %21 = vector.broadcast %cst_16 : f32 to vector<8x32xf32>
    %22 = arith.mulf %18, %21 : vector<8x32xf32>
    %23 = arith.truncf %22 : vector<8x32xf32> to vector<8x32xbf16>
    %24 = arith.truncf %19 : vector<8x32xf32> to vector<8x32xbf16>
    %25 = arith.truncf %20 : vector<8x32xf32> to vector<8x32xbf16>
    %26 = vector.extract_strided_slice %23 {offsets = [0, 0], sizes = [8, 8], strides = [1, 1]} : vector<8x32xbf16> to vector<8x8xbf16>
    %27 = vector.extract_strided_slice %24 {offsets = [0, 0], sizes = [8, 8], strides = [1, 1]} : vector<8x32xbf16> to vector<8x8xbf16>
    %28 = tpu.transpose %27, [1, 0] : vector<8x8xbf16> -> vector<8x8xbf16>
    %cst_17 = arith.constant dense<0.000000e+00> : vector<8x8xf32>
    %29 = tpu.matmul %26, %28, %cst_17 {dimension_numbers = #tpu.dot_dimension_numbers<[1], [0], [0], [1], [0, 0, 1, 1], [], []>} : vector<8x8xbf16>, vector<8x8xbf16>, vector<8x8xf32> -> vector<8x8xf32>
    %30 = arith.addf %29, %17 : vector<8x8xf32>
    %cst_18 = arith.constant dense<0xFF800000> : vector<8xf32>
    %31 = vector.multi_reduction <maximumf>, %30, %cst_18 [1] : vector<8x8xf32> to vector<8xf32>
    %32 = vector.shape_cast %31 : vector<8xf32> to vector<8x1xf32>
    %33 = vector.broadcast %32 : vector<8x1xf32> to vector<8x8xf32>
    %34 = arith.subf %30, %33 : vector<8x8xf32>
    %35 = math.exp %34 : vector<8x8xf32>
    %cst_19 = arith.constant dense<0.000000e+00> : vector<8xf32>
    %36 = vector.multi_reduction <add>, %35, %cst_19 [1] : vector<8x8xf32> to vector<8xf32>
    %37 = vector.shape_cast %36 : vector<8xf32> to vector<8x1xf32>
    %38 = tpu.reciprocal %37 {approx = true} : vector<8x1xf32> -> vector<8x1xf32>
    %39 = arith.truncf %35 : vector<8x8xf32> to vector<8x8xbf16>
    %40 = vector.extract_strided_slice %25 {offsets = [0, 0], sizes = [8, 8], strides = [1, 1]} : vector<8x32xbf16> to vector<8x8xbf16>
    %cst_20 = arith.constant dense<0.000000e+00> : vector<8x8xf32>
    %41 = tpu.matmul %39, %40, %cst_20 {dimension_numbers = #tpu.dot_dimension_numbers<[1], [0], [0], [1], [0, 0, 1, 1], [], []>} : vector<8x8xbf16>, vector<8x8xbf16>, vector<8x8xf32> -> vector<8x8xf32>
    %42 = vector.broadcast %38 : vector<8x1xf32> to vector<8x8xf32>
    %43 = arith.mulf %41, %42 : vector<8x8xf32>
    %44 = arith.truncf %43 : vector<8x8xf32> to vector<8x8xbf16>
    %c0_21 = arith.constant 0 : index
    %c0_22 = arith.constant 0 : index
    %45 = vector.load %arg24[%c0_21, %c0_22] : memref<8x32xbf16, #tpu.memory_space<vmem>>, vector<8x8xbf16>
    tpu.vector_store %arg24[%c0_21, %c0_22], %44 {strides = array<i32>} : memref<8x32xbf16, #tpu.memory_space<vmem>>, vector<8x8xbf16>,
    %46 = vector.extract_strided_slice %23 {offsets = [0, 8], sizes = [8, 8], strides = [1, 1]} : vector<8x32xbf16> to vector<8x8xbf16>
    %47 = vector.extract_strided_slice %24 {offsets = [0, 8], sizes = [8, 8], strides = [1, 1]} : vector<8x32xbf16> to vector<8x8xbf16>
    %48 = tpu.transpose %47, [1, 0] : vector<8x8xbf16> -> vector<8x8xbf16>
    %cst_23 = arith.constant dense<0.000000e+00> : vector<8x8xf32>
    %49 = tpu.matmul %46, %48, %cst_23 {dimension_numbers = #tpu.dot_dimension_numbers<[1], [0], [0], [1], [0, 0, 1, 1], [], []>} : vector<8x8xbf16>, vector<8x8xbf16>, vector<8x8xf32> -> vector<8x8xf32>
    %50 = arith.addf %49, %17 : vector<8x8xf32>
    %cst_24 = arith.constant dense<0xFF800000> : vector<8xf32>
    %51 = vector.multi_reduction <maximumf>, %50, %cst_24 [1] : vector<8x8xf32> to vector<8xf32>
    %52 = vector.shape_cast %51 : vector<8xf32> to vector<8x1xf32>
    %53 = vector.broadcast %52 : vector<8x1xf32> to vector<8x8xf32>
    %54 = arith.subf %50, %53 : vector<8x8xf32>
    %55 = math.exp %54 : vector<8x8xf32>
    %cst_25 = arith.constant dense<0.000000e+00> : vector<8xf32>
    %56 = vector.multi_reduction <add>, %55, %cst_25 [1] : vector<8x8xf32> to vector<8xf32>
    %57 = vector.shape_cast %56 : vector<8xf32> to vector<8x1xf32>
    %58 = tpu.reciprocal %57 {approx = true} : vector<8x1xf32> -> vector<8x1xf32>
    %59 = arith.truncf %55 : vector<8x8xf32> to vector<8x8xbf16>
    %60 = vector.extract_strided_slice %25 {offsets = [0, 8], sizes = [8, 8], strides = [1, 1]} : vector<8x32xbf16> to vector<8x8xbf16>
    %cst_26 = arith.constant dense<0.000000e+00> : vector<8x8xf32>
    %61 = tpu.matmul %59, %60, %cst_26 {dimension_numbers = #tpu.dot_dimension_numbers<[1], [0], [0], [1], [0, 0, 1, 1], [], []>} : vector<8x8xbf16>, vector<8x8xbf16>, vector<8x8xf32> -> vector<8x8xf32>
    %62 = vector.broadcast %58 : vector<8x1xf32> to vector<8x8xf32>
    %63 = arith.mulf %61, %62 : vector<8x8xf32>
    %64 = arith.truncf %63 : vector<8x8xf32> to vector<8x8xbf16>
    %c0_27 = arith.constant 0 : index
    %c8 = arith.constant 8 : index
    %65 = vector.load %arg24[%c0_27, %c8] : memref<8x32xbf16, #tpu.memory_space<vmem>>, vector<8x8xbf16>
    tpu.vector_store %arg24[%c0_27, %c8], %64 {strides = array<i32>} : memref<8x32xbf16, #tpu.memory_space<vmem>>, vector<8x8xbf16>,
    %66 = vector.extract_strided_slice %23 {offsets = [0, 16], sizes = [8, 8], strides = [1, 1]} : vector<8x32xbf16> to vector<8x8xbf16>
    %67 = vector.extract_strided_slice %24 {offsets = [0, 16], sizes = [8, 8], strides = [1, 1]} : vector<8x32xbf16> to vector<8x8xbf16>
    %68 = tpu.transpose %67, [1, 0] : vector<8x8xbf16> -> vector<8x8xbf16>
    %cst_28 = arith.constant dense<0.000000e+00> : vector<8x8xf32>
    %69 = tpu.matmul %66, %68, %cst_28 {dimension_numbers = #tpu.dot_dimension_numbers<[1], [0], [0], [1], [0, 0, 1, 1], [], []>} : vector<8x8xbf16>, vector<8x8xbf16>, vector<8x8xf32> -> vector<8x8xf32>
    %70 = arith.addf %69, %17 : vector<8x8xf32>
    %cst_29 = arith.constant dense<0xFF800000> : vector<8xf32>
    %71 = vector.multi_reduction <maximumf>, %70, %cst_29 [1] : vector<8x8xf32> to vector<8xf32>
    %72 = vector.shape_cast %71 : vector<8xf32> to vector<8x1xf32>
    %73 = vector.broadcast %72 : vector<8x1xf32> to vector<8x8xf32>
    %74 = arith.subf %70, %73 : vector<8x8xf32>
    %75 = math.exp %74 : vector<8x8xf32>
    %cst_30 = arith.constant dense<0.000000e+00> : vector<8xf32>
    %76 = vector.multi_reduction <add>, %75, %cst_30 [1] : vector<8x8xf32> to vector<8xf32>
    %77 = vector.shape_cast %76 : vector<8xf32> to vector<8x1xf32>
    %78 = tpu.reciprocal %77 {approx = true} : vector<8x1xf32> -> vector<8x1xf32>
    %79 = arith.truncf %75 : vector<8x8xf32> to vector<8x8xbf16>
    %80 = vector.extract_strided_slice %25 {offsets = [0, 16], sizes = [8, 8], strides = [1, 1]} : vector<8x32xbf16> to vector<8x8xbf16>
    %cst_31 = arith.constant dense<0.000000e+00> : vector<8x8xf32>
    %81 = tpu.matmul %79, %80, %cst_31 {dimension_numbers = #tpu.dot_dimension_numbers<[1], [0], [0], [1], [0, 0, 1, 1], [], []>} : vector<8x8xbf16>, vector<8x8xbf16>, vector<8x8xf32> -> vector<8x8xf32>
    %82 = vector.broadcast %78 : vector<8x1xf32> to vector<8x8xf32>
    %83 = arith.mulf %81, %82 : vector<8x8xf32>
    %84 = arith.truncf %83 : vector<8x8xf32> to vector<8x8xbf16>
    %c0_32 = arith.constant 0 : index
    %c16 = arith.constant 16 : index
    %85 = vector.load %arg24[%c0_32, %c16] : memref<8x32xbf16, #tpu.memory_space<vmem>>, vector<8x8xbf16>
    tpu.vector_store %arg24[%c0_32, %c16], %84 {strides = array<i32>} : memref<8x32xbf16, #tpu.memory_space<vmem>>, vector<8x8xbf16>,
    %86 = vector.extract_strided_slice %23 {offsets = [0, 24], sizes = [8, 8], strides = [1, 1]} : vector<8x32xbf16> to vector<8x8xbf16>
    %87 = vector.extract_strided_slice %24 {offsets = [0, 24], sizes = [8, 8], strides = [1, 1]} : vector<8x32xbf16> to vector<8x8xbf16>
    %88 = tpu.transpose %87, [1, 0] : vector<8x8xbf16> -> vector<8x8xbf16>
    %cst_33 = arith.constant dense<0.000000e+00> : vector<8x8xf32>
    %89 = tpu.matmul %86, %88, %cst_33 {dimension_numbers = #tpu.dot_dimension_numbers<[1], [0], [0], [1], [0, 0, 1, 1], [], []>} : vector<8x8xbf16>, vector<8x8xbf16>, vector<8x8xf32> -> vector<8x8xf32>
    %90 = arith.addf %89, %17 : vector<8x8xf32>
    %cst_34 = arith.constant dense<0xFF800000> : vector<8xf32>
    %91 = vector.multi_reduction <maximumf>, %90, %cst_34 [1] : vector<8x8xf32> to vector<8xf32>
    %92 = vector.shape_cast %91 : vector<8xf32> to vector<8x1xf32>
    %93 = vector.broadcast %92 : vector<8x1xf32> to vector<8x8xf32>
    %94 = arith.subf %90, %93 : vector<8x8xf32>
    %95 = math.exp %94 : vector<8x8xf32>
    %cst_35 = arith.constant dense<0.000000e+00> : vector<8xf32>
    %96 = vector.multi_reduction <add>, %95, %cst_35 [1] : vector<8x8xf32> to vector<8xf32>
    %97 = vector.shape_cast %96 : vector<8xf32> to vector<8x1xf32>
    %98 = tpu.reciprocal %97 {approx = true} : vector<8x1xf32> -> vector<8x1xf32>
    %99 = arith.truncf %95 : vector<8x8xf32> to vector<8x8xbf16>
    %100 = vector.extract_strided_slice %25 {offsets = [0, 24], sizes = [8, 8], strides = [1, 1]} : vector<8x32xbf16> to vector<8x8xbf16>
    %cst_36 = arith.constant dense<0.000000e+00> : vector<8x8xf32>
    %101 = tpu.matmul %99, %100, %cst_36 {dimension_numbers = #tpu.dot_dimension_numbers<[1], [0], [0], [1], [0, 0, 1, 1], [], []>} : vector<8x8xbf16>, vector<8x8xbf16>, vector<8x8xf32> -> vector<8x8xf32>
    %102 = vector.broadcast %98 : vector<8x1xf32> to vector<8x8xf32>
    %103 = arith.mulf %101, %102 : vector<8x8xf32>
    %104 = arith.truncf %103 : vector<8x8xf32> to vector<8x8xbf16>
    %c0_37 = arith.constant 0 : index
    %c24 = arith.constant 24 : index
    %105 = vector.load %arg24[%c0_37, %c24] : memref<8x32xbf16, #tpu.memory_space<vmem>>, vector<8x8xbf16>
    tpu.vector_store %arg24[%c0_37, %c24], %104 {strides = array<i32>} : memref<8x32xbf16, #tpu.memory_space<vmem>>, vector<8x8xbf16>,
    %c0_38 = arith.constant 0 : index
    %c0_39 = arith.constant 0 : index
    %106 = vector.load %arg24[%c0_38, %c0_39] : memref<8x32xbf16, #tpu.memory_space<vmem>>, vector<8x32xbf16>
    %c0_40 = arith.constant 0 : index
    %c0_41 = arith.constant 0 : index
    %c0_42 = arith.constant 0 : index
    %107 = vector.load %arg8[%c0_40, %c0_41, %c0_42] : memref<1x32x32xbf16, #tpu.memory_space<vmem>>, vector<1x32x32xbf16>
    %108 = vector.shape_cast %107 : vector<1x32x32xbf16> to vector<32x32xbf16>
    %cst_43 = arith.constant dense<0.000000e+00> : vector<8x32xf32>
    %109 = tpu.matmul %106, %108, %cst_43 {dimension_numbers = #tpu.dot_dimension_numbers<[1], [0], [0], [1], [0, 0, 1, 1], [], []>} : vector<8x32xbf16>, vector<32x32xbf16>, vector<8x32xf32> -> vector<8x32xf32>
    %c0_44 = arith.constant 0 : index
    %c0_45 = arith.constant 0 : index
    %c0_46 = arith.constant 0 : index
    %110 = vector.load %arg9[%c0_44, %c0_45, %c0_46] : memref<1x1x32xf32, #tpu.memory_space<vmem>>, vector<1x1x32xf32>
    %111 = vector.shape_cast %110 : vector<1x1x32xf32> to vector<1x32xf32>
    %112 = vector.broadcast %111 : vector<1x32xf32> to vector<8x32xf32>
    %113 = arith.addf %109, %112 : vector<8x32xf32>
    %114 = arith.addf %4, %113 : vector<8x32xf32>
    %115 = vector.extract_strided_slice %7 {offsets = [0, 0], sizes = [1, 32], strides = [1, 1]} : vector<6x32xf32> to vector<1x32xf32>
    %116 = vector.extract_strided_slice %7 {offsets = [1, 0], sizes = [1, 32], strides = [1, 1]} : vector<6x32xf32> to vector<1x32xf32>
    %cst_47 = arith.constant dense<0.000000e+00> : vector<8xf32>
    %117 = vector.multi_reduction <add>, %114, %cst_47 [1] : vector<8x32xf32> to vector<8xf32>
    %118 = vector.shape_cast %117 : vector<8xf32> to vector<8x1xf32>
    %119 = arith.mulf %114, %114 : vector<8x32xf32>
    %cst_48 = arith.constant dense<0.000000e+00> : vector<8xf32>
    %120 = vector.multi_reduction <add>, %119, %cst_48 [1] : vector<8x32xf32> to vector<8xf32>
    %121 = vector.shape_cast %120 : vector<8xf32> to vector<8x1xf32>
    %cst_49 = arith.constant 3.125000e-02 : f32
    %122 = vector.broadcast %cst_49 : f32 to vector<8x1xf32>
    %123 = arith.mulf %118, %122 : vector<8x1xf32>
    %cst_50 = arith.constant 3.125000e-02 : f32
    %124 = vector.broadcast %cst_50 : f32 to vector<8x1xf32>
    %125 = arith.mulf %121, %124 : vector<8x1xf32>
    %126 = arith.mulf %123, %123 : vector<8x1xf32>
    %127 = arith.subf %125, %126 : vector<8x1xf32>
    %cst_51 = arith.constant 0.000000e+00 : f32
    %128 = vector.broadcast %cst_51 : f32 to vector<8x1xf32>
    %129 = arith.maximumf %127, %128 : vector<8x1xf32>
    %130 = vector.broadcast %123 : vector<8x1xf32> to vector<8x32xf32>
    %131 = arith.subf %114, %130 : vector<8x32xf32>
    %cst_52 = arith.constant 9.99999974E-6 : f32
    %132 = vector.broadcast %cst_52 : f32 to vector<8x1xf32>
    %133 = arith.addf %129, %132 : vector<8x1xf32>
    %134 = math.rsqrt %133 : vector<8x1xf32>
    %135 = vector.broadcast %134 : vector<8x1xf32> to vector<8x32xf32>
    %136 = arith.mulf %131, %135 : vector<8x32xf32>
    %137 = vector.broadcast %115 : vector<1x32xf32> to vector<8x32xf32>
    %138 = arith.mulf %136, %137 : vector<8x32xf32>
    %139 = vector.broadcast %116 : vector<1x32xf32> to vector<8x32xf32>
    %140 = arith.addf %138, %139 : vector<8x32xf32>
    %141 = arith.truncf %140 : vector<8x32xf32> to vector<8x32xbf16>
    %c0_53 = arith.constant 0 : index
    %c0_54 = arith.constant 0 : index
    %c0_55 = arith.constant 0 : index
    %142 = vector.load %arg10[%c0_53, %c0_54, %c0_55] : memref<1x32x32xbf16, #tpu.memory_space<vmem>>, vector<1x32x32xbf16>
    %143 = vector.shape_cast %142 : vector<1x32x32xbf16> to vector<32x32xbf16>
    %cst_56 = arith.constant dense<0.000000e+00> : vector<8x32xf32>
    %144 = tpu.matmul %141, %143, %cst_56 {dimension_numbers = #tpu.dot_dimension_numbers<[1], [0], [0], [1], [0, 0, 1, 1], [], []>} : vector<8x32xbf16>, vector<32x32xbf16>, vector<8x32xf32> -> vector<8x32xf32>
    %c0_57 = arith.constant 0 : index
    %c0_58 = arith.constant 0 : index
    %c0_59 = arith.constant 0 : index
    %145 = vector.load %arg11[%c0_57, %c0_58, %c0_59] : memref<1x1x32xf32, #tpu.memory_space<vmem>>, vector<1x1x32xf32>
    %146 = vector.shape_cast %145 : vector<1x1x32xf32> to vector<1x32xf32>
    %147 = vector.broadcast %146 : vector<1x32xf32> to vector<8x32xf32>
    %148 = arith.addf %144, %147 : vector<8x32xf32>
    %c0_60 = arith.constant 0 : index
    %c0_61 = arith.constant 0 : index
    %c0_62 = arith.constant 0 : index
    %149 = vector.load %arg12[%c0_60, %c0_61, %c0_62] : memref<1x32x64xbf16, #tpu.memory_space<vmem>>, vector<1x32x64xbf16>
    %150 = vector.shape_cast %149 : vector<1x32x64xbf16> to vector<32x64xbf16>
    %cst_63 = arith.constant dense<0.000000e+00> : vector<128x64xf32>
    %151 = tpu.matmul %5, %150, %cst_63 {dimension_numbers = #tpu.dot_dimension_numbers<[1], [0], [0], [1], [0, 0, 1, 1], [], []>} : vector<128x32xbf16>, vector<32x64xbf16>, vector<128x64xf32> -> vector<128x64xf32>
    %c0_64 = arith.constant 0 : index
    %c0_65 = arith.constant 0 : index
    %c0_66 = arith.constant 0 : index
    %152 = vector.load %arg13[%c0_64, %c0_65, %c0_66] : memref<1x1x64xf32, #tpu.memory_space<vmem>>, vector<1x1x64xf32>
    %153 = vector.shape_cast %152 : vector<1x1x64xf32> to vector<1x64xf32>
    %154 = vector.broadcast %153 : vector<1x64xf32> to vector<128x64xf32>
    %155 = arith.addf %151, %154 : vector<128x64xf32>
    %c0_67 = arith.constant 0 : index
    %c0_68 = arith.constant 0 : index
    %c0_69 = arith.constant 0 : index
    %156 = vector.load %arg5[%c0_67, %c0_68, %c0_69] : memref<1x1x128xf32, #tpu.memory_space<vmem>>, vector<1x1x128xf32>
    %157 = vector.extract_strided_slice %155 {offsets = [0, 0], sizes = [128, 32], strides = [1, 1]} : vector<128x64xf32> to vector<128x32xf32>
    %158 = vector.extract_strided_slice %155 {offsets = [0, 32], sizes = [128, 32], strides = [1, 1]} : vector<128x64xf32> to vector<128x32xf32>
    %cst_70 = arith.constant 0.353553385 : f32
    %159 = vector.broadcast %cst_70 : f32 to vector<8x32xf32>
    %160 = arith.mulf %148, %159 : vector<8x32xf32>
    %161 = arith.truncf %160 : vector<8x32xf32> to vector<8x32xbf16>
    %162 = arith.truncf %157 : vector<128x32xf32> to vector<128x32xbf16>
    %163 = arith.truncf %158 : vector<128x32xf32> to vector<128x32xbf16>
    %164 = vector.shape_cast %156 : vector<1x1x128xf32> to vector<1x128xf32>
    %165 = vector.shape_cast %164 : vector<1x128xf32> to vector<1x128xf32>
    %166 = vector.broadcast %165 : vector<1x128xf32> to vector<8x128xf32>
    %167 = vector.extract_strided_slice %161 {offsets = [0, 0], sizes = [8, 8], strides = [1, 1]} : vector<8x32xbf16> to vector<8x8xbf16>
    %168 = vector.extract_strided_slice %162 {offsets = [0, 0], sizes = [128, 8], strides = [1, 1]} : vector<128x32xbf16> to vector<128x8xbf16>
    %169 = tpu.transpose %168, [1, 0] : vector<128x8xbf16> -> vector<8x128xbf16>
    %cst_71 = arith.constant dense<0.000000e+00> : vector<8x128xf32>
    %170 = tpu.matmul %167, %169, %cst_71 {dimension_numbers = #tpu.dot_dimension_numbers<[1], [0], [0], [1], [0, 0, 1, 1], [], []>} : vector<8x8xbf16>, vector<8x128xbf16>, vector<8x128xf32> -> vector<8x128xf32>
    %171 = arith.addf %170, %166 : vector<8x128xf32>
    %cst_72 = arith.constant dense<0xFF800000> : vector<8xf32>
    %172 = vector.multi_reduction <maximumf>, %171, %cst_72 [1] : vector<8x128xf32> to vector<8xf32>
    %173 = vector.shape_cast %172 : vector<8xf32> to vector<8x1xf32>
    %174 = vector.broadcast %173 : vector<8x1xf32> to vector<8x128xf32>
    %175 = arith.subf %171, %174 : vector<8x128xf32>
    %176 = math.exp %175 : vector<8x128xf32>
    %cst_73 = arith.constant dense<0.000000e+00> : vector<8xf32>
    %177 = vector.multi_reduction <add>, %176, %cst_73 [1] : vector<8x128xf32> to vector<8xf32>
    %178 = vector.shape_cast %177 : vector<8xf32> to vector<8x1xf32>
    %179 = tpu.reciprocal %178 {approx = true} : vector<8x1xf32> -> vector<8x1xf32>
    %180 = arith.truncf %176 : vector<8x128xf32> to vector<8x128xbf16>
    %181 = vector.extract_strided_slice %163 {offsets = [0, 0], sizes = [128, 8], strides = [1, 1]} : vector<128x32xbf16> to vector<128x8xbf16>
    %cst_74 = arith.constant dense<0.000000e+00> : vector<8x8xf32>
    %182 = tpu.matmul %180, %181, %cst_74 {dimension_numbers = #tpu.dot_dimension_numbers<[1], [0], [0], [1], [0, 0, 1, 1], [], []>} : vector<8x128xbf16>, vector<128x8xbf16>, vector<8x8xf32> -> vector<8x8xf32>
    %183 = vector.broadcast %179 : vector<8x1xf32> to vector<8x8xf32>
    %184 = arith.mulf %182, %183 : vector<8x8xf32>
    %185 = arith.truncf %184 : vector<8x8xf32> to vector<8x8xbf16>
    %c0_75 = arith.constant 0 : index
    %c0_76 = arith.constant 0 : index
    %186 = vector.load %arg24[%c0_75, %c0_76] : memref<8x32xbf16, #tpu.memory_space<vmem>>, vector<8x8xbf16>
    tpu.vector_store %arg24[%c0_75, %c0_76], %185 {strides = array<i32>} : memref<8x32xbf16, #tpu.memory_space<vmem>>, vector<8x8xbf16>,
    %187 = arith.extui %0 : i1 to i32
    %c0_i32_77 = arith.constant 0 : i32
    %188 = arith.cmpi ne, %187, %c0_i32_77 : i32
    scf.if %188 {
      %338 = vector.broadcast %179 : vector<8x1xf32> to vector<8x128xf32>
      %339 = arith.mulf %176, %338 : vector<8x128xf32>
      %c0_138 = arith.constant 0 : index
      %c0_139 = arith.constant 0 : index
      %c0_140 = arith.constant 0 : index
      %c0_141 = arith.constant 0 : index
      %340 = vector.load %arg22[%c0_138, %c0_139, %c0_140, %c0_141] : memref<1x4x8x128xf32, #tpu.memory_space<vmem>>, vector<1x1x8x128xf32>
      %341 = vector.shape_cast %340 : vector<1x1x8x128xf32> to vector<8x128xf32>
      %342 = vector.shape_cast %339 : vector<8x128xf32> to vector<1x1x8x128xf32>
      tpu.vector_store %arg22[%c0_138, %c0_139, %c0_140, %c0_141], %342 {strides = array<i32>} : memref<1x4x8x128xf32, #tpu.memory_space<vmem>>, vector<1x1x8x128xf32>,
    } else {
    }
    %189 = vector.extract_strided_slice %161 {offsets = [0, 8], sizes = [8, 8], strides = [1, 1]} : vector<8x32xbf16> to vector<8x8xbf16>
    %190 = vector.extract_strided_slice %162 {offsets = [0, 8], sizes = [128, 8], strides = [1, 1]} : vector<128x32xbf16> to vector<128x8xbf16>
    %191 = tpu.transpose %190, [1, 0] : vector<128x8xbf16> -> vector<8x128xbf16>
    %cst_78 = arith.constant dense<0.000000e+00> : vector<8x128xf32>
    %192 = tpu.matmul %189, %191, %cst_78 {dimension_numbers = #tpu.dot_dimension_numbers<[1], [0], [0], [1], [0, 0, 1, 1], [], []>} : vector<8x8xbf16>, vector<8x128xbf16>, vector<8x128xf32> -> vector<8x128xf32>
    %193 = arith.addf %192, %166 : vector<8x128xf32>
    %cst_79 = arith.constant dense<0xFF800000> : vector<8xf32>
    %194 = vector.multi_reduction <maximumf>, %193, %cst_79 [1] : vector<8x128xf32> to vector<8xf32>
    %195 = vector.shape_cast %194 : vector<8xf32> to vector<8x1xf32>
    %196 = vector.broadcast %195 : vector<8x1xf32> to vector<8x128xf32>
    %197 = arith.subf %193, %196 : vector<8x128xf32>
    %198 = math.exp %197 : vector<8x128xf32>
    %cst_80 = arith.constant dense<0.000000e+00> : vector<8xf32>
    %199 = vector.multi_reduction <add>, %198, %cst_80 [1] : vector<8x128xf32> to vector<8xf32>
    %200 = vector.shape_cast %199 : vector<8xf32> to vector<8x1xf32>
    %201 = tpu.reciprocal %200 {approx = true} : vector<8x1xf32> -> vector<8x1xf32>
    %202 = arith.truncf %198 : vector<8x128xf32> to vector<8x128xbf16>
    %203 = vector.extract_strided_slice %163 {offsets = [0, 8], sizes = [128, 8], strides = [1, 1]} : vector<128x32xbf16> to vector<128x8xbf16>
    %cst_81 = arith.constant dense<0.000000e+00> : vector<8x8xf32>
    %204 = tpu.matmul %202, %203, %cst_81 {dimension_numbers = #tpu.dot_dimension_numbers<[1], [0], [0], [1], [0, 0, 1, 1], [], []>} : vector<8x128xbf16>, vector<128x8xbf16>, vector<8x8xf32> -> vector<8x8xf32>
    %205 = vector.broadcast %201 : vector<8x1xf32> to vector<8x8xf32>
    %206 = arith.mulf %204, %205 : vector<8x8xf32>
    %207 = arith.truncf %206 : vector<8x8xf32> to vector<8x8xbf16>
    %c0_82 = arith.constant 0 : index
    %c8_83 = arith.constant 8 : index
    %208 = vector.load %arg24[%c0_82, %c8_83] : memref<8x32xbf16, #tpu.memory_space<vmem>>, vector<8x8xbf16>
    tpu.vector_store %arg24[%c0_82, %c8_83], %207 {strides = array<i32>} : memref<8x32xbf16, #tpu.memory_space<vmem>>, vector<8x8xbf16>,
    %209 = arith.extui %0 : i1 to i32
    %c0_i32_84 = arith.constant 0 : i32
    %210 = arith.cmpi ne, %209, %c0_i32_84 : i32
    scf.if %210 {
      %338 = vector.broadcast %201 : vector<8x1xf32> to vector<8x128xf32>
      %339 = arith.mulf %198, %338 : vector<8x128xf32>
      %c0_138 = arith.constant 0 : index
      %c1 = arith.constant 1 : index
      %c0_139 = arith.constant 0 : index
      %c0_140 = arith.constant 0 : index
      %340 = vector.load %arg22[%c0_138, %c1, %c0_139, %c0_140] : memref<1x4x8x128xf32, #tpu.memory_space<vmem>>, vector<1x1x8x128xf32>
      %341 = vector.shape_cast %340 : vector<1x1x8x128xf32> to vector<8x128xf32>
      %342 = vector.shape_cast %339 : vector<8x128xf32> to vector<1x1x8x128xf32>
      tpu.vector_store %arg22[%c0_138, %c1, %c0_139, %c0_140], %342 {strides = array<i32>} : memref<1x4x8x128xf32, #tpu.memory_space<vmem>>, vector<1x1x8x128xf32>,
    } else {
    }
    %211 = vector.extract_strided_slice %161 {offsets = [0, 16], sizes = [8, 8], strides = [1, 1]} : vector<8x32xbf16> to vector<8x8xbf16>
    %212 = vector.extract_strided_slice %162 {offsets = [0, 16], sizes = [128, 8], strides = [1, 1]} : vector<128x32xbf16> to vector<128x8xbf16>
    %213 = tpu.transpose %212, [1, 0] : vector<128x8xbf16> -> vector<8x128xbf16>
    %cst_85 = arith.constant dense<0.000000e+00> : vector<8x128xf32>
    %214 = tpu.matmul %211, %213, %cst_85 {dimension_numbers = #tpu.dot_dimension_numbers<[1], [0], [0], [1], [0, 0, 1, 1], [], []>} : vector<8x8xbf16>, vector<8x128xbf16>, vector<8x128xf32> -> vector<8x128xf32>
    %215 = arith.addf %214, %166 : vector<8x128xf32>
    %cst_86 = arith.constant dense<0xFF800000> : vector<8xf32>
    %216 = vector.multi_reduction <maximumf>, %215, %cst_86 [1] : vector<8x128xf32> to vector<8xf32>
    %217 = vector.shape_cast %216 : vector<8xf32> to vector<8x1xf32>
    %218 = vector.broadcast %217 : vector<8x1xf32> to vector<8x128xf32>
    %219 = arith.subf %215, %218 : vector<8x128xf32>
    %220 = math.exp %219 : vector<8x128xf32>
    %cst_87 = arith.constant dense<0.000000e+00> : vector<8xf32>
    %221 = vector.multi_reduction <add>, %220, %cst_87 [1] : vector<8x128xf32> to vector<8xf32>
    %222 = vector.shape_cast %221 : vector<8xf32> to vector<8x1xf32>
    %223 = tpu.reciprocal %222 {approx = true} : vector<8x1xf32> -> vector<8x1xf32>
    %224 = arith.truncf %220 : vector<8x128xf32> to vector<8x128xbf16>
    %225 = vector.extract_strided_slice %163 {offsets = [0, 16], sizes = [128, 8], strides = [1, 1]} : vector<128x32xbf16> to vector<128x8xbf16>
    %cst_88 = arith.constant dense<0.000000e+00> : vector<8x8xf32>
    %226 = tpu.matmul %224, %225, %cst_88 {dimension_numbers = #tpu.dot_dimension_numbers<[1], [0], [0], [1], [0, 0, 1, 1], [], []>} : vector<8x128xbf16>, vector<128x8xbf16>, vector<8x8xf32> -> vector<8x8xf32>
    %227 = vector.broadcast %223 : vector<8x1xf32> to vector<8x8xf32>
    %228 = arith.mulf %226, %227 : vector<8x8xf32>
    %229 = arith.truncf %228 : vector<8x8xf32> to vector<8x8xbf16>
    %c0_89 = arith.constant 0 : index
    %c16_90 = arith.constant 16 : index
    %230 = vector.load %arg24[%c0_89, %c16_90] : memref<8x32xbf16, #tpu.memory_space<vmem>>, vector<8x8xbf16>
    tpu.vector_store %arg24[%c0_89, %c16_90], %229 {strides = array<i32>} : memref<8x32xbf16, #tpu.memory_space<vmem>>, vector<8x8xbf16>,
    %231 = arith.extui %0 : i1 to i32
    %c0_i32_91 = arith.constant 0 : i32
    %232 = arith.cmpi ne, %231, %c0_i32_91 : i32
    scf.if %232 {
      %338 = vector.broadcast %223 : vector<8x1xf32> to vector<8x128xf32>
      %339 = arith.mulf %220, %338 : vector<8x128xf32>
      %c0_138 = arith.constant 0 : index
      %c2 = arith.constant 2 : index
      %c0_139 = arith.constant 0 : index
      %c0_140 = arith.constant 0 : index
      %340 = vector.load %arg22[%c0_138, %c2, %c0_139, %c0_140] : memref<1x4x8x128xf32, #tpu.memory_space<vmem>>, vector<1x1x8x128xf32>
      %341 = vector.shape_cast %340 : vector<1x1x8x128xf32> to vector<8x128xf32>
      %342 = vector.shape_cast %339 : vector<8x128xf32> to vector<1x1x8x128xf32>
      tpu.vector_store %arg22[%c0_138, %c2, %c0_139, %c0_140], %342 {strides = array<i32>} : memref<1x4x8x128xf32, #tpu.memory_space<vmem>>, vector<1x1x8x128xf32>,
    } else {
    }
    %233 = vector.extract_strided_slice %161 {offsets = [0, 24], sizes = [8, 8], strides = [1, 1]} : vector<8x32xbf16> to vector<8x8xbf16>
    %234 = vector.extract_strided_slice %162 {offsets = [0, 24], sizes = [128, 8], strides = [1, 1]} : vector<128x32xbf16> to vector<128x8xbf16>
    %235 = tpu.transpose %234, [1, 0] : vector<128x8xbf16> -> vector<8x128xbf16>
    %cst_92 = arith.constant dense<0.000000e+00> : vector<8x128xf32>
    %236 = tpu.matmul %233, %235, %cst_92 {dimension_numbers = #tpu.dot_dimension_numbers<[1], [0], [0], [1], [0, 0, 1, 1], [], []>} : vector<8x8xbf16>, vector<8x128xbf16>, vector<8x128xf32> -> vector<8x128xf32>
    %237 = arith.addf %236, %166 : vector<8x128xf32>
    %cst_93 = arith.constant dense<0xFF800000> : vector<8xf32>
    %238 = vector.multi_reduction <maximumf>, %237, %cst_93 [1] : vector<8x128xf32> to vector<8xf32>
    %239 = vector.shape_cast %238 : vector<8xf32> to vector<8x1xf32>
    %240 = vector.broadcast %239 : vector<8x1xf32> to vector<8x128xf32>
    %241 = arith.subf %237, %240 : vector<8x128xf32>
    %242 = math.exp %241 : vector<8x128xf32>
    %cst_94 = arith.constant dense<0.000000e+00> : vector<8xf32>
    %243 = vector.multi_reduction <add>, %242, %cst_94 [1] : vector<8x128xf32> to vector<8xf32>
    %244 = vector.shape_cast %243 : vector<8xf32> to vector<8x1xf32>
    %245 = tpu.reciprocal %244 {approx = true} : vector<8x1xf32> -> vector<8x1xf32>
    %246 = arith.truncf %242 : vector<8x128xf32> to vector<8x128xbf16>
    %247 = vector.extract_strided_slice %163 {offsets = [0, 24], sizes = [128, 8], strides = [1, 1]} : vector<128x32xbf16> to vector<128x8xbf16>
    %cst_95 = arith.constant dense<0.000000e+00> : vector<8x8xf32>
    %248 = tpu.matmul %246, %247, %cst_95 {dimension_numbers = #tpu.dot_dimension_numbers<[1], [0], [0], [1], [0, 0, 1, 1], [], []>} : vector<8x128xbf16>, vector<128x8xbf16>, vector<8x8xf32> -> vector<8x8xf32>
    %249 = vector.broadcast %245 : vector<8x1xf32> to vector<8x8xf32>
    %250 = arith.mulf %248, %249 : vector<8x8xf32>
    %251 = arith.truncf %250 : vector<8x8xf32> to vector<8x8xbf16>
    %c0_96 = arith.constant 0 : index
    %c24_97 = arith.constant 24 : index
    %252 = vector.load %arg24[%c0_96, %c24_97] : memref<8x32xbf16, #tpu.memory_space<vmem>>, vector<8x8xbf16>
    tpu.vector_store %arg24[%c0_96, %c24_97], %251 {strides = array<i32>} : memref<8x32xbf16, #tpu.memory_space<vmem>>, vector<8x8xbf16>,
    %253 = arith.extui %0 : i1 to i32
    %c0_i32_98 = arith.constant 0 : i32
    %254 = arith.cmpi ne, %253, %c0_i32_98 : i32
    scf.if %254 {
      %338 = vector.broadcast %245 : vector<8x1xf32> to vector<8x128xf32>
      %339 = arith.mulf %242, %338 : vector<8x128xf32>
      %c0_138 = arith.constant 0 : index
      %c3 = arith.constant 3 : index
      %c0_139 = arith.constant 0 : index
      %c0_140 = arith.constant 0 : index
      %340 = vector.load %arg22[%c0_138, %c3, %c0_139, %c0_140] : memref<1x4x8x128xf32, #tpu.memory_space<vmem>>, vector<1x1x8x128xf32>
      %341 = vector.shape_cast %340 : vector<1x1x8x128xf32> to vector<8x128xf32>
      %342 = vector.shape_cast %339 : vector<8x128xf32> to vector<1x1x8x128xf32>
      tpu.vector_store %arg22[%c0_138, %c3, %c0_139, %c0_140], %342 {strides = array<i32>} : memref<1x4x8x128xf32, #tpu.memory_space<vmem>>, vector<1x1x8x128xf32>,
    } else {
    }
    %c0_99 = arith.constant 0 : index
    %c0_100 = arith.constant 0 : index
    %255 = vector.load %arg24[%c0_99, %c0_100] : memref<8x32xbf16, #tpu.memory_space<vmem>>, vector<8x32xbf16>
    %c0_101 = arith.constant 0 : index
    %c0_102 = arith.constant 0 : index
    %c0_103 = arith.constant 0 : index
    %256 = vector.load %arg14[%c0_101, %c0_102, %c0_103] : memref<1x32x32xbf16, #tpu.memory_space<vmem>>, vector<1x32x32xbf16>
    %257 = vector.shape_cast %256 : vector<1x32x32xbf16> to vector<32x32xbf16>
    %cst_104 = arith.constant dense<0.000000e+00> : vector<8x32xf32>
    %258 = tpu.matmul %255, %257, %cst_104 {dimension_numbers = #tpu.dot_dimension_numbers<[1], [0], [0], [1], [0, 0, 1, 1], [], []>} : vector<8x32xbf16>, vector<32x32xbf16>, vector<8x32xf32> -> vector<8x32xf32>
    %c0_105 = arith.constant 0 : index
    %c0_106 = arith.constant 0 : index
    %c0_107 = arith.constant 0 : index
    %259 = vector.load %arg15[%c0_105, %c0_106, %c0_107] : memref<1x1x32xf32, #tpu.memory_space<vmem>>, vector<1x1x32xf32>
    %260 = vector.shape_cast %259 : vector<1x1x32xf32> to vector<1x32xf32>
    %261 = vector.broadcast %260 : vector<1x32xf32> to vector<8x32xf32>
    %262 = arith.addf %258, %261 : vector<8x32xf32>
    %263 = arith.addf %140, %262 : vector<8x32xf32>
    %264 = vector.extract_strided_slice %7 {offsets = [2, 0], sizes = [1, 32], strides = [1, 1]} : vector<6x32xf32> to vector<1x32xf32>
    %265 = vector.extract_strided_slice %7 {offsets = [3, 0], sizes = [1, 32], strides = [1, 1]} : vector<6x32xf32> to vector<1x32xf32>
    %cst_108 = arith.constant dense<0.000000e+00> : vector<8xf32>
    %266 = vector.multi_reduction <add>, %263, %cst_108 [1] : vector<8x32xf32> to vector<8xf32>
    %267 = vector.shape_cast %266 : vector<8xf32> to vector<8x1xf32>
    %268 = arith.mulf %263, %263 : vector<8x32xf32>
    %cst_109 = arith.constant dense<0.000000e+00> : vector<8xf32>
    %269 = vector.multi_reduction <add>, %268, %cst_109 [1] : vector<8x32xf32> to vector<8xf32>
    %270 = vector.shape_cast %269 : vector<8xf32> to vector<8x1xf32>
    %cst_110 = arith.constant 3.125000e-02 : f32
    %271 = vector.broadcast %cst_110 : f32 to vector<8x1xf32>
    %272 = arith.mulf %267, %271 : vector<8x1xf32>
    %cst_111 = arith.constant 3.125000e-02 : f32
    %273 = vector.broadcast %cst_111 : f32 to vector<8x1xf32>
    %274 = arith.mulf %270, %273 : vector<8x1xf32>
    %275 = arith.mulf %272, %272 : vector<8x1xf32>
    %276 = arith.subf %274, %275 : vector<8x1xf32>
    %cst_112 = arith.constant 0.000000e+00 : f32
    %277 = vector.broadcast %cst_112 : f32 to vector<8x1xf32>
    %278 = arith.maximumf %276, %277 : vector<8x1xf32>
    %279 = vector.broadcast %272 : vector<8x1xf32> to vector<8x32xf32>
    %280 = arith.subf %263, %279 : vector<8x32xf32>
    %cst_113 = arith.constant 9.99999974E-6 : f32
    %281 = vector.broadcast %cst_113 : f32 to vector<8x1xf32>
    %282 = arith.addf %278, %281 : vector<8x1xf32>
    %283 = math.rsqrt %282 : vector<8x1xf32>
    %284 = vector.broadcast %283 : vector<8x1xf32> to vector<8x32xf32>
    %285 = arith.mulf %280, %284 : vector<8x32xf32>
    %286 = vector.broadcast %264 : vector<1x32xf32> to vector<8x32xf32>
    %287 = arith.mulf %285, %286 : vector<8x32xf32>
    %288 = vector.broadcast %265 : vector<1x32xf32> to vector<8x32xf32>
    %289 = arith.addf %287, %288 : vector<8x32xf32>
    %290 = arith.truncf %289 : vector<8x32xf32> to vector<8x32xbf16>
    %c0_114 = arith.constant 0 : index
    %c0_115 = arith.constant 0 : index
    %c0_116 = arith.constant 0 : index
    %291 = vector.load %arg17[%c0_114, %c0_115, %c0_116] : memref<1x32x64xbf16, #tpu.memory_space<vmem>>, vector<1x32x64xbf16>
    %292 = vector.shape_cast %291 : vector<1x32x64xbf16> to vector<32x64xbf16>
    %cst_117 = arith.constant dense<0.000000e+00> : vector<8x64xf32>
    %293 = tpu.matmul %290, %292, %cst_117 {dimension_numbers = #tpu.dot_dimension_numbers<[1], [0], [0], [1], [0, 0, 1, 1], [], []>} : vector<8x32xbf16>, vector<32x64xbf16>, vector<8x64xf32> -> vector<8x64xf32>
    %c0_118 = arith.constant 0 : index
    %c0_119 = arith.constant 0 : index
    %c0_120 = arith.constant 0 : index
    %294 = vector.load %arg18[%c0_118, %c0_119, %c0_120] : memref<1x1x64xf32, #tpu.memory_space<vmem>>, vector<1x1x64xf32>
    %295 = vector.shape_cast %294 : vector<1x1x64xf32> to vector<1x64xf32>
    %296 = vector.broadcast %295 : vector<1x64xf32> to vector<8x64xf32>
    %297 = arith.addf %293, %296 : vector<8x64xf32>
    %cst_121 = arith.constant 0.000000e+00 : f32
    %298 = vector.broadcast %cst_121 : f32 to vector<8x64xf32>
    %299 = arith.maximumf %297, %298 : vector<8x64xf32>
    %300 = arith.truncf %299 : vector<8x64xf32> to vector<8x64xbf16>
    %c0_122 = arith.constant 0 : index
    %c0_123 = arith.constant 0 : index
    %c0_124 = arith.constant 0 : index
    %301 = vector.load %arg19[%c0_122, %c0_123, %c0_124] : memref<1x64x32xbf16, #tpu.memory_space<vmem>>, vector<1x64x32xbf16>
    %302 = vector.shape_cast %301 : vector<1x64x32xbf16> to vector<64x32xbf16>
    %cst_125 = arith.constant dense<0.000000e+00> : vector<8x32xf32>
    %303 = tpu.matmul %300, %302, %cst_125 {dimension_numbers = #tpu.dot_dimension_numbers<[1], [0], [0], [1], [0, 0, 1, 1], [], []>} : vector<8x64xbf16>, vector<64x32xbf16>, vector<8x32xf32> -> vector<8x32xf32>
    %c0_126 = arith.constant 0 : index
    %c0_127 = arith.constant 0 : index
    %c0_128 = arith.constant 0 : index
    %304 = vector.load %arg20[%c0_126, %c0_127, %c0_128] : memref<1x1x32xf32, #tpu.memory_space<vmem>>, vector<1x1x32xf32>
    %305 = vector.shape_cast %304 : vector<1x1x32xf32> to vector<1x32xf32>
    %306 = vector.broadcast %305 : vector<1x32xf32> to vector<8x32xf32>
    %307 = arith.addf %303, %306 : vector<8x32xf32>
    %308 = arith.addf %289, %307 : vector<8x32xf32>
    %309 = vector.extract_strided_slice %7 {offsets = [4, 0], sizes = [1, 32], strides = [1, 1]} : vector<6x32xf32> to vector<1x32xf32>
    %310 = vector.extract_strided_slice %7 {offsets = [5, 0], sizes = [1, 32], strides = [1, 1]} : vector<6x32xf32> to vector<1x32xf32>
    %cst_129 = arith.constant dense<0.000000e+00> : vector<8xf32>
    %311 = vector.multi_reduction <add>, %308, %cst_129 [1] : vector<8x32xf32> to vector<8xf32>
    %312 = vector.shape_cast %311 : vector<8xf32> to vector<8x1xf32>
    %313 = arith.mulf %308, %308 : vector<8x32xf32>
    %cst_130 = arith.constant dense<0.000000e+00> : vector<8xf32>
    %314 = vector.multi_reduction <add>, %313, %cst_130 [1] : vector<8x32xf32> to vector<8xf32>
    %315 = vector.shape_cast %314 : vector<8xf32> to vector<8x1xf32>
    %cst_131 = arith.constant 3.125000e-02 : f32
    %316 = vector.broadcast %cst_131 : f32 to vector<8x1xf32>
    %317 = arith.mulf %312, %316 : vector<8x1xf32>
    %cst_132 = arith.constant 3.125000e-02 : f32
    %318 = vector.broadcast %cst_132 : f32 to vector<8x1xf32>
    %319 = arith.mulf %315, %318 : vector<8x1xf32>
    %320 = arith.mulf %317, %317 : vector<8x1xf32>
    %321 = arith.subf %319, %320 : vector<8x1xf32>
    %cst_133 = arith.constant 0.000000e+00 : f32
    %322 = vector.broadcast %cst_133 : f32 to vector<8x1xf32>
    %323 = arith.maximumf %321, %322 : vector<8x1xf32>
    %324 = vector.broadcast %317 : vector<8x1xf32> to vector<8x32xf32>
    %325 = arith.subf %308, %324 : vector<8x32xf32>
    %cst_134 = arith.constant 9.99999974E-6 : f32
    %326 = vector.broadcast %cst_134 : f32 to vector<8x1xf32>
    %327 = arith.addf %323, %326 : vector<8x1xf32>
    %328 = math.rsqrt %327 : vector<8x1xf32>
    %329 = vector.broadcast %328 : vector<8x1xf32> to vector<8x32xf32>
    %330 = arith.mulf %325, %329 : vector<8x32xf32>
    %331 = vector.broadcast %309 : vector<1x32xf32> to vector<8x32xf32>
    %332 = arith.mulf %330, %331 : vector<8x32xf32>
    %333 = vector.broadcast %310 : vector<1x32xf32> to vector<8x32xf32>
    %334 = arith.addf %332, %333 : vector<8x32xf32>
    %c0_135 = arith.constant 0 : index
    %c0_136 = arith.constant 0 : index
    %335 = vector.load %arg23[%c0_135, %c0_136] : memref<8x32xf32, #tpu.memory_space<vmem>>, vector<8x32xf32>
    tpu.vector_store %arg23[%c0_135, %c0_136], %334 {strides = array<i32>} : memref<8x32xf32, #tpu.memory_space<vmem>>, vector<8x32xf32>,
    %336 = arith.extui %0 : i1 to i32
    %c0_i32_137 = arith.constant 0 : i32
    %337 = arith.cmpi ne, %336, %c0_i32_137 : i32
    scf.if %337 {
      %c0_138 = arith.constant 0 : index
      %c0_139 = arith.constant 0 : index
      %338 = vector.load %arg21[%c0_138, %c0_139] : memref<8x32xf32, #tpu.memory_space<vmem>>, vector<8x32xf32>
      tpu.vector_store %arg21[%c0_138, %c0_139], %334 {strides = array<i32>} : memref<8x32xf32, #tpu.memory_space<vmem>>, vector<8x32xf32>,
    } else {
    }
    return
  }
  func.func @transform_0(%arg0: i32, %arg1: i32) -> (i32, i32) {
    %c0_i32 = arith.constant 0 : i32
    %c0_i32_0 = arith.constant 0 : i32
    return %arg0, %c0_i32 : i32, i32
  }
  func.func @transform_1(%arg0: i32, %arg1: i32) -> (i32, i32) {
    %c0_i32 = arith.constant 0 : i32
    %c0_i32_0 = arith.constant 0 : i32
    return %arg0, %c0_i32 : i32, i32
  }
  func.func @transform_2(%arg0: i32, %arg1: i32) -> (i32, i32, i32) {
    %c0_i32 = arith.constant 0 : i32
    %c0_i32_0 = arith.constant 0 : i32
    %c0_i32_1 = arith.constant 0 : i32
    %c0_i32_2 = arith.constant 0 : i32
    return %c0_i32, %c0_i32_0, %c0_i32_1 : i32, i32, i32
  }
  func.func @transform_3(%arg0: i32, %arg1: i32) -> (i32, i32, i32) {
    %c0_i32 = arith.constant 0 : i32
    %c0_i32_0 = arith.constant 0 : i32
    %c0_i32_1 = arith.constant 0 : i32
    return %arg0, %c0_i32, %c0_i32_0 : i32, i32, i32
  }
  func.func @transform_4(%arg0: i32, %arg1: i32) -> (i32, i32, i32) {
    %c0_i32 = arith.constant 0 : i32
    %c0_i32_0 = arith.constant 0 : i32
    %c0_i32_1 = arith.constant 0 : i32
    return %arg1, %c0_i32, %c0_i32_0 : i32, i32, i32
  }
  func.func @transform_5(%arg0: i32, %arg1: i32) -> (i32, i32, i32) {
    %c0_i32 = arith.constant 0 : i32
    %c0_i32_0 = arith.constant 0 : i32
    %c0_i32_1 = arith.constant 0 : i32
    return %arg1, %c0_i32, %c0_i32_0 : i32, i32, i32
  }
  func.func @transform_6(%arg0: i32, %arg1: i32) -> (i32, i32, i32) {
    %c0_i32 = arith.constant 0 : i32
    %c0_i32_0 = arith.constant 0 : i32
    %c0_i32_1 = arith.constant 0 : i32
    return %arg1, %c0_i32, %c0_i32_0 : i32, i32, i32
  }
  func.func @transform_7(%arg0: i32, %arg1: i32) -> (i32, i32, i32) {
    %c0_i32 = arith.constant 0 : i32
    %c0_i32_0 = arith.constant 0 : i32
    %c0_i32_1 = arith.constant 0 : i32
    return %arg1, %c0_i32, %c0_i32_0 : i32, i32, i32
  }
  func.func @transform_8(%arg0: i32, %arg1: i32) -> (i32, i32, i32) {
    %c0_i32 = arith.constant 0 : i32
    %c0_i32_0 = arith.constant 0 : i32
    %c0_i32_1 = arith.constant 0 : i32
    return %arg1, %c0_i32, %c0_i32_0 : i32, i32, i32
  }
  func.func @transform_9(%arg0: i32, %arg1: i32) -> (i32, i32, i32) {
    %c0_i32 = arith.constant 0 : i32
    %c0_i32_0 = arith.constant 0 : i32
    %c0_i32_1 = arith.constant 0 : i32
    return %arg1, %c0_i32, %c0_i32_0 : i32, i32, i32
  }
  func.func @transform_10(%arg0: i32, %arg1: i32) -> (i32, i32, i32) {
    %c0_i32 = arith.constant 0 : i32
    %c0_i32_0 = arith.constant 0 : i32
    %c0_i32_1 = arith.constant 0 : i32
    return %arg1, %c0_i32, %c0_i32_0 : i32, i32, i32
  }
  func.func @transform_11(%arg0: i32, %arg1: i32) -> (i32, i32, i32) {
    %c0_i32 = arith.constant 0 : i32
    %c0_i32_0 = arith.constant 0 : i32
    %c0_i32_1 = arith.constant 0 : i32
    return %arg1, %c0_i32, %c0_i32_0 : i32, i32, i32
  }
  func.func @transform_12(%arg0: i32, %arg1: i32) -> (i32, i32, i32) {
    %c0_i32 = arith.constant 0 : i32
    %c0_i32_0 = arith.constant 0 : i32
    %c0_i32_1 = arith.constant 0 : i32
    return %arg1, %c0_i32, %c0_i32_0 : i32, i32, i32
  }
  func.func @transform_13(%arg0: i32, %arg1: i32) -> (i32, i32, i32) {
    %c0_i32 = arith.constant 0 : i32
    %c0_i32_0 = arith.constant 0 : i32
    %c0_i32_1 = arith.constant 0 : i32
    return %arg1, %c0_i32, %c0_i32_0 : i32, i32, i32
  }
  func.func @transform_14(%arg0: i32, %arg1: i32) -> (i32, i32, i32) {
    %c0_i32 = arith.constant 0 : i32
    %c0_i32_0 = arith.constant 0 : i32
    %c0_i32_1 = arith.constant 0 : i32
    return %arg1, %c0_i32, %c0_i32_0 : i32, i32, i32
  }
  func.func @transform_15(%arg0: i32, %arg1: i32) -> (i32, i32, i32) {
    %c0_i32 = arith.constant 0 : i32
    %c0_i32_0 = arith.constant 0 : i32
    %c0_i32_1 = arith.constant 0 : i32
    return %arg1, %c0_i32, %c0_i32_0 : i32, i32, i32
  }
  func.func @transform_16(%arg0: i32, %arg1: i32) -> (i32, i32, i32) {
    %c0_i32 = arith.constant 0 : i32
    %c0_i32_0 = arith.constant 0 : i32
    %c0_i32_1 = arith.constant 0 : i32
    return %arg1, %c0_i32, %c0_i32_0 : i32, i32, i32
  }
  func.func @transform_17(%arg0: i32, %arg1: i32) -> (i32, i32, i32) {
    %c0_i32 = arith.constant 0 : i32
    %c0_i32_0 = arith.constant 0 : i32
    %c0_i32_1 = arith.constant 0 : i32
    return %arg1, %c0_i32, %c0_i32_0 : i32, i32, i32
  }
  func.func @transform_18(%arg0: i32, %arg1: i32) -> (i32, i32, i32) {
    %c0_i32 = arith.constant 0 : i32
    %c0_i32_0 = arith.constant 0 : i32
    %c0_i32_1 = arith.constant 0 : i32
    return %arg1, %c0_i32, %c0_i32_0 : i32, i32, i32
  }
  func.func @transform_19(%arg0: i32, %arg1: i32) -> (i32, i32) {
    %c0_i32 = arith.constant 0 : i32
    %c0_i32_0 = arith.constant 0 : i32
    return %arg0, %c0_i32 : i32, i32
  }
  func.func @transform_20(%arg0: i32, %arg1: i32) -> (i32, i32, i32, i32) {
    %c0_i32 = arith.constant 0 : i32
    %c0_i32_0 = arith.constant 0 : i32
    %c0_i32_1 = arith.constant 0 : i32
    %c0_i32_2 = arith.constant 0 : i32
    return %arg0, %c0_i32, %c0_i32_0, %c0_i32_1 : i32, i32, i32, i32
  }
}

</mosaic_0001>

<llo_original>
// kernel: tpu_custom_call.1
$region0: #{tpu_custom_call.1}
  #allocation0 [shape = 'u32[]', space=smem, size = 0x4, offset = 0x4, fixed_abs, tag = 'smem constant byte address 0x4 - core index']
  #allocation1 [shape = 'u32[144,128]{1,0:T(1,128)}', space=vmem, size = 0x12000, scoped, tag = 'internal scratch']
  #allocation2 [shape = 'f32[8,32]{1,0:T(8,128)}', space=vmem, size = 0x1000, scoped, tag = 'scratch operand']
  #allocation3 [shape = 'bf16[8,32]{1,0:T(8,128)(2,1)}', space=vmem, size = 0x800, scoped, tag = 'scratch operand']
  %s0 = inlined_call_operand.hbm [shape: f32[16,32], index: 0, kind: input, shape index: {}]
  %s1 = inlined_call_operand.hbm [shape: bf16[256,32], index: 1, kind: input, shape index: {}]
  %s2 = inlined_call_operand.hbm [shape: f32[1,8,8], index: 2, kind: input, shape index: {}]
  %s3 = inlined_call_operand.hbm [shape: f32[2,1,128], index: 3, kind: input, shape index: {}]
  %s4 = inlined_call_operand.hbm [shape: bf16[2,32,96], index: 4, kind: input, shape index: {}]
  %s5 = inlined_call_operand.hbm [shape: f32[2,1,96], index: 5, kind: input, shape index: {}]
  %s6 = inlined_call_operand.hbm [shape: bf16[2,32,32], index: 6, kind: input, shape index: {}]
  %s7 = inlined_call_operand.hbm [shape: f32[2,1,32], index: 7, kind: input, shape index: {}]
  %s8 = inlined_call_operand.hbm [shape: bf16[2,32,32], index: 8, kind: input, shape index: {}]
  %s9 = inlined_call_operand.hbm [shape: f32[2,1,32], index: 9, kind: input, shape index: {}]
  %s10 = inlined_call_operand.hbm [shape: bf16[2,32,64], index: 10, kind: input, shape index: {}]
  %s11 = inlined_call_operand.hbm [shape: f32[2,1,64], index: 11, kind: input, shape index: {}]
  %s12 = inlined_call_operand.hbm [shape: bf16[2,32,32], index: 12, kind: input, shape index: {}]
  %s13 = inlined_call_operand.hbm [shape: f32[2,1,32], index: 13, kind: input, shape index: {}]
  %s14 = inlined_call_operand.hbm [shape: f32[2,6,32], index: 14, kind: input, shape index: {}]
  %s15 = inlined_call_operand.hbm [shape: bf16[2,32,64], index: 15, kind: input, shape index: {}]
  %s16 = inlined_call_operand.hbm [shape: f32[2,1,64], index: 16, kind: input, shape index: {}]
  %s17 = inlined_call_operand.hbm [shape: bf16[2,64,32], index: 17, kind: input, shape index: {}]
  %s18 = inlined_call_operand.hbm [shape: f32[2,1,32], index: 18, kind: input, shape index: {}]
  %s19 = inlined_call_operand.hbm [shape: f32[16,32], index: 19, kind: output, shape index: {0}]
  %s20 = inlined_call_operand.hbm [shape: f32[2,4,8,128], index: 20, kind: output, shape index: {1}]
  %21 = xla_tuple %s19, %s20
  %s22 = sld [smem:[#allocation0]]
  $region217: #{tpu_custom_call.1} parent=0
    _
  %s24 = ssub.s32 1, %s22
  %s25 = scalar_select 0, %s24, %s22
  $region1: #{tpu_custom_call.1} parent=0
    #allocation4 [shape = 'u8[8192]{0}', space=vmem, size = 0x2000, scoped, tag = 'input window, operand 0']
    #allocation5 [shape = 's32[2]{0}', space=sflag, size = 0x8, scoped, tag = 'scoped memory for tpu_custom_call.1']
    #allocation6 [shape = 's32[2]{0}', space=sflag, size = 0x8, scoped, tag = 'scoped memory for tpu_custom_call.1']
    #allocation7 [shape = 'u8[65536]{0}', space=vmem, size = 0x10000, scoped, tag = 'input window, operand 1']
    #allocation8 [shape = 's32[2]{0}', space=sflag, size = 0x8, scoped, tag = 'scoped memory for tpu_custom_call.1']
    #allocation9 [shape = 'u8[4096]{0}', space=vmem, size = 0x1000, scoped, tag = 'input window, operand 2, single buffered']
    #allocation10 [shape = 'u8[1024]{0}', space=vmem, size = 0x400, scoped, tag = 'input window, operand 3']
    #allocation11 [shape = 's32[2]{0}', space=sflag, size = 0x8, scoped, tag = 'scoped memory for tpu_custom_call.1']
    #allocation12 [shape = 'u8[16384]{0}', space=vmem, size = 0x4000, scoped, tag = 'input window, operand 4']
    #allocation13 [shape = 'u8[1024]{0}', space=vmem, size = 0x400, scoped, tag = 'input window, operand 5']
    #allocation14 [shape = 's32[2]{0}', space=sflag, size = 0x8, scoped, tag = 'scoped memory for tpu_custom_call.1']
    #allocation15 [shape = 'u8[16384]{0}', space=vmem, size = 0x4000, scoped, tag = 'input window, operand 6']
    #allocation16 [shape = 'u8[1024]{0}', space=vmem, size = 0x400, scoped, tag = 'input window, operand 7']
    #allocation17 [shape = 's32[2]{0}', space=sflag, size = 0x8, scoped, tag = 'scoped memory for tpu_custom_call.1']
    #allocation18 [shape = 'u8[16384]{0}', space=vmem, size = 0x4000, scoped, tag = 'input window, operand 8']
    #allocation19 [shape = 'u8[1024]{0}', space=vmem, size = 0x400, scoped, tag = 'input window, operand 9']
    #allocation20 [shape = 's32[2]{0}', space=sflag, size = 0x8, scoped, tag = 'scoped memory for tpu_custom_call.1']
    #allocation21 [shape = 'u8[16384]{0}', space=vmem, size = 0x4000, scoped, tag = 'input window, operand 10']
    #allocation22 [shape = 'u8[1024]{0}', space=vmem, size = 0x400, scoped, tag = 'input window, operand 11']
    #allocation23 [shape = 's32[2]{0}', space=sflag, size = 0x8, scoped, tag = 'scoped memory for tpu_custom_call.1']
    #allocation24 [shape = 'u8[16384]{0}', space=vmem, size = 0x4000, scoped, tag = 'input window, operand 12']
    #allocation25 [shape = 'u8[1024]{0}', space=vmem, size = 0x400, scoped, tag = 'input window, operand 13']
    #allocation26 [shape = 's32[2]{0}', space=sflag, size = 0x8, scoped, tag = 'scoped memory for tpu_custom_call.1']
    #allocation27 [shape = 'u8[8192]{0}', space=vmem, size = 0x2000, scoped, tag = 'input window, operand 14']
    #allocation28 [shape = 'u8[16384]{0}', space=vmem, size = 0x4000, scoped, tag = 'input window, operand 15']
    #allocation29 [shape = 's32[2]{0}', space=sflag, size = 0x8, scoped, tag = 'scoped memory for tpu_custom_call.1']
    #allocation30 [shape = 'u8[1024]{0}', space=vmem, size = 0x400, scoped, tag = 'input window, operand 16']
    #allocation31 [shape = 'u8[32768]{0}', space=vmem, size = 0x8000, scoped, tag = 'input window, operand 17']
    #allocation32 [shape = 's32[2]{0}', space=sflag, size = 0x8, scoped, tag = 'scoped memory for tpu_custom_call.1']
    #allocation33 [shape = 'u8[1024]{0}', space=vmem, size = 0x400, scoped, tag = 'input window, operand 18']
    #allocation34 [shape = 'u8[8192]{0}', space=vmem, size = 0x2000, scoped, tag = 'output window, operand 0']
    #allocation35 [shape = 'u8[32768]{0}', space=vmem, size = 0x8000, scoped, tag = 'output window, operand 1']
    #allocation36 [shape = 's32[2]{0}', space=sflag, size = 0x8, scoped, tag = 'scoped memory for tpu_custom_call.1']
    %26 = vsyncpa [#allocation5], 0
    %s27 = scalar_lea.sflag [#allocation5], 1
    %28 = vsyncpa %s27, 0
    %29 = vsyncpa [#allocation8], 0
    %s30 = scalar_lea.sflag [#allocation8], 1
    %31 = vsyncpa %s30, 0
    %32 = vsyncpa [#allocation11], 0
    %s33 = scalar_lea.sflag [#allocation11], 1
    %34 = vsyncpa %s33, 0
    %35 = vsyncpa [#allocation14], 0
    %s36 = scalar_lea.sflag [#allocation14], 1
    %37 = vsyncpa %s36, 0
    %38 = vsyncpa [#allocation17], 0
    %s39 = scalar_lea.sflag [#allocation17], 1
    %40 = vsyncpa %s39, 0
    %41 = vsyncpa [#allocation20], 0
    %s42 = scalar_lea.sflag [#allocation20], 1
    %43 = vsyncpa %s42, 0
    %44 = vsyncpa [#allocation23], 0
    %s45 = scalar_lea.sflag [#allocation23], 1
    %46 = vsyncpa %s45, 0
    %47 = vsyncpa [#allocation26], 0
    %s48 = scalar_lea.sflag [#allocation26], 1
    %49 = vsyncpa %s48, 0
    %50 = vsyncpa [#allocation29], 0
    %s51 = scalar_lea.sflag [#allocation29], 1
    %52 = vsyncpa %s51, 0
    %53 = vsyncpa [#allocation32], 0
    %s54 = scalar_lea.sflag [#allocation32], 1
    %55 = vsyncpa %s54, 0
    %56 = vsyncpa [#allocation6], 0
    %s57 = scalar_lea.sflag [#allocation6], 1
    %58 = vsyncpa %s57, 0
    %59 = vsyncpa [#allocation36], 0
    %s60 = scalar_lea.sflag [#allocation36], 1
    %61 = vsyncpa %s60, 0
    loop: start=0, step=1, limit=6
    $region2: #{tpu_custom_call.1} parent=1 // loop_pre_header
      _
    $region3: #{tpu_custom_call.1} parent=1 // loop_header
      %s63 = sphi 0, %s67
      %p64 = scmp.ge.s32.totalorder %s63, 6
      %s70 = sphi 0, %s82
      %s71 = sphi 0, %s78
      %s72 = sphi 0, %s70
      %s73 = sphi 0, %s71
      %s74 = sphi 0, %s72
      %s75 = sphi 0, %s73
      %s85 = sphi 0, %s87
      %s88 = sphi 0, %s85
      %s89 = sphi 0, %s88
      %s105 = sphi 0, %s89
      %s111 = sphi 0, %s113
      %s114 = sphi 0, %s111
      %s115 = sphi 0, %s114
      %s131 = sphi 0, %s115
      %s135 = sphi 0, %s135
      %s137 = sphi 0, %s135
      %s138 = sphi 0, %s137
      %s152 = sphi 0, %s138
      %s158 = sphi 0, %s160
      %s161 = sphi 0, %s158
      %s162 = sphi 0, %s161
      %s178 = sphi 0, %s162
      %s184 = sphi 0, %s186
      %s187 = sphi 0, %s184
      %s188 = sphi 0, %s187
      %s204 = sphi 0, %s188
      %s210 = sphi 0, %s212
      %s213 = sphi 0, %s210
      %s214 = sphi 0, %s213
      %s230 = sphi 0, %s214
      %s236 = sphi 0, %s238
      %s239 = sphi 0, %s236
      %s240 = sphi 0, %s239
      %s256 = sphi 0, %s240
      %s262 = sphi 0, %s264
      %s265 = sphi 0, %s262
      %s266 = sphi 0, %s265
      %s282 = sphi 0, %s266
      %s288 = sphi 0, %s290
      %s291 = sphi 0, %s288
      %s292 = sphi 0, %s291
      %s308 = sphi 0, %s292
      %s314 = sphi 0, %s316
      %s317 = sphi 0, %s314
      %s318 = sphi 0, %s317
      %s334 = sphi 0, %s318
      %s340 = sphi 0, %s342
      %s343 = sphi 0, %s340
      %s344 = sphi 0, %s343
      %s360 = sphi 0, %s344
      %s366 = sphi 0, %s368
      %s369 = sphi 0, %s366
      %s370 = sphi 0, %s369
      %s386 = sphi 0, %s370
      %s392 = sphi 0, %s394
      %s395 = sphi 0, %s392
      %s396 = sphi 0, %s395
      %s412 = sphi 0, %s396
      %s418 = sphi 0, %s420
      %s421 = sphi 0, %s418
      %s422 = sphi 0, %s421
      %s438 = sphi 0, %s422
      %s444 = sphi 0, %s446
      %s447 = sphi 0, %s444
      %s448 = sphi 0, %s447
      %s464 = sphi 0, %s448
      %s470 = sphi 0, %s472
      %s473 = sphi 0, %s470
      %s474 = sphi 0, %s473
      %s490 = sphi 0, %s474
      %s496 = sphi 0, %s498
      %s499 = sphi 0, %s496
      %s500 = sphi 0, %s499
      %s516 = sphi 0, %s500
      %s522 = sphi 0, %s524
      %s525 = sphi 0, %s522
      %s526 = sphi 0, %s525
      %s542 = sphi 0, %s526
      %s548 = sphi 0, %s550
      %s551 = sphi 0, %s548
      %s552 = sphi 0, %s551
      %s568 = sphi 0, %s552
      %s574 = sphi 0, %s576
      %s577 = sphi 0, %s574
      %s578 = sphi 0, %s577
      %s594 = sphi 0, %s578
      %s600 = sphi 0, %s602
      %s603 = sphi 0, %s600
      %s604 = sphi 0, %s603
      %s620 = sphi 0, %s604
    $region4: #{tpu_custom_call.1} parent=1 // loop_header_branch
      %66 = sbr.rel (%p64) target = $region8
    $region5: #{tpu_custom_call.1} parent=1 // loop_body
      %s68 = ssub.s32 %s63, 1
      %s69 = ssub.s32 %s63, 2
      %s76 = sadd.s32 1, %s71
      %p77 = scmp.ge.s32.totalorder %s76, 2
      %s78 = scalar_select %p77, 0, %s76
      %s79 = sadd.s32 1, %s70
      %s80 = scalar_select %p77, %s79, %s70
      %p81 = scmp.ge.s32.totalorder %s80, 2
      %s82 = scalar_select %p81, 0, %s80
      %s83 = ssub.s32 %s70, %s82
      %p84 = scmp.eq.s32.totalorder %s83, 0
      %s86 = sadd.s32 %s85, 1
      %s87 = scalar_select %p84, %s85, %s86
      %p90 = pneg %p84
      %p91 = scmp.eq.s32.totalorder %s63, 3
      %p92 = por %p90, %p91
      %p93 = scmp.ne.s32.totalorder %s85, %s88
      %p94 = scmp.eq.s32.totalorder %s63, 0
      %p95 = por %p93, %p94
      %p96 = scmp.ne.s32.totalorder %s85, %s88
      %p97 = scmp.eq.s32.totalorder %s68, 3
      %p98 = por %p96, %p97
      %p99 = scmp.ne.s32.totalorder %s88, %s89
      %p100 = scmp.eq.s32.totalorder %s68, 0
      %p101 = por %p99, %p100
      %p102 = scmp.ne.s32.totalorder %s88, %s89
      %p103 = scmp.eq.s32.totalorder %s69, 3
      %p104 = por %p102, %p103
      %p106 = scmp.ne.s32.totalorder %s89, %s105
      %p107 = scmp.eq.s32.totalorder %s69, 0
      %p108 = por %p106, %p107
      %s109 = ssub.s32 %s70, %s82
      %p110 = scmp.eq.s32.totalorder %s109, 0
      %s112 = sadd.s32 %s111, 1
      %s113 = scalar_select %p110, %s111, %s112
      %p116 = pneg %p110
      %p117 = scmp.eq.s32.totalorder %s63, 3
      %p118 = por %p116, %p117
      %p119 = scmp.ne.s32.totalorder %s111, %s114
      %p120 = scmp.eq.s32.totalorder %s63, 0
      %p121 = por %p119, %p120
      %p122 = scmp.ne.s32.totalorder %s111, %s114
      %p123 = scmp.eq.s32.totalorder %s68, 3
      %p124 = por %p122, %p123
      %p125 = scmp.ne.s32.totalorder %s114, %s115
      %p126 = scmp.eq.s32.totalorder %s68, 0
      %p127 = por %p125, %p126
      %p128 = scmp.ne.s32.totalorder %s114, %s115
      %p129 = scmp.eq.s32.totalorder %s69, 3
      %p130 = por %p128, %p129
      %p132 = scmp.ne.s32.totalorder %s115, %s131
      %p133 = scmp.eq.s32.totalorder %s69, 0
      %p134 = por %p132, %p133
      %s136 = sadd.s32 %s135, 1
      %p139 = scmp.eq.s32.totalorder %s63, 3
      %p140 = scmp.ne.s32.totalorder %s135, %s137
      %p141 = scmp.eq.s32.totalorder %s63, 0
      %p142 = por %p140, %p141
      %p143 = scmp.ne.s32.totalorder %s135, %s137
      %p144 = scmp.eq.s32.totalorder %s68, 3
      %p145 = por %p143, %p144
      %p146 = scmp.ne.s32.totalorder %s137, %s138
      %p147 = scmp.eq.s32.totalorder %s68, 0
      %p148 = por %p146, %p147
      %p149 = scmp.ne.s32.totalorder %s137, %s138
      %p150 = scmp.eq.s32.totalorder %s69, 3
      %p151 = por %p149, %p150
      %p153 = scmp.ne.s32.totalorder %s138, %s152
      %p154 = scmp.eq.s32.totalorder %s69, 0
      %p155 = por %p153, %p154
      %s156 = ssub.s32 %s70, %s82
      %p157 = scmp.eq.s32.totalorder %s156, 0
      %s159 = sadd.s32 %s158, 1
      %s160 = scalar_select %p157, %s158, %s159
      %p163 = pneg %p157
      %p164 = scmp.eq.s32.totalorder %s63, 3
      %p165 = por %p163, %p164
      %p166 = scmp.ne.s32.totalorder %s158, %s161
      %p167 = scmp.eq.s32.totalorder %s63, 0
      %p168 = por %p166, %p167
      %p169 = scmp.ne.s32.totalorder %s158, %s161
      %p170 = scmp.eq.s32.totalorder %s68, 3
      %p171 = por %p169, %p170
      %p172 = scmp.ne.s32.totalorder %s161, %s162
      %p173 = scmp.eq.s32.totalorder %s68, 0
      %p174 = por %p172, %p173
      %p175 = scmp.ne.s32.totalorder %s161, %s162
      %p176 = scmp.eq.s32.totalorder %s69, 3
      %p177 = por %p175, %p176
      %p179 = scmp.ne.s32.totalorder %s162, %s178
      %p180 = scmp.eq.s32.totalorder %s69, 0
      %p181 = por %p179, %p180
      %s182 = ssub.s32 %s71, %s78
      %p183 = scmp.eq.s32.totalorder %s182, 0
      %s185 = sadd.s32 %s184, 1
      %s186 = scalar_select %p183, %s184, %s185
      %p189 = pneg %p183
      %p190 = scmp.eq.s32.totalorder %s63, 3
      %p191 = por %p189, %p190
      %p192 = scmp.ne.s32.totalorder %s184, %s187
      %p193 = scmp.eq.s32.totalorder %s63, 0
      %p194 = por %p192, %p193
      %p195 = scmp.ne.s32.totalorder %s184, %s187
      %p196 = scmp.eq.s32.totalorder %s68, 3
      %p197 = por %p195, %p196
      %p198 = scmp.ne.s32.totalorder %s187, %s188
      %p199 = scmp.eq.s32.totalorder %s68, 0
      %p200 = por %p198, %p199
      %p201 = scmp.ne.s32.totalorder %s187, %s188
      %p202 = scmp.eq.s32.totalorder %s69, 3
      %p203 = por %p201, %p202
      %p205 = scmp.ne.s32.totalorder %s188, %s204
      %p206 = scmp.eq.s32.totalorder %s69, 0
      %p207 = por %p205, %p206
      %s208 = ssub.s32 %s71, %s78
      %p209 = scmp.eq.s32.totalorder %s208, 0
      %s211 = sadd.s32 %s210, 1
      %s212 = scalar_select %p209, %s210, %s211
      %p215 = pneg %p209
      %p216 = scmp.eq.s32.totalorder %s63, 3
      %p217 = por %p215, %p216
      %p218 = scmp.ne.s32.totalorder %s210, %s213
      %p219 = scmp.eq.s32.totalorder %s63, 0
      %p220 = por %p218, %p219
      %p221 = scmp.ne.s32.totalorder %s210, %s213
      %p222 = scmp.eq.s32.totalorder %s68, 3
      %p223 = por %p221, %p222
      %p224 = scmp.ne.s32.totalorder %s213, %s214
      %p225 = scmp.eq.s32.totalorder %s68, 0
      %p226 = por %p224, %p225
      %p227 = scmp.ne.s32.totalorder %s213, %s214
      %p228 = scmp.eq.s32.totalorder %s69, 3
      %p229 = por %p227, %p228
      %p231 = scmp.ne.s32.totalorder %s214, %s230
      %p232 = scmp.eq.s32.totalorder %s69, 0
      %p233 = por %p231, %p232
      %s234 = ssub.s32 %s71, %s78
      %p235 = scmp.eq.s32.totalorder %s234, 0
      %s237 = sadd.s32 %s236, 1
      %s238 = scalar_select %p235, %s236, %s237
      %p241 = pneg %p235
      %p242 = scmp.eq.s32.totalorder %s63, 3
      %p243 = por %p241, %p242
      %p244 = scmp.ne.s32.totalorder %s236, %s239
      %p245 = scmp.eq.s32.totalorder %s63, 0
      %p246 = por %p244, %p245
      %p247 = scmp.ne.s32.totalorder %s236, %s239
      %p248 = scmp.eq.s32.totalorder %s68, 3
      %p249 = por %p247, %p248
      %p250 = scmp.ne.s32.totalorder %s239, %s240
      %p251 = scmp.eq.s32.totalorder %s68, 0
      %p252 = por %p250, %p251
      %p253 = scmp.ne.s32.totalorder %s239, %s240
      %p254 = scmp.eq.s32.totalorder %s69, 3
      %p255 = por %p253, %p254
      %p257 = scmp.ne.s32.totalorder %s240, %s256
      %p258 = scmp.eq.s32.totalorder %s69, 0
      %p259 = por %p257, %p258
      %s260 = ssub.s32 %s71, %s78
      %p261 = scmp.eq.s32.totalorder %s260, 0
      %s263 = sadd.s32 %s262, 1
      %s264 = scalar_select %p261, %s262, %s263
      %p267 = pneg %p261
      %p268 = scmp.eq.s32.totalorder %s63, 3
      %p269 = por %p267, %p268
      %p270 = scmp.ne.s32.totalorder %s262, %s265
      %p271 = scmp.eq.s32.totalorder %s63, 0
      %p272 = por %p270, %p271
      %p273 = scmp.ne.s32.totalorder %s262, %s265
      %p274 = scmp.eq.s32.totalorder %s68, 3
      %p275 = por %p273, %p274
      %p276 = scmp.ne.s32.totalorder %s265, %s266
      %p277 = scmp.eq.s32.totalorder %s68, 0
      %p278 = por %p276, %p277
      %p279 = scmp.ne.s32.totalorder %s265, %s266
      %p280 = scmp.eq.s32.totalorder %s69, 3
      %p281 = por %p279, %p280
      %p283 = scmp.ne.s32.totalorder %s266, %s282
      %p284 = scmp.eq.s32.totalorder %s69, 0
      %p285 = por %p283, %p284
      %s286 = ssub.s32 %s71, %s78
      %p287 = scmp.eq.s32.totalorder %s286, 0
      %s289 = sadd.s32 %s288, 1
      %s290 = scalar_select %p287, %s288, %s289
      %p293 = pneg %p287
      %p294 = scmp.eq.s32.totalorder %s63, 3
      %p295 = por %p293, %p294
      %p296 = scmp.ne.s32.totalorder %s288, %s291
      %p297 = scmp.eq.s32.totalorder %s63, 0
      %p298 = por %p296, %p297
      %p299 = scmp.ne.s32.totalorder %s288, %s291
      %p300 = scmp.eq.s32.totalorder %s68, 3
      %p301 = por %p299, %p300
      %p302 = scmp.ne.s32.totalorder %s291, %s292
      %p303 = scmp.eq.s32.totalorder %s68, 0
      %p304 = por %p302, %p303
      %p305 = scmp.ne.s32.totalorder %s291, %s292
      %p306 = scmp.eq.s32.totalorder %s69, 3
      %p307 = por %p305, %p306
      %p309 = scmp.ne.s32.totalorder %s292, %s308
      %p310 = scmp.eq.s32.totalorder %s69, 0
      %p311 = por %p309, %p310
      %s312 = ssub.s32 %s71, %s78
      %p313 = scmp.eq.s32.totalorder %s312, 0
      %s315 = sadd.s32 %s314, 1
      %s316 = scalar_select %p313, %s314, %s315
      %p319 = pneg %p313
      %p320 = scmp.eq.s32.totalorder %s63, 3
      %p321 = por %p319, %p320
      %p322 = scmp.ne.s32.totalorder %s314, %s317
      %p323 = scmp.eq.s32.totalorder %s63, 0
      %p324 = por %p322, %p323
      %p325 = scmp.ne.s32.totalorder %s314, %s317
      %p326 = scmp.eq.s32.totalorder %s68, 3
      %p327 = por %p325, %p326
      %p328 = scmp.ne.s32.totalorder %s317, %s318
      %p329 = scmp.eq.s32.totalorder %s68, 0
      %p330 = por %p328, %p329
      %p331 = scmp.ne.s32.totalorder %s317, %s318
      %p332 = scmp.eq.s32.totalorder %s69, 3
      %p333 = por %p331, %p332
      %p335 = scmp.ne.s32.totalorder %s318, %s334
      %p336 = scmp.eq.s32.totalorder %s69, 0
      %p337 = por %p335, %p336
      %s338 = ssub.s32 %s71, %s78
      %p339 = scmp.eq.s32.totalorder %s338, 0
      %s341 = sadd.s32 %s340, 1
      %s342 = scalar_select %p339, %s340, %s341
      %p345 = pneg %p339
      %p346 = scmp.eq.s32.totalorder %s63, 3
      %p347 = por %p345, %p346
      %p348 = scmp.ne.s32.totalorder %s340, %s343
      %p349 = scmp.eq.s32.totalorder %s63, 0
      %p350 = por %p348, %p349
      %p351 = scmp.ne.s32.totalorder %s340, %s343
      %p352 = scmp.eq.s32.totalorder %s68, 3
      %p353 = por %p351, %p352
      %p354 = scmp.ne.s32.totalorder %s343, %s344
      %p355 = scmp.eq.s32.totalorder %s68, 0
      %p356 = por %p354, %p355
      %p357 = scmp.ne.s32.totalorder %s343, %s344
      %p358 = scmp.eq.s32.totalorder %s69, 3
      %p359 = por %p357, %p358
      %p361 = scmp.ne.s32.totalorder %s344, %s360
      %p362 = scmp.eq.s32.totalorder %s69, 0
      %p363 = por %p361, %p362
      %s364 = ssub.s32 %s71, %s78
      %p365 = scmp.eq.s32.totalorder %s364, 0
      %s367 = sadd.s32 %s366, 1
      %s368 = scalar_select %p365, %s366, %s367
      %p371 = pneg %p365
      %p372 = scmp.eq.s32.totalorder %s63, 3
      %p373 = por %p371, %p372
      %p374 = scmp.ne.s32.totalorder %s366, %s369
      %p375 = scmp.eq.s32.totalorder %s63, 0
      %p376 = por %p374, %p375
      %p377 = scmp.ne.s32.totalorder %s366, %s369
      %p378 = scmp.eq.s32.totalorder %s68, 3
      %p379 = por %p377, %p378
      %p380 = scmp.ne.s32.totalorder %s369, %s370
      %p381 = scmp.eq.s32.totalorder %s68, 0
      %p382 = por %p380, %p381
      %p383 = scmp.ne.s32.totalorder %s369, %s370
      %p384 = scmp.eq.s32.totalorder %s69, 3
      %p385 = por %p383, %p384
      %p387 = scmp.ne.s32.totalorder %s370, %s386
      %p388 = scmp.eq.s32.totalorder %s69, 0
      %p389 = por %p387, %p388
      %s390 = ssub.s32 %s71, %s78
      %p391 = scmp.eq.s32.totalorder %s390, 0
      %s393 = sadd.s32 %s392, 1
      %s394 = scalar_select %p391, %s392, %s393
      %p397 = pneg %p391
      %p398 = scmp.eq.s32.totalorder %s63, 3
      %p399 = por %p397, %p398
      %p400 = scmp.ne.s32.totalorder %s392, %s395
      %p401 = scmp.eq.s32.totalorder %s63, 0
      %p402 = por %p400, %p401
      %p403 = scmp.ne.s32.totalorder %s392, %s395
      %p404 = scmp.eq.s32.totalorder %s68, 3
      %p405 = por %p403, %p404
      %p406 = scmp.ne.s32.totalorder %s395, %s396
      %p407 = scmp.eq.s32.totalorder %s68, 0
      %p408 = por %p406, %p407
      %p409 = scmp.ne.s32.totalorder %s395, %s396
      %p410 = scmp.eq.s32.totalorder %s69, 3
      %p411 = por %p409, %p410
      %p413 = scmp.ne.s32.totalorder %s396, %s412
      %p414 = scmp.eq.s32.totalorder %s69, 0
      %p415 = por %p413, %p414
      %s416 = ssub.s32 %s71, %s78
      %p417 = scmp.eq.s32.totalorder %s416, 0
      %s419 = sadd.s32 %s418, 1
      %s420 = scalar_select %p417, %s418, %s419
      %p423 = pneg %p417
      %p424 = scmp.eq.s32.totalorder %s63, 3
      %p425 = por %p423, %p424
      %p426 = scmp.ne.s32.totalorder %s418, %s421
      %p427 = scmp.eq.s32.totalorder %s63, 0
      %p428 = por %p426, %p427
      %p429 = scmp.ne.s32.totalorder %s418, %s421
      %p430 = scmp.eq.s32.totalorder %s68, 3
      %p431 = por %p429, %p430
      %p432 = scmp.ne.s32.totalorder %s421, %s422
      %p433 = scmp.eq.s32.totalorder %s68, 0
      %p434 = por %p432, %p433
      %p435 = scmp.ne.s32.totalorder %s421, %s422
      %p436 = scmp.eq.s32.totalorder %s69, 3
      %p437 = por %p435, %p436
      %p439 = scmp.ne.s32.totalorder %s422, %s438
      %p440 = scmp.eq.s32.totalorder %s69, 0
      %p441 = por %p439, %p440
      %s442 = ssub.s32 %s71, %s78
      %p443 = scmp.eq.s32.totalorder %s442, 0
      %s445 = sadd.s32 %s444, 1
      %s446 = scalar_select %p443, %s444, %s445
      %p449 = pneg %p443
      %p450 = scmp.eq.s32.totalorder %s63, 3
      %p451 = por %p449, %p450
      %p452 = scmp.ne.s32.totalorder %s444, %s447
      %p453 = scmp.eq.s32.totalorder %s63, 0
      %p454 = por %p452, %p453
      %p455 = scmp.ne.s32.totalorder %s444, %s447
      %p456 = scmp.eq.s32.totalorder %s68, 3
      %p457 = por %p455, %p456
      %p458 = scmp.ne.s32.totalorder %s447, %s448
      %p459 = scmp.eq.s32.totalorder %s68, 0
      %p460 = por %p458, %p459
      %p461 = scmp.ne.s32.totalorder %s447, %s448
      %p462 = scmp.eq.s32.totalorder %s69, 3
      %p463 = por %p461, %p462
      %p465 = scmp.ne.s32.totalorder %s448, %s464
      %p466 = scmp.eq.s32.totalorder %s69, 0
      %p467 = por %p465, %p466
      %s468 = ssub.s32 %s71, %s78
      %p469 = scmp.eq.s32.totalorder %s468, 0
      %s471 = sadd.s32 %s470, 1
      %s472 = scalar_select %p469, %s470, %s471
      %p475 = pneg %p469
      %p476 = scmp.eq.s32.totalorder %s63, 3
      %p477 = por %p475, %p476
      %p478 = scmp.ne.s32.totalorder %s470, %s473
      %p479 = scmp.eq.s32.totalorder %s63, 0
      %p480 = por %p478, %p479
      %p481 = scmp.ne.s32.totalorder %s470, %s473
      %p482 = scmp.eq.s32.totalorder %s68, 3
      %p483 = por %p481, %p482
      %p484 = scmp.ne.s32.totalorder %s473, %s474
      %p485 = scmp.eq.s32.totalorder %s68, 0
      %p486 = por %p484, %p485
      %p487 = scmp.ne.s32.totalorder %s473, %s474
      %p488 = scmp.eq.s32.totalorder %s69, 3
      %p489 = por %p487, %p488
      %p491 = scmp.ne.s32.totalorder %s474, %s490
      %p492 = scmp.eq.s32.totalorder %s69, 0
      %p493 = por %p491, %p492
      %s494 = ssub.s32 %s71, %s78
      %p495 = scmp.eq.s32.totalorder %s494, 0
      %s497 = sadd.s32 %s496, 1
      %s498 = scalar_select %p495, %s496, %s497
      %p501 = pneg %p495
      %p502 = scmp.eq.s32.totalorder %s63, 3
      %p503 = por %p501, %p502
      %p504 = scmp.ne.s32.totalorder %s496, %s499
      %p505 = scmp.eq.s32.totalorder %s63, 0
      %p506 = por %p504, %p505
      %p507 = scmp.ne.s32.totalorder %s496, %s499
      %p508 = scmp.eq.s32.totalorder %s68, 3
      %p509 = por %p507, %p508
      %p510 = scmp.ne.s32.totalorder %s499, %s500
      %p511 = scmp.eq.s32.totalorder %s68, 0
      %p512 = por %p510, %p511
      %p513 = scmp.ne.s32.totalorder %s499, %s500
      %p514 = scmp.eq.s32.totalorder %s69, 3
      %p515 = por %p513, %p514
      %p517 = scmp.ne.s32.totalorder %s500, %s516
      %p518 = scmp.eq.s32.totalorder %s69, 0
      %p519 = por %p517, %p518
      %s520 = ssub.s32 %s71, %s78
      %p521 = scmp.eq.s32.totalorder %s520, 0
      %s523 = sadd.s32 %s522, 1
      %s524 = scalar_select %p521, %s522, %s523
      %p527 = pneg %p521
      %p528 = scmp.eq.s32.totalorder %s63, 3
      %p529 = por %p527, %p528
      %p530 = scmp.ne.s32.totalorder %s522, %s525
      %p531 = scmp.eq.s32.totalorder %s63, 0
      %p532 = por %p530, %p531
      %p533 = scmp.ne.s32.totalorder %s522, %s525
      %p534 = scmp.eq.s32.totalorder %s68, 3
      %p535 = por %p533, %p534
      %p536 = scmp.ne.s32.totalorder %s525, %s526
      %p537 = scmp.eq.s32.totalorder %s68, 0
      %p538 = por %p536, %p537
      %p539 = scmp.ne.s32.totalorder %s525, %s526
      %p540 = scmp.eq.s32.totalorder %s69, 3
      %p541 = por %p539, %p540
      %p543 = scmp.ne.s32.totalorder %s526, %s542
      %p544 = scmp.eq.s32.totalorder %s69, 0
      %p545 = por %p543, %p544
      %s546 = ssub.s32 %s71, %s78
      %p547 = scmp.eq.s32.totalorder %s546, 0
      %s549 = sadd.s32 %s548, 1
      %s550 = scalar_select %p547, %s548, %s549
      %p553 = pneg %p547
      %p554 = scmp.eq.s32.totalorder %s63, 3
      %p555 = por %p553, %p554
      %p556 = scmp.ne.s32.totalorder %s548, %s551
      %p557 = scmp.eq.s32.totalorder %s63, 0
      %p558 = por %p556, %p557
      %p559 = scmp.ne.s32.totalorder %s548, %s551
      %p560 = scmp.eq.s32.totalorder %s68, 3
      %p561 = por %p559, %p560
      %p562 = scmp.ne.s32.totalorder %s551, %s552
      %p563 = scmp.eq.s32.totalorder %s68, 0
      %p564 = por %p562, %p563
      %p565 = scmp.ne.s32.totalorder %s551, %s552
      %p566 = scmp.eq.s32.totalorder %s69, 3
      %p567 = por %p565, %p566
      %p569 = scmp.ne.s32.totalorder %s552, %s568
      %p570 = scmp.eq.s32.totalorder %s69, 0
      %p571 = por %p569, %p570
      %s572 = ssub.s32 %s70, %s82
      %p573 = scmp.eq.s32.totalorder %s572, 0
      %s575 = sadd.s32 %s574, 1
      %s576 = scalar_select %p573, %s574, %s575
      %p579 = pneg %p573
      %p580 = scmp.eq.s32.totalorder %s63, 3
      %p581 = por %p579, %p580
      %p582 = scmp.ne.s32.totalorder %s574, %s577
      %p583 = scmp.eq.s32.totalorder %s63, 0
      %p584 = por %p582, %p583
      %p585 = scmp.ne.s32.totalorder %s574, %s577
      %p586 = scmp.eq.s32.totalorder %s68, 3
      %p587 = por %p585, %p586
      %p588 = scmp.ne.s32.totalorder %s577, %s578
      %p589 = scmp.eq.s32.totalorder %s68, 0
      %p590 = por %p588, %p589
      %p591 = scmp.ne.s32.totalorder %s577, %s578
      %p592 = scmp.eq.s32.totalorder %s69, 3
      %p593 = por %p591, %p592
      %p595 = scmp.ne.s32.totalorder %s578, %s594
      %p596 = scmp.eq.s32.totalorder %s69, 0
      %p597 = por %p595, %p596
      %s598 = ssub.s32 %s70, %s82
      %p599 = scmp.eq.s32.totalorder %s598, 0
      %s601 = sadd.s32 %s600, 1
      %s602 = scalar_select %p599, %s600, %s601
      %p605 = pneg %p599
      %p606 = scmp.eq.s32.totalorder %s63, 3
      %p607 = por %p605, %p606
      %p608 = scmp.ne.s32.totalorder %s600, %s603
      %p609 = scmp.eq.s32.totalorder %s63, 0
      %p610 = por %p608, %p609
      %p611 = scmp.ne.s32.totalorder %s600, %s603
      %p612 = scmp.eq.s32.totalorder %s68, 3
      %p613 = por %p611, %p612
      %p614 = scmp.ne.s32.totalorder %s603, %s604
      %p615 = scmp.eq.s32.totalorder %s68, 0
      %p616 = por %p614, %p615
      %p617 = scmp.ne.s32.totalorder %s603, %s604
      %p618 = scmp.eq.s32.totalorder %s69, 3
      %p619 = por %p617, %p618
      %p621 = scmp.ne.s32.totalorder %s604, %s620
      %p622 = scmp.eq.s32.totalorder %s69, 0
      %p623 = por %p621, %p622
      %p624 = scmp.le.s32.totalorder 1, %s63
      %p625 = scmp.lt.s32.totalorder %s63, 5
      %p626 = pnand %p624, %p625
      %p627 = pneg %p626
      // Predicated region
      $region9: #{tpu_custom_call.1} parent=5 // pred_check
        _
      $region10: #{tpu_custom_call.1} parent=5 // pred_check_branch
        %629 = sbr.rel (%p626) target = $region12
      $region11: #{tpu_custom_call.1} parent=5 // pred_region
        %s630 = ssub.s32 %s63, 1
        // Predicated region
        $region13: #{tpu_custom_call.1} parent=11 // pred_check
          %p631 = pneg %p148
        $region14: #{tpu_custom_call.1} parent=11 // pred_check_branch
          %633 = sbr.rel (%p631) target = $region16
        $region15: #{tpu_custom_call.1} parent=11 // pred_region
          %s635 = ssub.s32 128, 128
          %636 = vsyncadd [#allocation8], %s635
          %s638 = sshll.u32 [#allocation9], 4
          %s639 = int_to_ptr.vmem [resolvable:$true] %s638
          %641 = dma.hbm_to_vmem [thread:$0]  %s2, 128, %s639, [#allocation8]
        $region16: #{tpu_custom_call.1} parent=11 // pred_fallthru
          _
      $region12: #{tpu_custom_call.1} parent=5 // pred_fallthru
        _
      %p642 = scmp.lt.s32.totalorder %s63, 4
      // Predicated region
      $region17: #{tpu_custom_call.1} parent=5 // pred_check
        %p643 = pneg %p642
      $region18: #{tpu_custom_call.1} parent=5 // pred_check_branch
        %645 = sbr.rel (%p643) target = $region20
      $region19: #{tpu_custom_call.1} parent=5 // pred_region
        // Predicated region
        $region21: #{tpu_custom_call.1} parent=19 // pred_check
          %p646 = pneg %p95
        $region22: #{tpu_custom_call.1} parent=19 // pred_check_branch
          %648 = sbr.rel (%p646) target = $region24
        $region23: #{tpu_custom_call.1} parent=19 // pred_region
          %s649 = sand.u32 %s85, 1
          %s650 = scalar_lea.sflag [#allocation5], %s649
          %s651 = sand.u32 %s85, 1
          %s652 = smul.addr %s651, 8
          %s653 = scalar_lea.vmem [#allocation4], %s652
          %s655 = ssub.s32 128, 128
          %656 = vsyncadd %s650, %s655
          %s657 = smul.addr %s70, 128
          %s658 = scalar_lea.hbm %s0, %s657
          %s660 = sshll.u32 %s653, 4
          %s661 = int_to_ptr.vmem [resolvable:$true] %s660
          %663 = dma.hbm_to_vmem [thread:$0]  %s658, 128, %s661, %s650
        $region24: #{tpu_custom_call.1} parent=19 // pred_fallthru
          _
        // Predicated region
        $region25: #{tpu_custom_call.1} parent=19 // pred_check
          %p664 = pneg %p121
        $region26: #{tpu_custom_call.1} parent=19 // pred_check_branch
          %666 = sbr.rel (%p664) target = $region28
        $region27: #{tpu_custom_call.1} parent=19 // pred_region
          %s667 = sand.u32 %s63, 1
          %s668 = scalar_lea.sflag [#allocation8], %s667
          %s669 = sand.u32 %s111, 1
          %s670 = smul.addr %s669, 64
          %s671 = scalar_lea.vmem [#allocation7], %s670
          %s672 = smul.u32 16, %s70
          %s674 = ssub.s32 1024, 1024
          %675 = vsyncadd %s668, %s674
          %s676 = smul.addr %s672, 64
          %s677 = scalar_lea.hbm %s1, %s676
          %s678 = sshll.u32 %s671, 4
          %s679 = int_to_ptr.vmem [resolvable:$true] %s678
          %684 = dma.hbm_to_vmem [thread:$0]  %s677, 1024, %s679, %s668, 64, 64, 4
        $region28: #{tpu_custom_call.1} parent=19 // pred_fallthru
          _
        // Predicated region
        $region29: #{tpu_custom_call.1} parent=19 // pred_check
          %p685 = pneg %p168
        $region30: #{tpu_custom_call.1} parent=19 // pred_check_branch
          %687 = sbr.rel (%p685) target = $region32
        $region31: #{tpu_custom_call.1} parent=19 // pred_region
          %s688 = sand.u32 %s63, 1
          %s689 = scalar_lea.sflag [#allocation11], %s688
          %s690 = sand.u32 %s158, 1
          %s691 = scalar_lea.vmem [#allocation10], %s690
          %s693 = ssub.s32 16, 16
          %694 = vsyncadd %s689, %s693
          %s695 = smul.addr %s70, 16
          %s696 = scalar_lea.hbm %s3, %s695
          %s698 = sshll.u32 %s691, 4
          %s699 = int_to_ptr.vmem [resolvable:$true] %s698
          %701 = dma.hbm_to_vmem [thread:$0]  %s696, 16, %s699, %s689
        $region32: #{tpu_custom_call.1} parent=19 // pred_fallthru
          _
        // Predicated region
        $region33: #{tpu_custom_call.1} parent=19 // pred_check
          %p702 = pneg %p194
        $region34: #{tpu_custom_call.1} parent=19 // pred_check_branch
          %704 = sbr.rel (%p702) target = $region36
        $region35: #{tpu_custom_call.1} parent=19 // pred_region
          %s705 = sand.u32 %s63, 1
          %s706 = scalar_lea.sflag [#allocation11], %s705
          %s707 = sand.u32 %s184, 1
          %s708 = smul.addr %s707, 16
          %s709 = scalar_lea.vmem [#allocation12], %s708
          %s711 = ssub.s32 256, 256
          %712 = vsyncadd %s706, %s711
          %s713 = smul.addr %s71, 4
          %s714 = smul.addr %s713, 64
          %s715 = scalar_lea.hbm %s4, %s714
          %s716 = sshll.u32 %s709, 4
          %s717 = int_to_ptr.vmem [resolvable:$true] %s716
          %722 = dma.hbm_to_vmem [thread:$0]  %s715, 256, %s717, %s706, 64, 64, 4
        $region36: #{tpu_custom_call.1} parent=19 // pred_fallthru
          _
        // Predicated region
        $region37: #{tpu_custom_call.1} parent=19 // pred_check
          %p723 = pneg %p220
        $region38: #{tpu_custom_call.1} parent=19 // pred_check_branch
          %725 = sbr.rel (%p723) target = $region40
        $region39: #{tpu_custom_call.1} parent=19 // pred_region
          %s726 = sand.u32 %s63, 1
          %s727 = scalar_lea.sflag [#allocation14], %s726
          %s728 = sand.u32 %s210, 1
          %s729 = scalar_lea.vmem [#allocation13], %s728
          %s731 = ssub.s32 16, 16
          %732 = vsyncadd %s727, %s731
          %s733 = smul.addr %s71, 16
          %s734 = scalar_lea.hbm %s5, %s733
          %s736 = sshll.u32 %s729, 4
          %s737 = int_to_ptr.vmem [resolvable:$true] %s736
          %739 = dma.hbm_to_vmem [thread:$0]  %s734, 16, %s737, %s727
        $region40: #{tpu_custom_call.1} parent=19 // pred_fallthru
          _
        // Predicated region
        $region41: #{tpu_custom_call.1} parent=19 // pred_check
          %p740 = pneg %p246
        $region42: #{tpu_custom_call.1} parent=19 // pred_check_branch
          %742 = sbr.rel (%p740) target = $region44
        $region43: #{tpu_custom_call.1} parent=19 // pred_region
          %s743 = sand.u32 %s63, 1
          %s744 = scalar_lea.sflag [#allocation14], %s743
          %s745 = sand.u32 %s236, 1
          %s746 = smul.addr %s745, 16
          %s747 = scalar_lea.vmem [#allocation15], %s746
          %s749 = ssub.s32 256, 256
          %750 = vsyncadd %s744, %s749
          %s751 = smul.addr %s71, 4
          %s752 = smul.addr %s751, 64
          %s753 = scalar_lea.hbm %s6, %s752
          %s754 = sshll.u32 %s747, 4
          %s755 = int_to_ptr.vmem [resolvable:$true] %s754
          %760 = dma.hbm_to_vmem [thread:$0]  %s753, 256, %s755, %s744, 64, 64, 4
        $region44: #{tpu_custom_call.1} parent=19 // pred_fallthru
          _
        // Predicated region
        $region45: #{tpu_custom_call.1} parent=19 // pred_check
          %p761 = pneg %p272
        $region46: #{tpu_custom_call.1} parent=19 // pred_check_branch
          %763 = sbr.rel (%p761) target = $region48
        $region47: #{tpu_custom_call.1} parent=19 // pred_region
          %s764 = sand.u32 %s63, 1
          %s765 = scalar_lea.sflag [#allocation17], %s764
          %s766 = sand.u32 %s262, 1
          %s767 = scalar_lea.vmem [#allocation16], %s766
          %s769 = ssub.s32 16, 16
          %770 = vsyncadd %s765, %s769
          %s771 = smul.addr %s71, 16
          %s772 = scalar_lea.hbm %s7, %s771
          %s774 = sshll.u32 %s767, 4
          %s775 = int_to_ptr.vmem [resolvable:$true] %s774
          %777 = dma.hbm_to_vmem [thread:$0]  %s772, 16, %s775, %s765
        $region48: #{tpu_custom_call.1} parent=19 // pred_fallthru
          _
        // Predicated region
        $region49: #{tpu_custom_call.1} parent=19 // pred_check
          %p778 = pneg %p298
        $region50: #{tpu_custom_call.1} parent=19 // pred_check_branch
          %780 = sbr.rel (%p778) target = $region52
        $region51: #{tpu_custom_call.1} parent=19 // pred_region
          %s781 = sand.u32 %s63, 1
          %s782 = scalar_lea.sflag [#allocation17], %s781
          %s783 = sand.u32 %s288, 1
          %s784 = smul.addr %s783, 16
          %s785 = scalar_lea.vmem [#allocation18], %s784
          %s787 = ssub.s32 256, 256
          %788 = vsyncadd %s782, %s787
          %s789 = smul.addr %s71, 4
          %s790 = smul.addr %s789, 64
          %s791 = scalar_lea.hbm %s8, %s790
          %s792 = sshll.u32 %s785, 4
          %s793 = int_to_ptr.vmem [resolvable:$true] %s792
          %798 = dma.hbm_to_vmem [thread:$0]  %s791, 256, %s793, %s782, 64, 64, 4
        $region52: #{tpu_custom_call.1} parent=19 // pred_fallthru
          _
        // Predicated region
        $region53: #{tpu_custom_call.1} parent=19 // pred_check
          %p799 = pneg %p324
        $region54: #{tpu_custom_call.1} parent=19 // pred_check_branch
          %801 = sbr.rel (%p799) target = $region56
        $region55: #{tpu_custom_call.1} parent=19 // pred_region
          %s802 = sand.u32 %s63, 1
          %s803 = scalar_lea.sflag [#allocation20], %s802
          %s804 = sand.u32 %s314, 1
          %s805 = scalar_lea.vmem [#allocation19], %s804
          %s807 = ssub.s32 16, 16
          %808 = vsyncadd %s803, %s807
          %s809 = smul.addr %s71, 16
          %s810 = scalar_lea.hbm %s9, %s809
          %s812 = sshll.u32 %s805, 4
          %s813 = int_to_ptr.vmem [resolvable:$true] %s812
          %815 = dma.hbm_to_vmem [thread:$0]  %s810, 16, %s813, %s803
        $region56: #{tpu_custom_call.1} parent=19 // pred_fallthru
          _
        // Predicated region
        $region57: #{tpu_custom_call.1} parent=19 // pred_check
          %p816 = pneg %p350
        $region58: #{tpu_custom_call.1} parent=19 // pred_check_branch
          %818 = sbr.rel (%p816) target = $region60
        $region59: #{tpu_custom_call.1} parent=19 // pred_region
          %s819 = sand.u32 %s63, 1
          %s820 = scalar_lea.sflag [#allocation20], %s819
          %s821 = sand.u32 %s340, 1
          %s822 = smul.addr %s821, 16
          %s823 = scalar_lea.vmem [#allocation21], %s822
          %s825 = ssub.s32 256, 256
          %826 = vsyncadd %s820, %s825
          %s827 = smul.addr %s71, 4
          %s828 = smul.addr %s827, 64
          %s829 = scalar_lea.hbm %s10, %s828
          %s830 = sshll.u32 %s823, 4
          %s831 = int_to_ptr.vmem [resolvable:$true] %s830
          %836 = dma.hbm_to_vmem [thread:$0]  %s829, 256, %s831, %s820, 64, 64, 4
        $region60: #{tpu_custom_call.1} parent=19 // pred_fallthru
          _
        // Predicated region
        $region61: #{tpu_custom_call.1} parent=19 // pred_check
          %p837 = pneg %p376
        $region62: #{tpu_custom_call.1} parent=19 // pred_check_branch
          %839 = sbr.rel (%p837) target = $region64
        $region63: #{tpu_custom_call.1} parent=19 // pred_region
          %s840 = sand.u32 %s63, 1
          %s841 = scalar_lea.sflag [#allocation23], %s840
          %s842 = sand.u32 %s366, 1
          %s843 = scalar_lea.vmem [#allocation22], %s842
          %s845 = ssub.s32 16, 16
          %846 = vsyncadd %s841, %s845
          %s847 = smul.addr %s71, 16
          %s848 = scalar_lea.hbm %s11, %s847
          %s850 = sshll.u32 %s843, 4
          %s851 = int_to_ptr.vmem [resolvable:$true] %s850
          %853 = dma.hbm_to_vmem [thread:$0]  %s848, 16, %s851, %s841
        $region64: #{tpu_custom_call.1} parent=19 // pred_fallthru
          _
        // Predicated region
        $region65: #{tpu_custom_call.1} parent=19 // pred_check
          %p854 = pneg %p402
        $region66: #{tpu_custom_call.1} parent=19 // pred_check_branch
          %856 = sbr.rel (%p854) target = $region68
        $region67: #{tpu_custom_call.1} parent=19 // pred_region
          %s857 = sand.u32 %s63, 1
          %s858 = scalar_lea.sflag [#allocation23], %s857
          %s859 = sand.u32 %s392, 1
          %s860 = smul.addr %s859, 16
          %s861 = scalar_lea.vmem [#allocation24], %s860
          %s863 = ssub.s32 256, 256
          %864 = vsyncadd %s858, %s863
          %s865 = smul.addr %s71, 4
          %s866 = smul.addr %s865, 64
          %s867 = scalar_lea.hbm %s12, %s866
          %s868 = sshll.u32 %s861, 4
          %s869 = int_to_ptr.vmem [resolvable:$true] %s868
          %874 = dma.hbm_to_vmem [thread:$0]  %s867, 256, %s869, %s858, 64, 64, 4
        $region68: #{tpu_custom_call.1} parent=19 // pred_fallthru
          _
        // Predicated region
        $region69: #{tpu_custom_call.1} parent=19 // pred_check
          %p875 = pneg %p428
        $region70: #{tpu_custom_call.1} parent=19 // pred_check_branch
          %877 = sbr.rel (%p875) target = $region72
        $region71: #{tpu_custom_call.1} parent=19 // pred_region
          %s878 = sand.u32 %s63, 1
          %s879 = scalar_lea.sflag [#allocation26], %s878
          %s880 = sand.u32 %s418, 1
          %s881 = scalar_lea.vmem [#allocation25], %s880
          %s883 = ssub.s32 16, 16
          %884 = vsyncadd %s879, %s883
          %s885 = smul.addr %s71, 16
          %s886 = scalar_lea.hbm %s13, %s885
          %s888 = sshll.u32 %s881, 4
          %s889 = int_to_ptr.vmem [resolvable:$true] %s888
          %891 = dma.hbm_to_vmem [thread:$0]  %s886, 16, %s889, %s879
        $region72: #{tpu_custom_call.1} parent=19 // pred_fallthru
          _
        // Predicated region
        $region73: #{tpu_custom_call.1} parent=19 // pred_check
          %p892 = pneg %p454
        $region74: #{tpu_custom_call.1} parent=19 // pred_check_branch
          %894 = sbr.rel (%p892) target = $region76
        $region75: #{tpu_custom_call.1} parent=19 // pred_region
          %s895 = sand.u32 %s63, 1
          %s896 = scalar_lea.sflag [#allocation26], %s895
          %s897 = sand.u32 %s444, 1
          %s898 = smul.addr %s897, 8
          %s899 = scalar_lea.vmem [#allocation27], %s898
          %s901 = ssub.s32 128, 128
          %902 = vsyncadd %s896, %s901
          %s903 = smul.addr %s71, 128
          %s904 = scalar_lea.hbm %s14, %s903
          %s906 = sshll.u32 %s899, 4
          %s907 = int_to_ptr.vmem [resolvable:$true] %s906
          %909 = dma.hbm_to_vmem [thread:$0]  %s904, 128, %s907, %s896
        $region76: #{tpu_custom_call.1} parent=19 // pred_fallthru
          _
        // Predicated region
        $region77: #{tpu_custom_call.1} parent=19 // pred_check
          %p910 = pneg %p480
        $region78: #{tpu_custom_call.1} parent=19 // pred_check_branch
          %912 = sbr.rel (%p910) target = $region80
        $region79: #{tpu_custom_call.1} parent=19 // pred_region
          %s913 = sand.u32 %s63, 1
          %s914 = scalar_lea.sflag [#allocation29], %s913
          %s915 = sand.u32 %s470, 1
          %s916 = smul.addr %s915, 16
          %s917 = scalar_lea.vmem [#allocation28], %s916
          %s919 = ssub.s32 256, 256
          %920 = vsyncadd %s914, %s919
          %s921 = smul.addr %s71, 4
          %s922 = smul.addr %s921, 64
          %s923 = scalar_lea.hbm %s15, %s922
          %s924 = sshll.u32 %s917, 4
          %s925 = int_to_ptr.vmem [resolvable:$true] %s924
          %930 = dma.hbm_to_vmem [thread:$0]  %s923, 256, %s925, %s914, 64, 64, 4
        $region80: #{tpu_custom_call.1} parent=19 // pred_fallthru
          _
        // Predicated region
        $region81: #{tpu_custom_call.1} parent=19 // pred_check
          %p931 = pneg %p506
        $region82: #{tpu_custom_call.1} parent=19 // pred_check_branch
          %933 = sbr.rel (%p931) target = $region84
        $region83: #{tpu_custom_call.1} parent=19 // pred_region
          %s934 = sand.u32 %s63, 1
          %s935 = scalar_lea.sflag [#allocation29], %s934
          %s936 = sand.u32 %s496, 1
          %s937 = scalar_lea.vmem [#allocation30], %s936
          %s939 = ssub.s32 16, 16
          %940 = vsyncadd %s935, %s939
          %s941 = smul.addr %s71, 16
          %s942 = scalar_lea.hbm %s16, %s941
          %s944 = sshll.u32 %s937, 4
          %s945 = int_to_ptr.vmem [resolvable:$true] %s944
          %947 = dma.hbm_to_vmem [thread:$0]  %s942, 16, %s945, %s935
        $region84: #{tpu_custom_call.1} parent=19 // pred_fallthru
          _
        // Predicated region
        $region85: #{tpu_custom_call.1} parent=19 // pred_check
          %p948 = pneg %p532
        $region86: #{tpu_custom_call.1} parent=19 // pred_check_branch
          %950 = sbr.rel (%p948) target = $region88
        $region87: #{tpu_custom_call.1} parent=19 // pred_region
          %s951 = sand.u32 %s63, 1
          %s952 = scalar_lea.sflag [#allocation32], %s951
          %s953 = sand.u32 %s522, 1
          %s954 = smul.addr %s953, 32
          %s955 = scalar_lea.vmem [#allocation31], %s954
          %s957 = ssub.s32 512, 512
          %958 = vsyncadd %s952, %s957
          %s959 = smul.addr %s71, 8
          %s960 = smul.addr %s959, 64
          %s961 = scalar_lea.hbm %s17, %s960
          %s962 = sshll.u32 %s955, 4
          %s963 = int_to_ptr.vmem [resolvable:$true] %s962
          %968 = dma.hbm_to_vmem [thread:$0]  %s961, 512, %s963, %s952, 64, 64, 4
        $region88: #{tpu_custom_call.1} parent=19 // pred_fallthru
          _
        // Predicated region
        $region89: #{tpu_custom_call.1} parent=19 // pred_check
          %p969 = pneg %p558
        $region90: #{tpu_custom_call.1} parent=19 // pred_check_branch
          %971 = sbr.rel (%p969) target = $region92
        $region91: #{tpu_custom_call.1} parent=19 // pred_region
          %s972 = sand.u32 %s63, 1
          %s973 = scalar_lea.sflag [#allocation32], %s972
          %s974 = sand.u32 %s548, 1
          %s975 = scalar_lea.vmem [#allocation33], %s974
          %s977 = ssub.s32 16, 16
          %978 = vsyncadd %s973, %s977
          %s979 = smul.addr %s71, 16
          %s980 = scalar_lea.hbm %s18, %s979
          %s982 = sshll.u32 %s975, 4
          %s983 = int_to_ptr.vmem [resolvable:$true] %s982
          %985 = dma.hbm_to_vmem [thread:$0]  %s980, 16, %s983, %s973
        $region92: #{tpu_custom_call.1} parent=19 // pred_fallthru
          _
      $region20: #{tpu_custom_call.1} parent=5 // pred_fallthru
        _
      %p986 = scmp.le.s32.totalorder 1, %s63
      %p987 = scmp.lt.s32.totalorder %s63, 5
      %p988 = pnand %p986, %p987
      %p989 = pneg %p988
      // Predicated region
      $region93: #{tpu_custom_call.1} parent=5 // pred_check
        _
      $region94: #{tpu_custom_call.1} parent=5 // pred_check_branch
        %991 = sbr.rel (%p988) target = $region96
      $region95: #{tpu_custom_call.1} parent=5 // pred_region
        %s992 = ssub.s32 %s63, 1
        %s993 = sand.u32 %s88, 1
        %s994 = scalar_lea.sflag [#allocation5], %s993
        %s995 = sand.u32 %s88, 1
        %s996 = smul.addr %s995, 8
        %s997 = scalar_lea.vmem [#allocation4], %s996
        // Predicated region
        $region97: #{tpu_custom_call.1} parent=95 // pred_check
          %p998 = pneg %p101
        $region98: #{tpu_custom_call.1} parent=95 // pred_check_branch
          %1000 = sbr.rel (%p998) target = $region100
        $region99: #{tpu_custom_call.1} parent=95 // pred_region
          %1001 = dma.done %s994, 128
        $region100: #{tpu_custom_call.1} parent=95 // pred_fallthru
          _
        %s1002 = sand.u32 %s68, 1
        %s1003 = scalar_lea.sflag [#allocation8], %s1002
        %s1004 = sand.u32 %s114, 1
        %s1005 = smul.addr %s1004, 64
        %s1006 = scalar_lea.vmem [#allocation7], %s1005
        // Predicated region
        $region101: #{tpu_custom_call.1} parent=95 // pred_check
          %p1007 = pneg %p127
        $region102: #{tpu_custom_call.1} parent=95 // pred_check_branch
          %1009 = sbr.rel (%p1007) target = $region104
        $region103: #{tpu_custom_call.1} parent=95 // pred_region
          %1010 = dma.done %s1003, 1024
        $region104: #{tpu_custom_call.1} parent=95 // pred_fallthru
          _
        // Predicated region
        $region105: #{tpu_custom_call.1} parent=95 // pred_check
          %p1011 = pneg %p148
        $region106: #{tpu_custom_call.1} parent=95 // pred_check_branch
          %1013 = sbr.rel (%p1011) target = $region108
        $region107: #{tpu_custom_call.1} parent=95 // pred_region
          %1014 = dma.done [#allocation8], 128
        $region108: #{tpu_custom_call.1} parent=95 // pred_fallthru
          _
        %s1015 = sand.u32 %s68, 1
        %s1016 = scalar_lea.sflag [#allocation11], %s1015
        %s1017 = sand.u32 %s161, 1
        %s1018 = scalar_lea.vmem [#allocation10], %s1017
        // Predicated region
        $region109: #{tpu_custom_call.1} parent=95 // pred_check
          %p1019 = pneg %p174
        $region110: #{tpu_custom_call.1} parent=95 // pred_check_branch
          %1021 = sbr.rel (%p1019) target = $region112
        $region111: #{tpu_custom_call.1} parent=95 // pred_region
          %1022 = dma.done %s1016, 16
        $region112: #{tpu_custom_call.1} parent=95 // pred_fallthru
          _
        %s1023 = sand.u32 %s68, 1
        %s1024 = scalar_lea.sflag [#allocation11], %s1023
        %s1025 = sand.u32 %s187, 1
        %s1026 = smul.addr %s1025, 16
        %s1027 = scalar_lea.vmem [#allocation12], %s1026
        // Predicated region
        $region113: #{tpu_custom_call.1} parent=95 // pred_check
          %p1028 = pneg %p200
        $region114: #{tpu_custom_call.1} parent=95 // pred_check_branch
          %1030 = sbr.rel (%p1028) target = $region116
        $region115: #{tpu_custom_call.1} parent=95 // pred_region
          %1031 = dma.done %s1024, 256
        $region116: #{tpu_custom_call.1} parent=95 // pred_fallthru
          _
        %s1032 = sand.u32 %s68, 1
        %s1033 = scalar_lea.sflag [#allocation14], %s1032
        %s1034 = sand.u32 %s213, 1
        %s1035 = scalar_lea.vmem [#allocation13], %s1034
        // Predicated region
        $region117: #{tpu_custom_call.1} parent=95 // pred_check
          %p1036 = pneg %p226
        $region118: #{tpu_custom_call.1} parent=95 // pred_check_branch
          %1038 = sbr.rel (%p1036) target = $region120
        $region119: #{tpu_custom_call.1} parent=95 // pred_region
          %1039 = dma.done %s1033, 16
        $region120: #{tpu_custom_call.1} parent=95 // pred_fallthru
          _
        %s1040 = sand.u32 %s68, 1
        %s1041 = scalar_lea.sflag [#allocation14], %s1040
        %s1042 = sand.u32 %s239, 1
        %s1043 = smul.addr %s1042, 16
        %s1044 = scalar_lea.vmem [#allocation15], %s1043
        // Predicated region
        $region121: #{tpu_custom_call.1} parent=95 // pred_check
          %p1045 = pneg %p252
        $region122: #{tpu_custom_call.1} parent=95 // pred_check_branch
          %1047 = sbr.rel (%p1045) target = $region124
        $region123: #{tpu_custom_call.1} parent=95 // pred_region
          %1048 = dma.done %s1041, 256
        $region124: #{tpu_custom_call.1} parent=95 // pred_fallthru
          _
        %s1049 = sand.u32 %s68, 1
        %s1050 = scalar_lea.sflag [#allocation17], %s1049
        %s1051 = sand.u32 %s265, 1
        %s1052 = scalar_lea.vmem [#allocation16], %s1051
        // Predicated region
        $region125: #{tpu_custom_call.1} parent=95 // pred_check
          %p1053 = pneg %p278
        $region126: #{tpu_custom_call.1} parent=95 // pred_check_branch
          %1055 = sbr.rel (%p1053) target = $region128
        $region127: #{tpu_custom_call.1} parent=95 // pred_region
          %1056 = dma.done %s1050, 16
        $region128: #{tpu_custom_call.1} parent=95 // pred_fallthru
          _
        %s1057 = sand.u32 %s68, 1
        %s1058 = scalar_lea.sflag [#allocation17], %s1057
        %s1059 = sand.u32 %s291, 1
        %s1060 = smul.addr %s1059, 16
        %s1061 = scalar_lea.vmem [#allocation18], %s1060
        // Predicated region
        $region129: #{tpu_custom_call.1} parent=95 // pred_check
          %p1062 = pneg %p304
        $region130: #{tpu_custom_call.1} parent=95 // pred_check_branch
          %1064 = sbr.rel (%p1062) target = $region132
        $region131: #{tpu_custom_call.1} parent=95 // pred_region
          %1065 = dma.done %s1058, 256
        $region132: #{tpu_custom_call.1} parent=95 // pred_fallthru
          _
        %s1066 = sand.u32 %s68, 1
        %s1067 = scalar_lea.sflag [#allocation20], %s1066
        %s1068 = sand.u32 %s317, 1
        %s1069 = scalar_lea.vmem [#allocation19], %s1068
        // Predicated region
        $region133: #{tpu_custom_call.1} parent=95 // pred_check
          %p1070 = pneg %p330
        $region134: #{tpu_custom_call.1} parent=95 // pred_check_branch
          %1072 = sbr.rel (%p1070) target = $region136
        $region135: #{tpu_custom_call.1} parent=95 // pred_region
          %1073 = dma.done %s1067, 16
        $region136: #{tpu_custom_call.1} parent=95 // pred_fallthru
          _
        %s1074 = sand.u32 %s68, 1
        %s1075 = scalar_lea.sflag [#allocation20], %s1074
        %s1076 = sand.u32 %s343, 1
        %s1077 = smul.addr %s1076, 16
        %s1078 = scalar_lea.vmem [#allocation21], %s1077
        // Predicated region
        $region137: #{tpu_custom_call.1} parent=95 // pred_check
          %p1079 = pneg %p356
        $region138: #{tpu_custom_call.1} parent=95 // pred_check_branch
          %1081 = sbr.rel (%p1079) target = $region140
        $region139: #{tpu_custom_call.1} parent=95 // pred_region
          %1082 = dma.done %s1075, 256
        $region140: #{tpu_custom_call.1} parent=95 // pred_fallthru
          _
        %s1083 = sand.u32 %s68, 1
        %s1084 = scalar_lea.sflag [#allocation23], %s1083
        %s1085 = sand.u32 %s369, 1
        %s1086 = scalar_lea.vmem [#allocation22], %s1085
        // Predicated region
        $region141: #{tpu_custom_call.1} parent=95 // pred_check
          %p1087 = pneg %p382
        $region142: #{tpu_custom_call.1} parent=95 // pred_check_branch
          %1089 = sbr.rel (%p1087) target = $region144
        $region143: #{tpu_custom_call.1} parent=95 // pred_region
          %1090 = dma.done %s1084, 16
        $region144: #{tpu_custom_call.1} parent=95 // pred_fallthru
          _
        %s1091 = sand.u32 %s68, 1
        %s1092 = scalar_lea.sflag [#allocation23], %s1091
        %s1093 = sand.u32 %s395, 1
        %s1094 = smul.addr %s1093, 16
        %s1095 = scalar_lea.vmem [#allocation24], %s1094
        // Predicated region
        $region145: #{tpu_custom_call.1} parent=95 // pred_check
          %p1096 = pneg %p408
        $region146: #{tpu_custom_call.1} parent=95 // pred_check_branch
          %1098 = sbr.rel (%p1096) target = $region148
        $region147: #{tpu_custom_call.1} parent=95 // pred_region
          %1099 = dma.done %s1092, 256
        $region148: #{tpu_custom_call.1} parent=95 // pred_fallthru
          _
        %s1100 = sand.u32 %s68, 1
        %s1101 = scalar_lea.sflag [#allocation26], %s1100
        %s1102 = sand.u32 %s421, 1
        %s1103 = scalar_lea.vmem [#allocation25], %s1102
        // Predicated region
        $region149: #{tpu_custom_call.1} parent=95 // pred_check
          %p1104 = pneg %p434
        $region150: #{tpu_custom_call.1} parent=95 // pred_check_branch
          %1106 = sbr.rel (%p1104) target = $region152
        $region151: #{tpu_custom_call.1} parent=95 // pred_region
          %1107 = dma.done %s1101, 16
        $region152: #{tpu_custom_call.1} parent=95 // pred_fallthru
          _
        %s1108 = sand.u32 %s68, 1
        %s1109 = scalar_lea.sflag [#allocation26], %s1108
        %s1110 = sand.u32 %s447, 1
        %s1111 = smul.addr %s1110, 8
        %s1112 = scalar_lea.vmem [#allocation27], %s1111
        // Predicated region
        $region153: #{tpu_custom_call.1} parent=95 // pred_check
          %p1113 = pneg %p460
        $region154: #{tpu_custom_call.1} parent=95 // pred_check_branch
          %1115 = sbr.rel (%p1113) target = $region156
        $region155: #{tpu_custom_call.1} parent=95 // pred_region
          %1116 = dma.done %s1109, 128
        $region156: #{tpu_custom_call.1} parent=95 // pred_fallthru
          _
        %s1117 = sand.u32 %s68, 1
        %s1118 = scalar_lea.sflag [#allocation29], %s1117
        %s1119 = sand.u32 %s473, 1
        %s1120 = smul.addr %s1119, 16
        %s1121 = scalar_lea.vmem [#allocation28], %s1120
        // Predicated region
        $region157: #{tpu_custom_call.1} parent=95 // pred_check
          %p1122 = pneg %p486
        $region158: #{tpu_custom_call.1} parent=95 // pred_check_branch
          %1124 = sbr.rel (%p1122) target = $region160
        $region159: #{tpu_custom_call.1} parent=95 // pred_region
          %1125 = dma.done %s1118, 256
        $region160: #{tpu_custom_call.1} parent=95 // pred_fallthru
          _
        %s1126 = sand.u32 %s68, 1
        %s1127 = scalar_lea.sflag [#allocation29], %s1126
        %s1128 = sand.u32 %s499, 1
        %s1129 = scalar_lea.vmem [#allocation30], %s1128
        // Predicated region
        $region161: #{tpu_custom_call.1} parent=95 // pred_check
          %p1130 = pneg %p512
        $region162: #{tpu_custom_call.1} parent=95 // pred_check_branch
          %1132 = sbr.rel (%p1130) target = $region164
        $region163: #{tpu_custom_call.1} parent=95 // pred_region
          %1133 = dma.done %s1127, 16
        $region164: #{tpu_custom_call.1} parent=95 // pred_fallthru
          _
        %s1134 = sand.u32 %s68, 1
        %s1135 = scalar_lea.sflag [#allocation32], %s1134
        %s1136 = sand.u32 %s525, 1
        %s1137 = smul.addr %s1136, 32
        %s1138 = scalar_lea.vmem [#allocation31], %s1137
        // Predicated region
        $region165: #{tpu_custom_call.1} parent=95 // pred_check
          %p1139 = pneg %p538
        $region166: #{tpu_custom_call.1} parent=95 // pred_check_branch
          %1141 = sbr.rel (%p1139) target = $region168
        $region167: #{tpu_custom_call.1} parent=95 // pred_region
          %1142 = dma.done %s1135, 512
        $region168: #{tpu_custom_call.1} parent=95 // pred_fallthru
          _
        %s1143 = sand.u32 %s68, 1
        %s1144 = scalar_lea.sflag [#allocation32], %s1143
        %s1145 = sand.u32 %s551, 1
        %s1146 = scalar_lea.vmem [#allocation33], %s1145
        // Predicated region
        $region169: #{tpu_custom_call.1} parent=95 // pred_check
          %p1147 = pneg %p564
        $region170: #{tpu_custom_call.1} parent=95 // pred_check_branch
          %1149 = sbr.rel (%p1147) target = $region172
        $region171: #{tpu_custom_call.1} parent=95 // pred_region
          %1150 = dma.done %s1144, 16
        $region172: #{tpu_custom_call.1} parent=95 // pred_fallthru
          _
        %s1151 = sand.u32 %s88, 1
        %s1152 = scalar_lea.sflag [#allocation5], %s1151
        %s1153 = sand.u32 %s88, 1
        %s1154 = smul.addr %s1153, 8
        %s1155 = scalar_lea.vmem [#allocation4], %s1154
        %p1156 = pneg %p101
        %p1157 = pneg %p98
        %s1158 = sand.u32 %s68, 1
        %s1159 = scalar_lea.sflag [#allocation8], %s1158
        %s1160 = sand.u32 %s114, 1
        %s1161 = smul.addr %s1160, 64
        %s1162 = scalar_lea.vmem [#allocation7], %s1161
        %p1163 = pneg %p127
        %p1164 = pneg %p124
        %p1165 = pneg %p148
        %p1166 = pneg %p145
        %s1167 = sand.u32 %s68, 1
        %s1168 = scalar_lea.sflag [#allocation11], %s1167
        %s1169 = sand.u32 %s161, 1
        %s1170 = scalar_lea.vmem [#allocation10], %s1169
        %p1171 = pneg %p174
        %p1172 = pneg %p171
        %s1173 = sand.u32 %s68, 1
        %s1174 = scalar_lea.sflag [#allocation11], %s1173
        %s1175 = sand.u32 %s187, 1
        %s1176 = smul.addr %s1175, 16
        %s1177 = scalar_lea.vmem [#allocation12], %s1176
        %p1178 = pneg %p200
        %p1179 = pneg %p197
        %s1180 = sand.u32 %s68, 1
        %s1181 = scalar_lea.sflag [#allocation14], %s1180
        %s1182 = sand.u32 %s213, 1
        %s1183 = scalar_lea.vmem [#allocation13], %s1182
        %p1184 = pneg %p226
        %p1185 = pneg %p223
        %s1186 = sand.u32 %s68, 1
        %s1187 = scalar_lea.sflag [#allocation14], %s1186
        %s1188 = sand.u32 %s239, 1
        %s1189 = smul.addr %s1188, 16
        %s1190 = scalar_lea.vmem [#allocation15], %s1189
        %p1191 = pneg %p252
        %p1192 = pneg %p249
        %s1193 = sand.u32 %s68, 1
        %s1194 = scalar_lea.sflag [#allocation17], %s1193
        %s1195 = sand.u32 %s265, 1
        %s1196 = scalar_lea.vmem [#allocation16], %s1195
        %p1197 = pneg %p278
        %p1198 = pneg %p275
        %s1199 = sand.u32 %s68, 1
        %s1200 = scalar_lea.sflag [#allocation17], %s1199
        %s1201 = sand.u32 %s291, 1
        %s1202 = smul.addr %s1201, 16
        %s1203 = scalar_lea.vmem [#allocation18], %s1202
        %p1204 = pneg %p304
        %p1205 = pneg %p301
        %s1206 = sand.u32 %s68, 1
        %s1207 = scalar_lea.sflag [#allocation20], %s1206
        %s1208 = sand.u32 %s317, 1
        %s1209 = scalar_lea.vmem [#allocation19], %s1208
        %p1210 = pneg %p330
        %p1211 = pneg %p327
        %s1212 = sand.u32 %s68, 1
        %s1213 = scalar_lea.sflag [#allocation20], %s1212
        %s1214 = sand.u32 %s343, 1
        %s1215 = smul.addr %s1214, 16
        %s1216 = scalar_lea.vmem [#allocation21], %s1215
        %p1217 = pneg %p356
        %p1218 = pneg %p353
        %s1219 = sand.u32 %s68, 1
        %s1220 = scalar_lea.sflag [#allocation23], %s1219
        %s1221 = sand.u32 %s369, 1
        %s1222 = scalar_lea.vmem [#allocation22], %s1221
        %p1223 = pneg %p382
        %p1224 = pneg %p379
        %s1225 = sand.u32 %s68, 1
        %s1226 = scalar_lea.sflag [#allocation23], %s1225
        %s1227 = sand.u32 %s395, 1
        %s1228 = smul.addr %s1227, 16
        %s1229 = scalar_lea.vmem [#allocation24], %s1228
        %p1230 = pneg %p408
        %p1231 = pneg %p405
        %s1232 = sand.u32 %s68, 1
        %s1233 = scalar_lea.sflag [#allocation26], %s1232
        %s1234 = sand.u32 %s421, 1
        %s1235 = scalar_lea.vmem [#allocation25], %s1234
        %p1236 = pneg %p434
        %p1237 = pneg %p431
        %s1238 = sand.u32 %s68, 1
        %s1239 = scalar_lea.sflag [#allocation26], %s1238
        %s1240 = sand.u32 %s447, 1
        %s1241 = smul.addr %s1240, 8
        %s1242 = scalar_lea.vmem [#allocation27], %s1241
        %p1243 = pneg %p460
        %p1244 = pneg %p457
        %s1245 = sand.u32 %s68, 1
        %s1246 = scalar_lea.sflag [#allocation29], %s1245
        %s1247 = sand.u32 %s473, 1
        %s1248 = smul.addr %s1247, 16
        %s1249 = scalar_lea.vmem [#allocation28], %s1248
        %p1250 = pneg %p486
        %p1251 = pneg %p483
        %s1252 = sand.u32 %s68, 1
        %s1253 = scalar_lea.sflag [#allocation29], %s1252
        %s1254 = sand.u32 %s499, 1
        %s1255 = scalar_lea.vmem [#allocation30], %s1254
        %p1256 = pneg %p512
        %p1257 = pneg %p509
        %s1258 = sand.u32 %s68, 1
        %s1259 = scalar_lea.sflag [#allocation32], %s1258
        %s1260 = sand.u32 %s525, 1
        %s1261 = smul.addr %s1260, 32
        %s1262 = scalar_lea.vmem [#allocation31], %s1261
        %p1263 = pneg %p538
        %p1264 = pneg %p535
        %s1265 = sand.u32 %s68, 1
        %s1266 = scalar_lea.sflag [#allocation32], %s1265
        %s1267 = sand.u32 %s551, 1
        %s1268 = scalar_lea.vmem [#allocation33], %s1267
        %p1269 = pneg %p564
        %p1270 = pneg %p561
        %p1271 = pneg %p590
        %p1272 = pneg %p587
        %s1273 = sand.u32 %s577, 1
        %s1274 = scalar_lea.sflag [#allocation6], %s1273
        %s1275 = sand.u32 %s577, 1
        %s1276 = smul.addr %s1275, 8
        %s1277 = scalar_lea.vmem [#allocation34], %s1276
        %p1278 = pneg %p616
        %p1279 = pneg %p613
        %s1280 = sand.u32 %s603, 1
        %s1281 = scalar_lea.sflag [#allocation36], %s1280
        %s1282 = sand.u32 %s603, 1
        %s1283 = smul.addr %s1282, 32
        %s1284 = scalar_lea.vmem [#allocation35], %s1283
        %s1285 = smul.u32 16, %s72
        %p1287 = scmp.eq.s32.totalorder %s73, 1
        %p1288 = scmp.eq.s32.totalorder %s73, 0
        // Predicated region
        $region173: #{tpu_custom_call.1} parent=95 // pred_check
          %p1289 = pneg %p1288
        $region174: #{tpu_custom_call.1} parent=95 // pred_check_branch
          %1291 = sbr.rel (%p1289) target = $region176
        $region175: #{tpu_custom_call.1} parent=95 // pred_region
          %v1292 = vld [vmem:[%s997] sm:$0xff]
          %vm1293 = vcmask 261120
          %1294 = vst.msk [vmem:[#allocation2] sm:$0xff] %vm1293, %v1292
        $region176: #{tpu_custom_call.1} parent=95 // pred_fallthru
          _
        %v1295 = vld [vmem:[#allocation2] sm:$0xff]
        %v1296 = vld [vmem:[%s1006] sm:$0xf]
        %v1297 = vld [vmem:[%s1006 + $0x4] sm:$0xf]
        %v1298 = vld [vmem:[%s1006 + $0x8] sm:$0xf]
        %v1299 = vld [vmem:[%s1006 + $0xc] sm:$0xf]
        %v1300 = vld [vmem:[%s1006 + $0x10] sm:$0xf]
        %v1301 = vld [vmem:[%s1006 + $0x14] sm:$0xf]
        %v1302 = vld [vmem:[%s1006 + $0x18] sm:$0xf]
        %v1303 = vld [vmem:[%s1006 + $0x1c] sm:$0xf]
        %v1304 = vld [vmem:[%s1006 + $0x20] sm:$0xf]
        %v1305 = vld [vmem:[%s1006 + $0x24] sm:$0xf]
        %v1306 = vld [vmem:[%s1006 + $0x28] sm:$0xf]
        %v1307 = vld [vmem:[%s1006 + $0x2c] sm:$0xf]
        %v1308 = vld [vmem:[%s1006 + $0x30] sm:$0xf]
        %v1309 = vld [vmem:[%s1006 + $0x34] sm:$0xf]
        %v1310 = vld [vmem:[%s1006 + $0x38] sm:$0xf]
        %v1311 = vld [vmem:[%s1006 + $0x3c] sm:$0xf]
        %v1312 = vld [vmem:[%s1112] sm:$0x3f]
        %v1313 = vpack.c.bf16 %v1295, %v1295
        %v1314 = vld [vmem:[%s1027] sm:$0xf]
        %v1315 = vld [vmem:[%s1027 + $0x4] sm:$0xf]
        %v1316 = vld [vmem:[%s1027 + $0x8] sm:$0xf]
        %v1317 = vld [vmem:[%s1027 + $0xc] sm:$0xf]
        %v1318 = vld [vmem:[%s1035] sm:$0x1]
        %v1320 = vlaneseq
        %v1321 = vshrl.u32 %v1320, 7
        %v1322 = vsub.s32 0, %v1321
        %v1323 = vrot.slane %v1318, %v1322
        %v1329 = vunpack.c.l.b16 %v1314
        %v1330 = vunpack.c.l.b16 %v1315
        %v1331 = vunpack.c.l.b16 %v1316
        %v1332 = vunpack.c.l.b16 %v1317
        %v1333 = vpack.c.b16 %v1330, %v1329
        %v1334 = vpack.c.b16 %v1332, %v1331
        %vm1337 = vcmask 261120
        %v1339 = vsel %vm1337, %v1313, 0
        %1341 = vmatprep.subr.bf16.mxu0 0
        %1342 = vmatpush1.bf16.msra.mxu0 %v1333
        %1343 = vmatprep.subr.bf16.mxu0 0
        %1344 = vmatpush1.bf16.msra.mxu0 %v1334
        %1345 = vmatprep.subr.bf16.mxu0 0
        %1346 = vmatpush1.bf16.msra.mxu0 0
        %1347 = vmatprep.subr.bf16.mxu0 0
        %1348 = vmatpush1.bf16.msra.mxu0 0
        %1349 = vmatprep.subr.bf16.mxu0 0
        %1350 = vmatpush1.bf16.msra.mxu0 0
        %1351 = vmatprep.subr.bf16.mxu0 0
        %1352 = vmatpush1.bf16.msra.mxu0 0
        %1353 = vmatprep.subr.bf16.mxu0 0
        %1354 = vmatpush1.bf16.msra.mxu0 0
        %1355 = vmatprep.subr.bf16.mxu0 0
        %1356 = vmatpush1.bf16.msra.mxu0 0
        %1357 = vmatprep.subr.bf16.mxu0 0
        %1358 = vmatpush1.bf16.msra.mxu0 0
        %1359 = vmatprep.subr.bf16.mxu0 0
        %1360 = vmatpush1.bf16.msra.mxu0 0
        %1361 = vmatprep.subr.bf16.mxu0 0
        %1362 = vmatpush1.bf16.msra.mxu0 0
        %1363 = vmatprep.subr.bf16.mxu0 0
        %1364 = vmatpush1.bf16.msra.mxu0 0
        %1365 = vmatprep.subr.bf16.mxu0 0
        %1366 = vmatpush1.bf16.msra.mxu0 0
        %1367 = vmatprep.subr.bf16.mxu0 0
        %1368 = vmatpush1.bf16.msra.mxu0 0
        %1369 = vmatprep.subr.bf16.mxu0 0
        %1370 = vmatpush1.bf16.msra.mxu0 0
        %1371 = vmatprep.subr.bf16.mxu0 0
        %1372 = vmatpush1.bf16.msra.mxu0 0
        %1373 = vmatprep.mubr.bf16.mxu0 0
        %1374 = vmatmul.mubr.bf16.gmra.mrb[0].mxu0 %v1339
        %v1375 = vpop.f32.mrb[0].mxu0
        %v1376 = vadd.f32 %v1323, %v1375
        %v1377 = vpop.f32.mrb[0].mxu0
        %v1378 = vpop.f32.mrb[0].mxu0
        %v1379 = vpop.f32.mrb[0].mxu0
        %1380 = vdwg.mxu0
        %v1381 = vld [vmem:[#allocation9] sm:$0xff]
        %v1382 = vmul.f32 %v1376, 0.35355338
        %v1383 = vpack.c.bf16 %v1382, %v1382
        %v1384 = vpack.c.bf16 %v1376, %v1376
        %1386 = vrot.lane.b32.xlu0 %v1384, 96
        %v1387 = vpop.permute.xlu0 %1386
        %vm1388 = vcmask 64512
        %v1390 = vsel %vm1388, %v1383, 0
        %v1393 = vsel %vm1388, %v1387, 0
        %1395 = vmatprep.subr.bf16.mxu0 0
        %1396 = vmatpush1.bf16.xpose.msra.mxu0 %v1393
        %1397 = vmatprep.subr.bf16.mxu0 0
        %1398 = vmatpush1.bf16.xpose.msra.mxu0 0
        %1399 = vmatprep.subr.bf16.mxu0 0
        %1400 = vmatpush1.bf16.xpose.msra.mxu0 0
        %1401 = vmatprep.subr.bf16.mxu0 0
        %1402 = vmatpush1.bf16.xpose.msra.mxu0 0
        %1403 = vmatprep.subr.bf16.mxu0 0
        %1404 = vmatpush1.bf16.xpose.msra.mxu0 0
        %1405 = vmatprep.subr.bf16.mxu0 0
        %1406 = vmatpush1.bf16.xpose.msra.mxu0 0
        %1407 = vmatprep.subr.bf16.mxu0 0
        %1408 = vmatpush1.bf16.xpose.msra.mxu0 0
        %1409 = vmatprep.subr.bf16.mxu0 0
        %1410 = vmatpush1.bf16.xpose.msra.mxu0 0
        %1411 = vmatprep.subr.bf16.mxu0 0
        %1412 = vmatpush1.bf16.xpose.msra.mxu0 0
        %1413 = vmatprep.subr.bf16.mxu0 0
        %1414 = vmatpush1.bf16.xpose.msra.mxu0 0
        %1415 = vmatprep.subr.bf16.mxu0 0
        %1416 = vmatpush1.bf16.xpose.msra.mxu0 0
        %1417 = vmatprep.subr.bf16.mxu0 0
        %1418 = vmatpush1.bf16.xpose.msra.mxu0 0
        %1419 = vmatprep.subr.bf16.mxu0 0
        %1420 = vmatpush1.bf16.xpose.msra.mxu0 0
        %1421 = vmatprep.subr.bf16.mxu0 0
        %1422 = vmatpush1.bf16.xpose.msra.mxu0 0
        %1423 = vmatprep.subr.bf16.mxu0 0
        %1424 = vmatpush1.bf16.xpose.msra.mxu0 0
        %1425 = vmatprep.subr.bf16.mxu0 0
        %1426 = vmatpush1.bf16.xpose.msra.mxu0 0
        %1427 = vmatprep.mubr.bf16.mxu0 0
        %1428 = vmatmul.mubr.bf16.gmra.mrb[0].mxu0 %v1390
        %v1429 = vpop.f32.mrb[0].mxu0
        %v1430 = vadd.f32 %v1381, %v1429
        %v1431 = vpop.f32.mrb[0].mxu0
        %v1432 = vpop.f32.mrb[0].mxu0
        %v1433 = vpop.f32.mrb[0].mxu0
        %1434 = vdwg.mxu0
        %v1435 = vsel %vm1388, %v1430, -inf
        %1436 = vmax.xlane.f32.xlu0 %v1435
        %v1437 = vpop.xlane.xlu0 %1436
        %v1438 = vsub.f32 %v1430, %v1437
        %v1439 = vmul.f32 %v1438, 1.442695
        %v1440 = vpow.pop %v1439
        %v1441 = vsel %vm1388, %v1440, 0.0
        %1442 = vadd.xlane.f32.xlu0 %v1441
        %v1443 = vpop.xlane.xlu0 %1442
        %v1444 = vrcp.pop %v1443
        %v1445 = vpack.c.bf16 %v1440, %v1440
        %1446 = vrot.lane.b32.xlu0 %v1384, 64
        %v1447 = vpop.permute.xlu0 %1446
        %v1449 = vsel %vm1388, %v1445, 0
        %vm1451 = vcmask 1043456
        %v1453 = vsel %vm1451, %v1447, 0
        %1455 = vmatprep.subr.bf16.mxu0 0
        %1456 = vmatpush1.bf16.msra.mxu0 %v1453
        %1457 = vmatprep.subr.bf16.mxu0 0
        %1458 = vmatpush1.bf16.msra.mxu0 0
        %1459 = vmatprep.subr.bf16.mxu0 0
        %1460 = vmatpush1.bf16.msra.mxu0 0
        %1461 = vmatprep.subr.bf16.mxu0 0
        %1462 = vmatpush1.bf16.msra.mxu0 0
        %1463 = vmatprep.subr.bf16.mxu0 0
        %1464 = vmatpush1.bf16.msra.mxu0 0
        %1465 = vmatprep.subr.bf16.mxu0 0
        %1466 = vmatpush1.bf16.msra.mxu0 0
        %1467 = vmatprep.subr.bf16.mxu0 0
        %1468 = vmatpush1.bf16.msra.mxu0 0
        %1469 = vmatprep.subr.bf16.mxu0 0
        %1470 = vmatpush1.bf16.msra.mxu0 0
        %1471 = vmatprep.subr.bf16.mxu0 0
        %1472 = vmatpush1.bf16.msra.mxu0 0
        %1473 = vmatprep.subr.bf16.mxu0 0
        %1474 = vmatpush1.bf16.msra.mxu0 0
        %1475 = vmatprep.subr.bf16.mxu0 0
        %1476 = vmatpush1.bf16.msra.mxu0 0
        %1477 = vmatprep.subr.bf16.mxu0 0
        %1478 = vmatpush1.bf16.msra.mxu0 0
        %1479 = vmatprep.subr.bf16.mxu0 0
        %1480 = vmatpush1.bf16.msra.mxu0 0
        %1481 = vmatprep.subr.bf16.mxu0 0
        %1482 = vmatpush1.bf16.msra.mxu0 0
        %1483 = vmatprep.subr.bf16.mxu0 0
        %1484 = vmatpush1.bf16.msra.mxu0 0
        %1485 = vmatprep.subr.bf16.mxu0 0
        %1486 = vmatpush1.bf16.msra.mxu0 0
        %1487 = vmatprep.mubr.bf16.mxu0 0
        %1488 = vmatmul.mubr.bf16.gmra.mrb[0].mxu0 %v1449
        %v1489 = vpop.f32.mrb[0].mxu0
        %v1490 = vadd.f32 0.0, %v1489
        %v1491 = vpop.f32.mrb[0].mxu0
        %v1492 = vpop.f32.mrb[0].mxu0
        %v1493 = vpop.f32.mrb[0].mxu0
        %1494 = vdwg.mxu0
        %v1495 = vmul.f32 %v1490, %v1444
        %v1496 = vpack.c.bf16 %v1495, %v1495
        %vm1497 = vcmask 60416
        %1498 = vst.msk [vmem:[#allocation3] sm:$0xf] %vm1497, %v1496
        %1500 = vrot.lane.b32.xlu0 %v1383, 120
        %v1501 = vpop.permute.xlu0 %1500
        %1502 = vrot.lane.b32.xlu0 %v1384, 88
        %v1503 = vpop.permute.xlu0 %1502
        %v1505 = vsel %vm1388, %v1501, 0
        %v1508 = vsel %vm1388, %v1503, 0
        %1510 = vmatprep.subr.bf16.mxu0 0
        %1511 = vmatpush1.bf16.xpose.msra.mxu0 %v1508
        %1512 = vmatprep.subr.bf16.mxu0 0
        %1513 = vmatpush1.bf16.xpose.msra.mxu0 0
        %1514 = vmatprep.subr.bf16.mxu0 0
        %1515 = vmatpush1.bf16.xpose.msra.mxu0 0
        %1516 = vmatprep.subr.bf16.mxu0 0
        %1517 = vmatpush1.bf16.xpose.msra.mxu0 0
        %1518 = vmatprep.subr.bf16.mxu0 0
        %1519 = vmatpush1.bf16.xpose.msra.mxu0 0
        %1520 = vmatprep.subr.bf16.mxu0 0
        %1521 = vmatpush1.bf16.xpose.msra.mxu0 0
        %1522 = vmatprep.subr.bf16.mxu0 0
        %1523 = vmatpush1.bf16.xpose.msra.mxu0 0
        %1524 = vmatprep.subr.bf16.mxu0 0
        %1525 = vmatpush1.bf16.xpose.msra.mxu0 0
        %1526 = vmatprep.subr.bf16.mxu0 0
        %1527 = vmatpush1.bf16.xpose.msra.mxu0 0
        %1528 = vmatprep.subr.bf16.mxu0 0
        %1529 = vmatpush1.bf16.xpose.msra.mxu0 0
        %1530 = vmatprep.subr.bf16.mxu0 0
        %1531 = vmatpush1.bf16.xpose.msra.mxu0 0
        %1532 = vmatprep.subr.bf16.mxu0 0
        %1533 = vmatpush1.bf16.xpose.msra.mxu0 0
        %1534 = vmatprep.subr.bf16.mxu0 0
        %1535 = vmatpush1.bf16.xpose.msra.mxu0 0
        %1536 = vmatprep.subr.bf16.mxu0 0
        %1537 = vmatpush1.bf16.xpose.msra.mxu0 0
        %1538 = vmatprep.subr.bf16.mxu0 0
        %1539 = vmatpush1.bf16.xpose.msra.mxu0 0
        %1540 = vmatprep.subr.bf16.mxu0 0
        %1541 = vmatpush1.bf16.xpose.msra.mxu0 0
        %1542 = vmatprep.mubr.bf16.mxu0 0
        %1543 = vmatmul.mubr.bf16.gmra.mrb[0].mxu0 %v1505
        %v1544 = vpop.f32.mrb[0].mxu0
        %v1545 = vadd.f32 %v1381, %v1544
        %v1546 = vpop.f32.mrb[0].mxu0
        %v1547 = vpop.f32.mrb[0].mxu0
        %v1548 = vpop.f32.mrb[0].mxu0
        %1549 = vdwg.mxu0
        %v1550 = vsel %vm1388, %v1545, -inf
        %1551 = vmax.xlane.f32.xlu0 %v1550
        %v1552 = vpop.xlane.xlu0 %1551
        %v1553 = vsub.f32 %v1545, %v1552
        %v1554 = vmul.f32 %v1553, 1.442695
        %v1555 = vpow.pop %v1554
        %v1556 = vsel %vm1388, %v1555, 0.0
        %1557 = vadd.xlane.f32.xlu0 %v1556
        %v1558 = vpop.xlane.xlu0 %1557
        %v1559 = vrcp.pop %v1558
        %v1560 = vpack.c.bf16 %v1555, %v1555
        %1561 = vrot.lane.b32.xlu0 %v1384, 56
        %v1562 = vpop.permute.xlu0 %1561
        %v1564 = vsel %vm1388, %v1560, 0
        %v1567 = vsel %vm1451, %v1562, 0
        %1569 = vmatprep.subr.bf16.mxu0 0
        %1570 = vmatpush1.bf16.msra.mxu0 %v1567
        %1571 = vmatprep.subr.bf16.mxu0 0
        %1572 = vmatpush1.bf16.msra.mxu0 0
        %1573 = vmatprep.subr.bf16.mxu0 0
        %1574 = vmatpush1.bf16.msra.mxu0 0
        %1575 = vmatprep.subr.bf16.mxu0 0
        %1576 = vmatpush1.bf16.msra.mxu0 0
        %1577 = vmatprep.subr.bf16.mxu0 0
        %1578 = vmatpush1.bf16.msra.mxu0 0
        %1579 = vmatprep.subr.bf16.mxu0 0
        %1580 = vmatpush1.bf16.msra.mxu0 0
        %1581 = vmatprep.subr.bf16.mxu0 0
        %1582 = vmatpush1.bf16.msra.mxu0 0
        %1583 = vmatprep.subr.bf16.mxu0 0
        %1584 = vmatpush1.bf16.msra.mxu0 0
        %1585 = vmatprep.subr.bf16.mxu0 0
        %1586 = vmatpush1.bf16.msra.mxu0 0
        %1587 = vmatprep.subr.bf16.mxu0 0
        %1588 = vmatpush1.bf16.msra.mxu0 0
        %1589 = vmatprep.subr.bf16.mxu0 0
        %1590 = vmatpush1.bf16.msra.mxu0 0
        %1591 = vmatprep.subr.bf16.mxu0 0
        %1592 = vmatpush1.bf16.msra.mxu0 0
        %1593 = vmatprep.subr.bf16.mxu0 0
        %1594 = vmatpush1.bf16.msra.mxu0 0
        %1595 = vmatprep.subr.bf16.mxu0 0
        %1596 = vmatpush1.bf16.msra.mxu0 0
        %1597 = vmatprep.subr.bf16.mxu0 0
        %1598 = vmatpush1.bf16.msra.mxu0 0
        %1599 = vmatprep.subr.bf16.mxu0 0
        %1600 = vmatpush1.bf16.msra.mxu0 0
        %1601 = vmatprep.mubr.bf16.mxu0 0
        %1602 = vmatmul.mubr.bf16.gmra.mrb[0].mxu0 %v1564
        %v1603 = vpop.f32.mrb[0].mxu0
        %v1604 = vadd.f32 0.0, %v1603
        %v1605 = vpop.f32.mrb[0].mxu0
        %v1606 = vpop.f32.mrb[0].mxu0
        %v1607 = vpop.f32.mrb[0].mxu0
        %1608 = vdwg.mxu0
        %v1609 = vmul.f32 %v1604, %v1559
        %v1610 = vpack.c.bf16 %v1609, %v1609
        %v1612 = vunpack.c.l.b16 %v1610
        %v1613 = vpack.c.b16 %v1612, %v1612
        %1614 = vrot.lane.b32.xlu0 %v1613, 8
        %v1615 = vpop.permute.xlu0 %1614
        %vm1617 = vcmask 126016
        %1618 = vst.msk [vmem:[#allocation3] sm:$0xf] %vm1617, %v1615
        %1619 = vrot.lane.b32.xlu0 %v1383, 112
        %v1620 = vpop.permute.xlu0 %1619
        %1621 = vrot.lane.b32.xlu0 %v1384, 80
        %v1622 = vpop.permute.xlu0 %1621
        %v1624 = vsel %vm1388, %v1620, 0
        %v1627 = vsel %vm1388, %v1622, 0
        %1629 = vmatprep.subr.bf16.mxu0 0
        %1630 = vmatpush1.bf16.xpose.msra.mxu0 %v1627
        %1631 = vmatprep.subr.bf16.mxu0 0
        %1632 = vmatpush1.bf16.xpose.msra.mxu0 0
        %1633 = vmatprep.subr.bf16.mxu0 0
        %1634 = vmatpush1.bf16.xpose.msra.mxu0 0
        %1635 = vmatprep.subr.bf16.mxu0 0
        %1636 = vmatpush1.bf16.xpose.msra.mxu0 0
        %1637 = vmatprep.subr.bf16.mxu0 0
        %1638 = vmatpush1.bf16.xpose.msra.mxu0 0
        %1639 = vmatprep.subr.bf16.mxu0 0
        %1640 = vmatpush1.bf16.xpose.msra.mxu0 0
        %1641 = vmatprep.subr.bf16.mxu0 0
        %1642 = vmatpush1.bf16.xpose.msra.mxu0 0
        %1643 = vmatprep.subr.bf16.mxu0 0
        %1644 = vmatpush1.bf16.xpose.msra.mxu0 0
        %1645 = vmatprep.subr.bf16.mxu0 0
        %1646 = vmatpush1.bf16.xpose.msra.mxu0 0
        %1647 = vmatprep.subr.bf16.mxu0 0
        %1648 = vmatpush1.bf16.xpose.msra.mxu0 0
        %1649 = vmatprep.subr.bf16.mxu0 0
        %1650 = vmatpush1.bf16.xpose.msra.mxu0 0
        %1651 = vmatprep.subr.bf16.mxu0 0
        %1652 = vmatpush1.bf16.xpose.msra.mxu0 0
        %1653 = vmatprep.subr.bf16.mxu0 0
        %1654 = vmatpush1.bf16.xpose.msra.mxu0 0
        %1655 = vmatprep.subr.bf16.mxu0 0
        %1656 = vmatpush1.bf16.xpose.msra.mxu0 0
        %1657 = vmatprep.subr.bf16.mxu0 0
        %1658 = vmatpush1.bf16.xpose.msra.mxu0 0
        %1659 = vmatprep.subr.bf16.mxu0 0
        %1660 = vmatpush1.bf16.xpose.msra.mxu0 0
        %1661 = vmatprep.mubr.bf16.mxu0 0
        %1662 = vmatmul.mubr.bf16.gmra.mrb[0].mxu0 %v1624
        %v1663 = vpop.f32.mrb[0].mxu0
        %v1664 = vadd.f32 %v1381, %v1663
        %v1665 = vpop.f32.mrb[0].mxu0
        %v1666 = vpop.f32.mrb[0].mxu0
        %v1667 = vpop.f32.mrb[0].mxu0
        %1668 = vdwg.mxu0
        %v1669 = vsel %vm1388, %v1664, -inf
        %1670 = vmax.xlane.f32.xlu0 %v1669
        %v1671 = vpop.xlane.xlu0 %1670
        %v1672 = vsub.f32 %v1664, %v1671
        %v1673 = vmul.f32 %v1672, 1.442695
        %v1674 = vpow.pop %v1673
        %v1675 = vsel %vm1388, %v1674, 0.0
        %1676 = vadd.xlane.f32.xlu0 %v1675
        %v1677 = vpop.xlane.xlu0 %1676
        %v1678 = vrcp.pop %v1677
        %v1679 = vpack.c.bf16 %v1674, %v1674
        %1680 = vrot.lane.b32.xlu0 %v1384, 48
        %v1681 = vpop.permute.xlu0 %1680
        %v1683 = vsel %vm1388, %v1679, 0
        %v1686 = vsel %vm1451, %v1681, 0
        %1688 = vmatprep.subr.bf16.mxu0 0
        %1689 = vmatpush1.bf16.msra.mxu0 %v1686
        %1690 = vmatprep.subr.bf16.mxu0 0
        %1691 = vmatpush1.bf16.msra.mxu0 0
        %1692 = vmatprep.subr.bf16.mxu0 0
        %1693 = vmatpush1.bf16.msra.mxu0 0
        %1694 = vmatprep.subr.bf16.mxu0 0
        %1695 = vmatpush1.bf16.msra.mxu0 0
        %1696 = vmatprep.subr.bf16.mxu0 0
        %1697 = vmatpush1.bf16.msra.mxu0 0
        %1698 = vmatprep.subr.bf16.mxu0 0
        %1699 = vmatpush1.bf16.msra.mxu0 0
        %1700 = vmatprep.subr.bf16.mxu0 0
        %1701 = vmatpush1.bf16.msra.mxu0 0
        %1702 = vmatprep.subr.bf16.mxu0 0
        %1703 = vmatpush1.bf16.msra.mxu0 0
        %1704 = vmatprep.subr.bf16.mxu0 0
        %1705 = vmatpush1.bf16.msra.mxu0 0
        %1706 = vmatprep.subr.bf16.mxu0 0
        %1707 = vmatpush1.bf16.msra.mxu0 0
        %1708 = vmatprep.subr.bf16.mxu0 0
        %1709 = vmatpush1.bf16.msra.mxu0 0
        %1710 = vmatprep.subr.bf16.mxu0 0
        %1711 = vmatpush1.bf16.msra.mxu0 0
        %1712 = vmatprep.subr.bf16.mxu0 0
        %1713 = vmatpush1.bf16.msra.mxu0 0
        %1714 = vmatprep.subr.bf16.mxu0 0
        %1715 = vmatpush1.bf16.msra.mxu0 0
        %1716 = vmatprep.subr.bf16.mxu0 0
        %1717 = vmatpush1.bf16.msra.mxu0 0
        %1718 = vmatprep.subr.bf16.mxu0 0
        %1719 = vmatpush1.bf16.msra.mxu0 0
        %1720 = vmatprep.mubr.bf16.mxu0 0
        %1721 = vmatmul.mubr.bf16.gmra.mrb[0].mxu0 %v1683
        %v1722 = vpop.f32.mrb[0].mxu0
        %v1723 = vadd.f32 0.0, %v1722
        %v1724 = vpop.f32.mrb[0].mxu0
        %v1725 = vpop.f32.mrb[0].mxu0
        %v1726 = vpop.f32.mrb[0].mxu0
        %1727 = vdwg.mxu0
        %v1728 = vmul.f32 %v1723, %v1678
        %v1729 = vpack.c.bf16 %v1728, %v1728
        %v1731 = vunpack.c.l.b16 %v1729
        %v1732 = vpack.c.b16 %v1731, %v1731
        %1733 = vrot.lane.b32.xlu0 %v1732, 16
        %v1734 = vpop.permute.xlu0 %1733
        %vm1736 = vcmask 191616
        %1737 = vst.msk [vmem:[#allocation3] sm:$0xf] %vm1736, %v1734
        %1738 = vrot.lane.b32.xlu0 %v1383, 104
        %v1739 = vpop.permute.xlu0 %1738
        %1740 = vrot.lane.b32.xlu0 %v1384, 72
        %v1741 = vpop.permute.xlu0 %1740
        %v1743 = vsel %vm1388, %v1739, 0
        %v1746 = vsel %vm1388, %v1741, 0
        %1748 = vmatprep.subr.bf16.mxu0 0
        %1749 = vmatpush1.bf16.xpose.msra.mxu0 %v1746
        %1750 = vmatprep.subr.bf16.mxu0 0
        %1751 = vmatpush1.bf16.xpose.msra.mxu0 0
        %1752 = vmatprep.subr.bf16.mxu0 0
        %1753 = vmatpush1.bf16.xpose.msra.mxu0 0
        %1754 = vmatprep.subr.bf16.mxu0 0
        %1755 = vmatpush1.bf16.xpose.msra.mxu0 0
        %1756 = vmatprep.subr.bf16.mxu0 0
        %1757 = vmatpush1.bf16.xpose.msra.mxu0 0
        %1758 = vmatprep.subr.bf16.mxu0 0
        %1759 = vmatpush1.bf16.xpose.msra.mxu0 0
        %1760 = vmatprep.subr.bf16.mxu0 0
        %1761 = vmatpush1.bf16.xpose.msra.mxu0 0
        %1762 = vmatprep.subr.bf16.mxu0 0
        %1763 = vmatpush1.bf16.xpose.msra.mxu0 0
        %1764 = vmatprep.subr.bf16.mxu0 0
        %1765 = vmatpush1.bf16.xpose.msra.mxu0 0
        %1766 = vmatprep.subr.bf16.mxu0 0
        %1767 = vmatpush1.bf16.xpose.msra.mxu0 0
        %1768 = vmatprep.subr.bf16.mxu0 0
        %1769 = vmatpush1.bf16.xpose.msra.mxu0 0
        %1770 = vmatprep.subr.bf16.mxu0 0
        %1771 = vmatpush1.bf16.xpose.msra.mxu0 0
        %1772 = vmatprep.subr.bf16.mxu0 0
        %1773 = vmatpush1.bf16.xpose.msra.mxu0 0
        %1774 = vmatprep.subr.bf16.mxu0 0
        %1775 = vmatpush1.bf16.xpose.msra.mxu0 0
        %1776 = vmatprep.subr.bf16.mxu0 0
        %1777 = vmatpush1.bf16.xpose.msra.mxu0 0
        %1778 = vmatprep.subr.bf16.mxu0 0
        %1779 = vmatpush1.bf16.xpose.msra.mxu0 0
        %1780 = vmatprep.mubr.bf16.mxu0 0
        %1781 = vmatmul.mubr.bf16.gmra.mrb[0].mxu0 %v1743
        %v1782 = vpop.f32.mrb[0].mxu0
        %v1783 = vadd.f32 %v1381, %v1782
        %v1784 = vpop.f32.mrb[0].mxu0
        %v1785 = vpop.f32.mrb[0].mxu0
        %v1786 = vpop.f32.mrb[0].mxu0
        %1787 = vdwg.mxu0
        %v1788 = vsel %vm1388, %v1783, -inf
        %1789 = vmax.xlane.f32.xlu0 %v1788
        %v1790 = vpop.xlane.xlu0 %1789
        %v1791 = vsub.f32 %v1783, %v1790
        %v1792 = vmul.f32 %v1791, 1.442695
        %v1793 = vpow.pop %v1792
        %v1794 = vsel %vm1388, %v1793, 0.0
        %1795 = vadd.xlane.f32.xlu0 %v1794
        %v1796 = vpop.xlane.xlu0 %1795
        %v1797 = vrcp.pop %v1796
        %v1798 = vpack.c.bf16 %v1793, %v1793
        %1799 = vrot.lane.b32.xlu0 %v1384, 40
        %v1800 = vpop.permute.xlu0 %1799
        %v1802 = vsel %vm1388, %v1798, 0
        %v1805 = vsel %vm1451, %v1800, 0
        %1807 = vmatprep.subr.bf16.mxu0 0
        %1808 = vmatpush1.bf16.msra.mxu0 %v1805
        %1809 = vmatprep.subr.bf16.mxu0 0
        %1810 = vmatpush1.bf16.msra.mxu0 0
        %1811 = vmatprep.subr.bf16.mxu0 0
        %1812 = vmatpush1.bf16.msra.mxu0 0
        %1813 = vmatprep.subr.bf16.mxu0 0
        %1814 = vmatpush1.bf16.msra.mxu0 0
        %1815 = vmatprep.subr.bf16.mxu0 0
        %1816 = vmatpush1.bf16.msra.mxu0 0
        %1817 = vmatprep.subr.bf16.mxu0 0
        %1818 = vmatpush1.bf16.msra.mxu0 0
        %1819 = vmatprep.subr.bf16.mxu0 0
        %1820 = vmatpush1.bf16.msra.mxu0 0
        %1821 = vmatprep.subr.bf16.mxu0 0
        %1822 = vmatpush1.bf16.msra.mxu0 0
        %1823 = vmatprep.subr.bf16.mxu0 0
        %1824 = vmatpush1.bf16.msra.mxu0 0
        %1825 = vmatprep.subr.bf16.mxu0 0
        %1826 = vmatpush1.bf16.msra.mxu0 0
        %1827 = vmatprep.subr.bf16.mxu0 0
        %1828 = vmatpush1.bf16.msra.mxu0 0
        %1829 = vmatprep.subr.bf16.mxu0 0
        %1830 = vmatpush1.bf16.msra.mxu0 0
        %1831 = vmatprep.subr.bf16.mxu0 0
        %1832 = vmatpush1.bf16.msra.mxu0 0
        %1833 = vmatprep.subr.bf16.mxu0 0
        %1834 = vmatpush1.bf16.msra.mxu0 0
        %1835 = vmatprep.subr.bf16.mxu0 0
        %1836 = vmatpush1.bf16.msra.mxu0 0
        %1837 = vmatprep.subr.bf16.mxu0 0
        %1838 = vmatpush1.bf16.msra.mxu0 0
        %1839 = vmatprep.mubr.bf16.mxu0 0
        %1840 = vmatmul.mubr.bf16.gmra.mrb[0].mxu0 %v1802
        %v1841 = vpop.f32.mrb[0].mxu0
        %v1842 = vadd.f32 0.0, %v1841
        %v1843 = vpop.f32.mrb[0].mxu0
        %v1844 = vpop.f32.mrb[0].mxu0
        %v1845 = vpop.f32.mrb[0].mxu0
        %1846 = vdwg.mxu0
        %v1847 = vmul.f32 %v1842, %v1797
        %v1848 = vpack.c.bf16 %v1847, %v1847
        %v1850 = vunpack.c.l.b16 %v1848
        %v1851 = vpack.c.b16 %v1850, %v1850
        %1852 = vrot.lane.b32.xlu0 %v1851, 24
        %v1853 = vpop.permute.xlu0 %1852
        %vm1855 = vcmask 257216
        %1856 = vst.msk [vmem:[#allocation3] sm:$0xf] %vm1855, %v1853
        %v1857 = vld [vmem:[#allocation3] sm:$0xf]
        %v1858 = vld [vmem:[%s1044] sm:$0xf]
        %v1859 = vld [vmem:[%s1044 + $0x4] sm:$0xf]
        %v1860 = vld [vmem:[%s1044 + $0x8] sm:$0xf]
        %v1861 = vld [vmem:[%s1044 + $0xc] sm:$0xf]
        %v1862 = vld [vmem:[%s1052] sm:$0x1]
        %v1864 = vlaneseq
        %v1865 = vshrl.u32 %v1864, 7
        %v1866 = vsub.s32 0, %v1865
        %v1867 = vrot.slane %v1862, %v1866
        %v1873 = vunpack.c.l.b16 %v1858
        %v1874 = vunpack.c.l.b16 %v1859
        %v1875 = vunpack.c.l.b16 %v1860
        %v1876 = vunpack.c.l.b16 %v1861
        %v1877 = vpack.c.b16 %v1874, %v1873
        %v1878 = vpack.c.b16 %v1876, %v1875
        %v1882 = vsel %vm1337, %v1857, 0
        %1884 = vmatprep.subr.bf16.mxu0 0
        %1885 = vmatpush1.bf16.msra.mxu0 %v1877
        %1886 = vmatprep.subr.bf16.mxu0 0
        %1887 = vmatpush1.bf16.msra.mxu0 %v1878
        %1888 = vmatprep.subr.bf16.mxu0 0
        %1889 = vmatpush1.bf16.msra.mxu0 0
        %1890 = vmatprep.subr.bf16.mxu0 0
        %1891 = vmatpush1.bf16.msra.mxu0 0
        %1892 = vmatprep.subr.bf16.mxu0 0
        %1893 = vmatpush1.bf16.msra.mxu0 0
        %1894 = vmatprep.subr.bf16.mxu0 0
        %1895 = vmatpush1.bf16.msra.mxu0 0
        %1896 = vmatprep.subr.bf16.mxu0 0
        %1897 = vmatpush1.bf16.msra.mxu0 0
        %1898 = vmatprep.subr.bf16.mxu0 0
        %1899 = vmatpush1.bf16.msra.mxu0 0
        %1900 = vmatprep.subr.bf16.mxu0 0
        %1901 = vmatpush1.bf16.msra.mxu0 0
        %1902 = vmatprep.subr.bf16.mxu0 0
        %1903 = vmatpush1.bf16.msra.mxu0 0
        %1904 = vmatprep.subr.bf16.mxu0 0
        %1905 = vmatpush1.bf16.msra.mxu0 0
        %1906 = vmatprep.subr.bf16.mxu0 0
        %1907 = vmatpush1.bf16.msra.mxu0 0
        %1908 = vmatprep.subr.bf16.mxu0 0
        %1909 = vmatpush1.bf16.msra.mxu0 0
        %1910 = vmatprep.subr.bf16.mxu0 0
        %1911 = vmatpush1.bf16.msra.mxu0 0
        %1912 = vmatprep.subr.bf16.mxu0 0
        %1913 = vmatpush1.bf16.msra.mxu0 0
        %1914 = vmatprep.subr.bf16.mxu0 0
        %1915 = vmatpush1.bf16.msra.mxu0 0
        %1916 = vmatprep.mubr.bf16.mxu0 0
        %1917 = vmatmul.mubr.bf16.gmra.mrb[0].mxu0 %v1882
        %v1918 = vpop.f32.mrb[0].mxu0
        %v1919 = vadd.f32 %v1867, %v1918
        %v1920 = vpop.f32.mrb[0].mxu0
        %v1921 = vpop.f32.mrb[0].mxu0
        %v1922 = vpop.f32.mrb[0].mxu0
        %1923 = vdwg.mxu0
        %v1924 = vadd.f32 %v1295, %v1919
        %v1925 = vsel %vm1337, %v1924, 0.0
        %1926 = vadd.xlane.f32.xlu0 %v1925
        %v1927 = vpop.xlane.xlu0 %1926
        %v1928 = vmul.f32 %v1924, %v1924
        %v1929 = vsel %vm1337, %v1928, 0.0
        %1930 = vadd.xlane.f32.xlu0 %v1929
        %v1931 = vpop.xlane.xlu0 %1930
        %v1932 = vmul.f32 %v1927, 0.03125
        %v1933 = vmul.f32 %v1931, 0.03125
        %v1934 = vmul.f32 %v1932, %v1932
        %v1935 = vsub.f32 %v1933, %v1934
        %v1936 = vmax.f32 %v1935, 0.0
        %v1937 = vsub.f32 %v1924, %v1932
        %v1938 = vadd.f32 %v1936, 1e-05
        %v1939 = vrsqrt.pop %v1938
        %v1940 = vmul.f32 %v1937, %v1939
        %v1941 = vlaneseq
        %v1942 = vshrl.u32 %v1941, 7
        %v1943 = vsub.s32 0, %v1942
        %v1944 = vrot.slane %v1312, %v1943
        %v1945 = vmul.f32 %v1940, %v1944
        %v1946 = vlaneseq
        %v1947 = vshrl.u32 %v1946, 7
        %v1948 = vsub.s32 1, %v1947
        %v1949 = vrot.slane %v1312, %v1948
        %v1950 = vadd.f32 %v1945, %v1949
        %v1951 = vpack.c.bf16 %v1950, %v1950
        %v1952 = vld [vmem:[%s1061] sm:$0xf]
        %v1953 = vld [vmem:[%s1061 + $0x4] sm:$0xf]
        %v1954 = vld [vmem:[%s1061 + $0x8] sm:$0xf]
        %v1955 = vld [vmem:[%s1061 + $0xc] sm:$0xf]
        %v1956 = vld [vmem:[%s1069] sm:$0x1]
        %v1958 = vlaneseq
        %v1959 = vshrl.u32 %v1958, 7
        %v1960 = vsub.s32 0, %v1959
        %v1961 = vrot.slane %v1956, %v1960
        %v1967 = vunpack.c.l.b16 %v1952
        %v1968 = vunpack.c.l.b16 %v1953
        %v1969 = vunpack.c.l.b16 %v1954
        %v1970 = vunpack.c.l.b16 %v1955
        %v1971 = vpack.c.b16 %v1968, %v1967
        %v1972 = vpack.c.b16 %v1970, %v1969
        %v1976 = vsel %vm1337, %v1951, 0
        %1978 = vmatprep.subr.bf16.mxu0 0
        %1979 = vmatpush1.bf16.msra.mxu0 %v1971
        %1980 = vmatprep.subr.bf16.mxu0 0
        %1981 = vmatpush1.bf16.msra.mxu0 %v1972
        %1982 = vmatprep.subr.bf16.mxu0 0
        %1983 = vmatpush1.bf16.msra.mxu0 0
        %1984 = vmatprep.subr.bf16.mxu0 0
        %1985 = vmatpush1.bf16.msra.mxu0 0
        %1986 = vmatprep.subr.bf16.mxu0 0
        %1987 = vmatpush1.bf16.msra.mxu0 0
        %1988 = vmatprep.subr.bf16.mxu0 0
        %1989 = vmatpush1.bf16.msra.mxu0 0
        %1990 = vmatprep.subr.bf16.mxu0 0
        %1991 = vmatpush1.bf16.msra.mxu0 0
        %1992 = vmatprep.subr.bf16.mxu0 0
        %1993 = vmatpush1.bf16.msra.mxu0 0
        %1994 = vmatprep.subr.bf16.mxu0 0
        %1995 = vmatpush1.bf16.msra.mxu0 0
        %1996 = vmatprep.subr.bf16.mxu0 0
        %1997 = vmatpush1.bf16.msra.mxu0 0
        %1998 = vmatprep.subr.bf16.mxu0 0
        %1999 = vmatpush1.bf16.msra.mxu0 0
        %2000 = vmatprep.subr.bf16.mxu0 0
        %2001 = vmatpush1.bf16.msra.mxu0 0
        %2002 = vmatprep.subr.bf16.mxu0 0
        %2003 = vmatpush1.bf16.msra.mxu0 0
        %2004 = vmatprep.subr.bf16.mxu0 0
        %2005 = vmatpush1.bf16.msra.mxu0 0
        %2006 = vmatprep.subr.bf16.mxu0 0
        %2007 = vmatpush1.bf16.msra.mxu0 0
        %2008 = vmatprep.subr.bf16.mxu0 0
        %2009 = vmatpush1.bf16.msra.mxu0 0
        %2010 = vmatprep.mubr.bf16.mxu0 0
        %2011 = vmatmul.mubr.bf16.gmra.mrb[0].mxu0 %v1976
        %v2012 = vpop.f32.mrb[0].mxu0
        %v2013 = vadd.f32 %v1961, %v2012
        %v2014 = vpop.f32.mrb[0].mxu0
        %v2015 = vpop.f32.mrb[0].mxu0
        %v2016 = vpop.f32.mrb[0].mxu0
        %2017 = vdwg.mxu0
        %v2018 = vld [vmem:[%s1078] sm:$0xf]
        %v2019 = vld [vmem:[%s1078 + $0x4] sm:$0xf]
        %v2020 = vld [vmem:[%s1078 + $0x8] sm:$0xf]
        %v2021 = vld [vmem:[%s1078 + $0xc] sm:$0xf]
        %v2022 = vld [vmem:[%s1086] sm:$0x1]
        %v2024 = vlaneseq
        %v2025 = vshrl.u32 %v2024, 7
        %v2026 = vsub.s32 0, %v2025
        %v2027 = vrot.slane %v2022, %v2026
        %v2045 = vunpack.c.l.b16 %v1296
        %v2046 = vunpack.c.l.b16 %v1297
        %v2047 = vunpack.c.l.b16 %v1298
        %v2048 = vunpack.c.l.b16 %v1299
        %v2049 = vunpack.c.l.b16 %v1300
        %v2050 = vunpack.c.l.b16 %v1301
        %v2051 = vunpack.c.l.b16 %v1302
        %v2052 = vunpack.c.l.b16 %v1303
        %v2053 = vunpack.c.l.b16 %v1304
        %v2054 = vunpack.c.l.b16 %v1305
        %v2055 = vunpack.c.l.b16 %v1306
        %v2056 = vunpack.c.l.b16 %v1307
        %v2057 = vunpack.c.l.b16 %v1308
        %v2058 = vunpack.c.l.b16 %v1309
        %v2059 = vunpack.c.l.b16 %v1310
        %v2060 = vunpack.c.l.b16 %v1311
        %v2061 = vpack.c.b16 %v2046, %v2045
        %v2062 = vpack.c.b16 %v2048, %v2047
        %v2063 = vpack.c.b16 %v2050, %v2049
        %v2064 = vpack.c.b16 %v2052, %v2051
        %v2065 = vpack.c.b16 %v2054, %v2053
        %v2066 = vpack.c.b16 %v2056, %v2055
        %v2067 = vpack.c.b16 %v2058, %v2057
        %v2068 = vpack.c.b16 %v2060, %v2059
        %v2073 = vunpack.c.l.b16 %v2018
        %v2074 = vunpack.c.l.b16 %v2019
        %v2075 = vunpack.c.l.b16 %v2020
        %v2076 = vunpack.c.l.b16 %v2021
        %v2077 = vpack.c.b16 %v2074, %v2073
        %v2078 = vpack.c.b16 %v2076, %v2075
        %v2082 = vsel %vm1337, %v2061, 0
        %v2085 = vsel %vm1337, %v2062, 0
        %v2088 = vsel %vm1337, %v2063, 0
        %v2091 = vsel %vm1337, %v2064, 0
        %v2094 = vsel %vm1337, %v2065, 0
        %v2097 = vsel %vm1337, %v2066, 0
        %v2100 = vsel %vm1337, %v2067, 0
        %v2103 = vsel %vm1337, %v2068, 0
        %2105 = vmatprep.subr.bf16.mxu0 0
        %2106 = vmatpush1.bf16.msra.mxu0 %v2077
        %2107 = vmatprep.subr.bf16.mxu0 0
        %2108 = vmatpush1.bf16.msra.mxu0 %v2078
        %2109 = vmatprep.subr.bf16.mxu0 0
        %2110 = vmatpush1.bf16.msra.mxu0 0
        %2111 = vmatprep.subr.bf16.mxu0 0
        %2112 = vmatpush1.bf16.msra.mxu0 0
        %2113 = vmatprep.subr.bf16.mxu0 0
        %2114 = vmatpush1.bf16.msra.mxu0 0
        %2115 = vmatprep.subr.bf16.mxu0 0
        %2116 = vmatpush1.bf16.msra.mxu0 0
        %2117 = vmatprep.subr.bf16.mxu0 0
        %2118 = vmatpush1.bf16.msra.mxu0 0
        %2119 = vmatprep.subr.bf16.mxu0 0
        %2120 = vmatpush1.bf16.msra.mxu0 0
        %2121 = vmatprep.subr.bf16.mxu0 0
        %2122 = vmatpush1.bf16.msra.mxu0 0
        %2123 = vmatprep.subr.bf16.mxu0 0
        %2124 = vmatpush1.bf16.msra.mxu0 0
        %2125 = vmatprep.subr.bf16.mxu0 0
        %2126 = vmatpush1.bf16.msra.mxu0 0
        %2127 = vmatprep.subr.bf16.mxu0 0
        %2128 = vmatpush1.bf16.msra.mxu0 0
        %2129 = vmatprep.subr.bf16.mxu0 0
        %2130 = vmatpush1.bf16.msra.mxu0 0
        %2131 = vmatprep.subr.bf16.mxu0 0
        %2132 = vmatpush1.bf16.msra.mxu0 0
        %2133 = vmatprep.subr.bf16.mxu0 0
        %2134 = vmatpush1.bf16.msra.mxu0 0
        %2135 = vmatprep.subr.bf16.mxu0 0
        %2136 = vmatpush1.bf16.msra.mxu0 0
        %2137 = vmatprep.mubr.bf16.mxu0 0
        %2138 = vmatmul.mubr.bf16.gmra.mrb[0].mxu0 %v2082
        %v2139 = vpop.f32.mrb[0].mxu0
        %v2140 = vadd.f32 %v2027, %v2139
        %v2141 = vpop.f32.mrb[0].mxu0
        %v2142 = vpop.f32.mrb[0].mxu0
        %v2143 = vadd.f32 %v2027, %v2142
        %v2144 = vpop.f32.mrb[0].mxu0
        %2145 = vmatprep.mubr.bf16.mxu0 0
        %2146 = vmatmul.mubr.bf16.gmra.mrb[0].mxu0 %v2085
        %v2147 = vpop.f32.mrb[0].mxu0
        %v2148 = vadd.f32 %v2027, %v2147
        %v2149 = vpop.f32.mrb[0].mxu0
        %v2150 = vpop.f32.mrb[0].mxu0
        %v2151 = vadd.f32 %v2027, %v2150
        %v2152 = vpop.f32.mrb[0].mxu0
        %2153 = vmatprep.mubr.bf16.mxu0 0
        %2154 = vmatmul.mubr.bf16.gmra.mrb[0].mxu0 %v2088
        %v2155 = vpop.f32.mrb[0].mxu0
        %v2156 = vadd.f32 %v2027, %v2155
        %v2157 = vpop.f32.mrb[0].mxu0
        %v2158 = vpop.f32.mrb[0].mxu0
        %v2159 = vadd.f32 %v2027, %v2158
        %v2160 = vpop.f32.mrb[0].mxu0
        %2161 = vmatprep.mubr.bf16.mxu0 0
        %2162 = vmatmul.mubr.bf16.gmra.mrb[0].mxu0 %v2091
        %v2163 = vpop.f32.mrb[0].mxu0
        %v2164 = vadd.f32 %v2027, %v2163
        %v2165 = vpop.f32.mrb[0].mxu0
        %v2166 = vpop.f32.mrb[0].mxu0
        %v2167 = vadd.f32 %v2027, %v2166
        %v2168 = vpop.f32.mrb[0].mxu0
        %2169 = vmatprep.mubr.bf16.mxu0 0
        %2170 = vmatmul.mubr.bf16.gmra.mrb[0].mxu0 %v2094
        %v2171 = vpop.f32.mrb[0].mxu0
        %v2172 = vadd.f32 %v2027, %v2171
        %v2173 = vpop.f32.mrb[0].mxu0
        %v2174 = vpop.f32.mrb[0].mxu0
        %v2175 = vadd.f32 %v2027, %v2174
        %v2176 = vpop.f32.mrb[0].mxu0
        %2177 = vmatprep.mubr.bf16.mxu0 0
        %2178 = vmatmul.mubr.bf16.gmra.mrb[0].mxu0 %v2097
        %v2179 = vpop.f32.mrb[0].mxu0
        %v2180 = vadd.f32 %v2027, %v2179
        %v2181 = vpop.f32.mrb[0].mxu0
        %v2182 = vpop.f32.mrb[0].mxu0
        %v2183 = vadd.f32 %v2027, %v2182
        %v2184 = vpop.f32.mrb[0].mxu0
        %2185 = vmatprep.mubr.bf16.mxu0 0
        %2186 = vmatmul.mubr.bf16.gmra.mrb[0].mxu0 %v2100
        %v2187 = vpop.f32.mrb[0].mxu0
        %v2188 = vadd.f32 %v2027, %v2187
        %v2189 = vpop.f32.mrb[0].mxu0
        %v2190 = vpop.f32.mrb[0].mxu0
        %v2191 = vadd.f32 %v2027, %v2190
        %v2192 = vpop.f32.mrb[0].mxu0
        %2193 = vmatprep.mubr.bf16.mxu0 0
        %2194 = vmatmul.mubr.bf16.gmra.mrb[0].mxu0 %v2103
        %v2195 = vpop.f32.mrb[0].mxu0
        %v2196 = vadd.f32 %v2027, %v2195
        %v2197 = vpop.f32.mrb[0].mxu0
        %v2198 = vpop.f32.mrb[0].mxu0
        %v2199 = vadd.f32 %v2027, %v2198
        %v2200 = vpop.f32.mrb[0].mxu0
        %2201 = vdwg.mxu0
        %v2202 = vld [vmem:[%s1018] sm:$0x1]
        %v2203 = vmul.f32 %v2013, 0.35355338
        %v2204 = vpack.c.bf16 %v2203, %v2203
        %v2205 = vpack.c.bf16 %v2143, %v2140
        %v2206 = vpack.c.bf16 %v2151, %v2148
        %v2207 = vpack.c.bf16 %v2159, %v2156
        %v2208 = vpack.c.bf16 %v2167, %v2164
        %v2209 = vpack.c.bf16 %v2175, %v2172
        %v2210 = vpack.c.bf16 %v2183, %v2180
        %v2211 = vpack.c.bf16 %v2191, %v2188
        %v2212 = vpack.c.bf16 %v2199, %v2196
        %v2214 = vlaneseq
        %v2215 = vshrl.u32 %v2214, 7
        %v2216 = vsub.s32 0, %v2215
        %v2217 = vrot.slane %v2202, %v2216
        %v2220 = vsel %vm1388, %v2204, 0
        %v2223 = vsel %vm1388, %v2205, 0
        %v2226 = vsel %vm1388, %v2206, 0
        %v2229 = vsel %vm1388, %v2207, 0
        %v2232 = vsel %vm1388, %v2208, 0
        %v2235 = vsel %vm1388, %v2209, 0
        %v2238 = vsel %vm1388, %v2210, 0
        %v2241 = vsel %vm1388, %v2211, 0
        %v2244 = vsel %vm1388, %v2212, 0
        %2246 = vmatprep.subr.bf16.mxu0 0
        %2247 = vmatpush1.bf16.xpose.msra.mxu0 %v2223
        %2248 = vmatprep.subr.bf16.mxu0 0
        %2249 = vmatpush1.bf16.xpose.msra.mxu0 %v2226
        %2250 = vmatprep.subr.bf16.mxu0 0
        %2251 = vmatpush1.bf16.xpose.msra.mxu0 %v2229
        %2252 = vmatprep.subr.bf16.mxu0 0
        %2253 = vmatpush1.bf16.xpose.msra.mxu0 %v2232
        %2254 = vmatprep.subr.bf16.mxu0 0
        %2255 = vmatpush1.bf16.xpose.msra.mxu0 %v2235
        %2256 = vmatprep.subr.bf16.mxu0 0
        %2257 = vmatpush1.bf16.xpose.msra.mxu0 %v2238
        %2258 = vmatprep.subr.bf16.mxu0 0
        %2259 = vmatpush1.bf16.xpose.msra.mxu0 %v2241
        %2260 = vmatprep.subr.bf16.mxu0 0
        %2261 = vmatpush1.bf16.xpose.msra.mxu0 %v2244
        %2262 = vmatprep.subr.bf16.mxu0 0
        %2263 = vmatpush1.bf16.xpose.msra.mxu0 0
        %2264 = vmatprep.subr.bf16.mxu0 0
        %2265 = vmatpush1.bf16.xpose.msra.mxu0 0
        %2266 = vmatprep.subr.bf16.mxu0 0
        %2267 = vmatpush1.bf16.xpose.msra.mxu0 0
        %2268 = vmatprep.subr.bf16.mxu0 0
        %2269 = vmatpush1.bf16.xpose.msra.mxu0 0
        %2270 = vmatprep.subr.bf16.mxu0 0
        %2271 = vmatpush1.bf16.xpose.msra.mxu0 0
        %2272 = vmatprep.subr.bf16.mxu0 0
        %2273 = vmatpush1.bf16.xpose.msra.mxu0 0
        %2274 = vmatprep.subr.bf16.mxu0 0
        %2275 = vmatpush1.bf16.xpose.msra.mxu0 0
        %2276 = vmatprep.subr.bf16.mxu0 0
        %2277 = vmatpush1.bf16.xpose.msra.mxu0 0
        %2278 = vmatprep.mubr.bf16.mxu0 0
        %2279 = vmatmul.mubr.bf16.gmra.mrb[0].mxu0 %v2220
        %v2280 = vpop.f32.mrb[0].mxu0
        %v2281 = vadd.f32 %v2217, %v2280
        %v2282 = vpop.f32.mrb[0].mxu0
        %v2283 = vpop.f32.mrb[0].mxu0
        %v2284 = vpop.f32.mrb[0].mxu0
        %2285 = vdwg.mxu0
        %2286 = vmax.xlane.f32.xlu0 %v2281
        %v2287 = vpop.xlane.xlu0 %2286
        %v2288 = vsub.f32 %v2281, %v2287
        %v2289 = vmul.f32 %v2288, 1.442695
        %v2290 = vpow.pop %v2289
        %2291 = vadd.xlane.f32.xlu0 %v2290
        %v2292 = vpop.xlane.xlu0 %2291
        %v2293 = vrcp.pop %v2292
        %v2294 = vpack.c.bf16 %v2290, %v2290
        %2303 = vrot.lane.b32.xlu0 %v2205, 96
        %v2304 = vpop.permute.xlu0 %2303
        %2305 = vrot.lane.b32.xlu0 %v2206, 96
        %v2306 = vpop.permute.xlu0 %2305
        %2307 = vrot.lane.b32.xlu0 %v2207, 96
        %v2308 = vpop.permute.xlu0 %2307
        %2309 = vrot.lane.b32.xlu0 %v2208, 96
        %v2310 = vpop.permute.xlu0 %2309
        %2311 = vrot.lane.b32.xlu0 %v2209, 96
        %v2312 = vpop.permute.xlu0 %2311
        %2313 = vrot.lane.b32.xlu0 %v2210, 96
        %v2314 = vpop.permute.xlu0 %2313
        %2315 = vrot.lane.b32.xlu0 %v2211, 96
        %v2316 = vpop.permute.xlu0 %2315
        %2317 = vrot.lane.b32.xlu0 %v2212, 96
        %v2318 = vpop.permute.xlu0 %2317
        %2327 = vmatprep.subr.bf16.mxu0 0
        %2328 = vmatpush1.bf16.msra.mxu0 %v2304
        %2329 = vmatprep.subr.bf16.mxu0 0
        %2330 = vmatpush1.bf16.msra.mxu0 %v2306
        %2331 = vmatprep.subr.bf16.mxu0 0
        %2332 = vmatpush1.bf16.msra.mxu0 %v2308
        %2333 = vmatprep.subr.bf16.mxu0 0
        %2334 = vmatpush1.bf16.msra.mxu0 %v2310
        %2335 = vmatprep.subr.bf16.mxu0 0
        %2336 = vmatpush1.bf16.msra.mxu0 %v2312
        %2337 = vmatprep.subr.bf16.mxu0 0
        %2338 = vmatpush1.bf16.msra.mxu0 %v2314
        %2339 = vmatprep.subr.bf16.mxu0 0
        %2340 = vmatpush1.bf16.msra.mxu0 %v2316
        %2341 = vmatprep.subr.bf16.mxu0 0
        %2342 = vmatpush1.bf16.msra.mxu0 %v2318
        %2343 = vmatprep.subr.bf16.mxu0 0
        %2344 = vmatpush1.bf16.msra.mxu0 0
        %2345 = vmatprep.subr.bf16.mxu0 0
        %2346 = vmatpush1.bf16.msra.mxu0 0
        %2347 = vmatprep.subr.bf16.mxu0 0
        %2348 = vmatpush1.bf16.msra.mxu0 0
        %2349 = vmatprep.subr.bf16.mxu0 0
        %2350 = vmatpush1.bf16.msra.mxu0 0
        %2351 = vmatprep.subr.bf16.mxu0 0
        %2352 = vmatpush1.bf16.msra.mxu0 0
        %2353 = vmatprep.subr.bf16.mxu0 0
        %2354 = vmatpush1.bf16.msra.mxu0 0
        %2355 = vmatprep.subr.bf16.mxu0 0
        %2356 = vmatpush1.bf16.msra.mxu0 0
        %2357 = vmatprep.subr.bf16.mxu0 0
        %2358 = vmatpush1.bf16.msra.mxu0 0
        %2359 = vmatprep.mubr.bf16.mxu0 0
        %2360 = vmatmul.mubr.bf16.gmra.mrb[0].mxu0 %v2294
        %v2361 = vpop.f32.mrb[0].mxu0
        %v2362 = vadd.f32 0.0, %v2361
        %v2363 = vpop.f32.mrb[0].mxu0
        %v2364 = vpop.f32.mrb[0].mxu0
        %v2365 = vpop.f32.mrb[0].mxu0
        %2366 = vdwg.mxu0
        %v2367 = vmul.f32 %v2362, %v2293
        %v2368 = vpack.c.bf16 %v2367, %v2367
        %2369 = vst.msk [vmem:[#allocation3] sm:$0xf] %vm1497, %v2368
        // Predicated region
        $region177: #{tpu_custom_call.1} parent=95 // pred_check
          %p2370 = pneg %p1287
        $region178: #{tpu_custom_call.1} parent=95 // pred_check_branch
          %2372 = sbr.rel (%p2370) target = $region180
        $region179: #{tpu_custom_call.1} parent=95 // pred_region
          %v2373 = vmul.f32 %v2290, %v2293
          %2374 = vst [vmem:[%s1284] sm:$0xff] %v2373
        $region180: #{tpu_custom_call.1} parent=95 // pred_fallthru
          _
        %2376 = vrot.lane.b32.xlu0 %v2204, 120
        %v2377 = vpop.permute.xlu0 %2376
        %2378 = vrot.lane.b32.xlu0 %v2205, 120
        %v2379 = vpop.permute.xlu0 %2378
        %2380 = vrot.lane.b32.xlu0 %v2206, 120
        %v2381 = vpop.permute.xlu0 %2380
        %2382 = vrot.lane.b32.xlu0 %v2207, 120
        %v2383 = vpop.permute.xlu0 %2382
        %2384 = vrot.lane.b32.xlu0 %v2208, 120
        %v2385 = vpop.permute.xlu0 %2384
        %2386 = vrot.lane.b32.xlu0 %v2209, 120
        %v2387 = vpop.permute.xlu0 %2386
        %2388 = vrot.lane.b32.xlu0 %v2210, 120
        %v2389 = vpop.permute.xlu0 %2388
        %2390 = vrot.lane.b32.xlu0 %v2211, 120
        %v2391 = vpop.permute.xlu0 %2390
        %2392 = vrot.lane.b32.xlu0 %v2212, 120
        %v2393 = vpop.permute.xlu0 %2392
        %v2395 = vsel %vm1388, %v2377, 0
        %v2398 = vsel %vm1388, %v2379, 0
        %v2401 = vsel %vm1388, %v2381, 0
        %v2404 = vsel %vm1388, %v2383, 0
        %v2407 = vsel %vm1388, %v2385, 0
        %v2410 = vsel %vm1388, %v2387, 0
        %v2413 = vsel %vm1388, %v2389, 0
        %v2416 = vsel %vm1388, %v2391, 0
        %v2419 = vsel %vm1388, %v2393, 0
        %2421 = vmatprep.subr.bf16.mxu0 0
        %2422 = vmatpush1.bf16.xpose.msra.mxu0 %v2398
        %2423 = vmatprep.subr.bf16.mxu0 0
        %2424 = vmatpush1.bf16.xpose.msra.mxu0 %v2401
        %2425 = vmatprep.subr.bf16.mxu0 0
        %2426 = vmatpush1.bf16.xpose.msra.mxu0 %v2404
        %2427 = vmatprep.subr.bf16.mxu0 0
        %2428 = vmatpush1.bf16.xpose.msra.mxu0 %v2407
        %2429 = vmatprep.subr.bf16.mxu0 0
        %2430 = vmatpush1.bf16.xpose.msra.mxu0 %v2410
        %2431 = vmatprep.subr.bf16.mxu0 0
        %2432 = vmatpush1.bf16.xpose.msra.mxu0 %v2413
        %2433 = vmatprep.subr.bf16.mxu0 0
        %2434 = vmatpush1.bf16.xpose.msra.mxu0 %v2416
        %2435 = vmatprep.subr.bf16.mxu0 0
        %2436 = vmatpush1.bf16.xpose.msra.mxu0 %v2419
        %2437 = vmatprep.subr.bf16.mxu0 0
        %2438 = vmatpush1.bf16.xpose.msra.mxu0 0
        %2439 = vmatprep.subr.bf16.mxu0 0
        %2440 = vmatpush1.bf16.xpose.msra.mxu0 0
        %2441 = vmatprep.subr.bf16.mxu0 0
        %2442 = vmatpush1.bf16.xpose.msra.mxu0 0
        %2443 = vmatprep.subr.bf16.mxu0 0
        %2444 = vmatpush1.bf16.xpose.msra.mxu0 0
        %2445 = vmatprep.subr.bf16.mxu0 0
        %2446 = vmatpush1.bf16.xpose.msra.mxu0 0
        %2447 = vmatprep.subr.bf16.mxu0 0
        %2448 = vmatpush1.bf16.xpose.msra.mxu0 0
        %2449 = vmatprep.subr.bf16.mxu0 0
        %2450 = vmatpush1.bf16.xpose.msra.mxu0 0
        %2451 = vmatprep.subr.bf16.mxu0 0
        %2452 = vmatpush1.bf16.xpose.msra.mxu0 0
        %2453 = vmatprep.mubr.bf16.mxu0 0
        %2454 = vmatmul.mubr.bf16.gmra.mrb[0].mxu0 %v2395
        %v2455 = vpop.f32.mrb[0].mxu0
        %v2456 = vadd.f32 %v2217, %v2455
        %v2457 = vpop.f32.mrb[0].mxu0
        %v2458 = vpop.f32.mrb[0].mxu0
        %v2459 = vpop.f32.mrb[0].mxu0
        %2460 = vdwg.mxu0
        %2461 = vmax.xlane.f32.xlu0 %v2456
        %v2462 = vpop.xlane.xlu0 %2461
        %v2463 = vsub.f32 %v2456, %v2462
        %v2464 = vmul.f32 %v2463, 1.442695
        %v2465 = vpow.pop %v2464
        %2466 = vadd.xlane.f32.xlu0 %v2465
        %v2467 = vpop.xlane.xlu0 %2466
        %v2468 = vrcp.pop %v2467
        %v2469 = vpack.c.bf16 %v2465, %v2465
        %2470 = vrot.lane.b32.xlu0 %v2205, 88
        %v2471 = vpop.permute.xlu0 %2470
        %2472 = vrot.lane.b32.xlu0 %v2206, 88
        %v2473 = vpop.permute.xlu0 %2472
        %2474 = vrot.lane.b32.xlu0 %v2207, 88
        %v2475 = vpop.permute.xlu0 %2474
        %2476 = vrot.lane.b32.xlu0 %v2208, 88
        %v2477 = vpop.permute.xlu0 %2476
        %2478 = vrot.lane.b32.xlu0 %v2209, 88
        %v2479 = vpop.permute.xlu0 %2478
        %2480 = vrot.lane.b32.xlu0 %v2210, 88
        %v2481 = vpop.permute.xlu0 %2480
        %2482 = vrot.lane.b32.xlu0 %v2211, 88
        %v2483 = vpop.permute.xlu0 %2482
        %2484 = vrot.lane.b32.xlu0 %v2212, 88
        %v2485 = vpop.permute.xlu0 %2484
        %2494 = vmatprep.subr.bf16.mxu0 0
        %2495 = vmatpush1.bf16.msra.mxu0 %v2471
        %2496 = vmatprep.subr.bf16.mxu0 0
        %2497 = vmatpush1.bf16.msra.mxu0 %v2473
        %2498 = vmatprep.subr.bf16.mxu0 0
        %2499 = vmatpush1.bf16.msra.mxu0 %v2475
        %2500 = vmatprep.subr.bf16.mxu0 0
        %2501 = vmatpush1.bf16.msra.mxu0 %v2477
        %2502 = vmatprep.subr.bf16.mxu0 0
        %2503 = vmatpush1.bf16.msra.mxu0 %v2479
        %2504 = vmatprep.subr.bf16.mxu0 0
        %2505 = vmatpush1.bf16.msra.mxu0 %v2481
        %2506 = vmatprep.subr.bf16.mxu0 0
        %2507 = vmatpush1.bf16.msra.mxu0 %v2483
        %2508 = vmatprep.subr.bf16.mxu0 0
        %2509 = vmatpush1.bf16.msra.mxu0 %v2485
        %2510 = vmatprep.subr.bf16.mxu0 0
        %2511 = vmatpush1.bf16.msra.mxu0 0
        %2512 = vmatprep.subr.bf16.mxu0 0
        %2513 = vmatpush1.bf16.msra.mxu0 0
        %2514 = vmatprep.subr.bf16.mxu0 0
        %2515 = vmatpush1.bf16.msra.mxu0 0
        %2516 = vmatprep.subr.bf16.mxu0 0
        %2517 = vmatpush1.bf16.msra.mxu0 0
        %2518 = vmatprep.subr.bf16.mxu0 0
        %2519 = vmatpush1.bf16.msra.mxu0 0
        %2520 = vmatprep.subr.bf16.mxu0 0
        %2521 = vmatpush1.bf16.msra.mxu0 0
        %2522 = vmatprep.subr.bf16.mxu0 0
        %2523 = vmatpush1.bf16.msra.mxu0 0
        %2524 = vmatprep.subr.bf16.mxu0 0
        %2525 = vmatpush1.bf16.msra.mxu0 0
        %2526 = vmatprep.mubr.bf16.mxu0 0
        %2527 = vmatmul.mubr.bf16.gmra.mrb[0].mxu0 %v2469
        %v2528 = vpop.f32.mrb[0].mxu0
        %v2529 = vadd.f32 0.0, %v2528
        %v2530 = vpop.f32.mrb[0].mxu0
        %v2531 = vpop.f32.mrb[0].mxu0
        %v2532 = vpop.f32.mrb[0].mxu0
        %2533 = vdwg.mxu0
        %v2534 = vmul.f32 %v2529, %v2468
        %v2535 = vpack.c.bf16 %v2534, %v2534
        %v2537 = vunpack.c.l.b16 %v2535
        %v2538 = vpack.c.b16 %v2537, %v2537
        %2539 = vrot.lane.b32.xlu0 %v2538, 8
        %v2540 = vpop.permute.xlu0 %2539
        %2542 = vst.msk [vmem:[#allocation3] sm:$0xf] %vm1617, %v2540
        // Predicated region
        $region181: #{tpu_custom_call.1} parent=95 // pred_check
          %p2543 = pneg %p1287
        $region182: #{tpu_custom_call.1} parent=95 // pred_check_branch
          %2545 = sbr.rel (%p2543) target = $region184
        $region183: #{tpu_custom_call.1} parent=95 // pred_region
          %v2546 = vmul.f32 %v2465, %v2468
          %s2547 = scalar_lea.vmem %s1284, 8 [#allocation35]
          %2548 = vst [vmem:[%s2547] sm:$0xff] %v2546
        $region184: #{tpu_custom_call.1} parent=95 // pred_fallthru
          _
        %2549 = vrot.lane.b32.xlu0 %v2204, 112
        %v2550 = vpop.permute.xlu0 %2549
        %2551 = vrot.lane.b32.xlu0 %v2205, 112
        %v2552 = vpop.permute.xlu0 %2551
        %2553 = vrot.lane.b32.xlu0 %v2206, 112
        %v2554 = vpop.permute.xlu0 %2553
        %2555 = vrot.lane.b32.xlu0 %v2207, 112
        %v2556 = vpop.permute.xlu0 %2555
        %2557 = vrot.lane.b32.xlu0 %v2208, 112
        %v2558 = vpop.permute.xlu0 %2557
        %2559 = vrot.lane.b32.xlu0 %v2209, 112
        %v2560 = vpop.permute.xlu0 %2559
        %2561 = vrot.lane.b32.xlu0 %v2210, 112
        %v2562 = vpop.permute.xlu0 %2561
        %2563 = vrot.lane.b32.xlu0 %v2211, 112
        %v2564 = vpop.permute.xlu0 %2563
        %2565 = vrot.lane.b32.xlu0 %v2212, 112
        %v2566 = vpop.permute.xlu0 %2565
        %v2568 = vsel %vm1388, %v2550, 0
        %v2571 = vsel %vm1388, %v2552, 0
        %v2574 = vsel %vm1388, %v2554, 0
        %v2577 = vsel %vm1388, %v2556, 0
        %v2580 = vsel %vm1388, %v2558, 0
        %v2583 = vsel %vm1388, %v2560, 0
        %v2586 = vsel %vm1388, %v2562, 0
        %v2589 = vsel %vm1388, %v2564, 0
        %v2592 = vsel %vm1388, %v2566, 0
        %2594 = vmatprep.subr.bf16.mxu0 0
        %2595 = vmatpush1.bf16.xpose.msra.mxu0 %v2571
        %2596 = vmatprep.subr.bf16.mxu0 0
        %2597 = vmatpush1.bf16.xpose.msra.mxu0 %v2574
        %2598 = vmatprep.subr.bf16.mxu0 0
        %2599 = vmatpush1.bf16.xpose.msra.mxu0 %v2577
        %2600 = vmatprep.subr.bf16.mxu0 0
        %2601 = vmatpush1.bf16.xpose.msra.mxu0 %v2580
        %2602 = vmatprep.subr.bf16.mxu0 0
        %2603 = vmatpush1.bf16.xpose.msra.mxu0 %v2583
        %2604 = vmatprep.subr.bf16.mxu0 0
        %2605 = vmatpush1.bf16.xpose.msra.mxu0 %v2586
        %2606 = vmatprep.subr.bf16.mxu0 0
        %2607 = vmatpush1.bf16.xpose.msra.mxu0 %v2589
        %2608 = vmatprep.subr.bf16.mxu0 0
        %2609 = vmatpush1.bf16.xpose.msra.mxu0 %v2592
        %2610 = vmatprep.subr.bf16.mxu0 0
        %2611 = vmatpush1.bf16.xpose.msra.mxu0 0
        %2612 = vmatprep.subr.bf16.mxu0 0
        %2613 = vmatpush1.bf16.xpose.msra.mxu0 0
        %2614 = vmatprep.subr.bf16.mxu0 0
        %2615 = vmatpush1.bf16.xpose.msra.mxu0 0
        %2616 = vmatprep.subr.bf16.mxu0 0
        %2617 = vmatpush1.bf16.xpose.msra.mxu0 0
        %2618 = vmatprep.subr.bf16.mxu0 0
        %2619 = vmatpush1.bf16.xpose.msra.mxu0 0
        %2620 = vmatprep.subr.bf16.mxu0 0
        %2621 = vmatpush1.bf16.xpose.msra.mxu0 0
        %2622 = vmatprep.subr.bf16.mxu0 0
        %2623 = vmatpush1.bf16.xpose.msra.mxu0 0
        %2624 = vmatprep.subr.bf16.mxu0 0
        %2625 = vmatpush1.bf16.xpose.msra.mxu0 0
        %2626 = vmatprep.mubr.bf16.mxu0 0
        %2627 = vmatmul.mubr.bf16.gmra.mrb[0].mxu0 %v2568
        %v2628 = vpop.f32.mrb[0].mxu0
        %v2629 = vadd.f32 %v2217, %v2628
        %v2630 = vpop.f32.mrb[0].mxu0
        %v2631 = vpop.f32.mrb[0].mxu0
        %v2632 = vpop.f32.mrb[0].mxu0
        %2633 = vdwg.mxu0
        %2634 = vmax.xlane.f32.xlu0 %v2629
        %v2635 = vpop.xlane.xlu0 %2634
        %v2636 = vsub.f32 %v2629, %v2635
        %v2637 = vmul.f32 %v2636, 1.442695
        %v2638 = vpow.pop %v2637
        %2639 = vadd.xlane.f32.xlu0 %v2638
        %v2640 = vpop.xlane.xlu0 %2639
        %v2641 = vrcp.pop %v2640
        %v2642 = vpack.c.bf16 %v2638, %v2638
        %2643 = vrot.lane.b32.xlu0 %v2205, 80
        %v2644 = vpop.permute.xlu0 %2643
        %2645 = vrot.lane.b32.xlu0 %v2206, 80
        %v2646 = vpop.permute.xlu0 %2645
        %2647 = vrot.lane.b32.xlu0 %v2207, 80
        %v2648 = vpop.permute.xlu0 %2647
        %2649 = vrot.lane.b32.xlu0 %v2208, 80
        %v2650 = vpop.permute.xlu0 %2649
        %2651 = vrot.lane.b32.xlu0 %v2209, 80
        %v2652 = vpop.permute.xlu0 %2651
        %2653 = vrot.lane.b32.xlu0 %v2210, 80
        %v2654 = vpop.permute.xlu0 %2653
        %2655 = vrot.lane.b32.xlu0 %v2211, 80
        %v2656 = vpop.permute.xlu0 %2655
        %2657 = vrot.lane.b32.xlu0 %v2212, 80
        %v2658 = vpop.permute.xlu0 %2657
        %2667 = vmatprep.subr.bf16.mxu0 0
        %2668 = vmatpush1.bf16.msra.mxu0 %v2644
        %2669 = vmatprep.subr.bf16.mxu0 0
        %2670 = vmatpush1.bf16.msra.mxu0 %v2646
        %2671 = vmatprep.subr.bf16.mxu0 0
        %2672 = vmatpush1.bf16.msra.mxu0 %v2648
        %2673 = vmatprep.subr.bf16.mxu0 0
        %2674 = vmatpush1.bf16.msra.mxu0 %v2650
        %2675 = vmatprep.subr.bf16.mxu0 0
        %2676 = vmatpush1.bf16.msra.mxu0 %v2652
        %2677 = vmatprep.subr.bf16.mxu0 0
        %2678 = vmatpush1.bf16.msra.mxu0 %v2654
        %2679 = vmatprep.subr.bf16.mxu0 0
        %2680 = vmatpush1.bf16.msra.mxu0 %v2656
        %2681 = vmatprep.subr.bf16.mxu0 0
        %2682 = vmatpush1.bf16.msra.mxu0 %v2658
        %2683 = vmatprep.subr.bf16.mxu0 0
        %2684 = vmatpush1.bf16.msra.mxu0 0
        %2685 = vmatprep.subr.bf16.mxu0 0
        %2686 = vmatpush1.bf16.msra.mxu0 0
        %2687 = vmatprep.subr.bf16.mxu0 0
        %2688 = vmatpush1.bf16.msra.mxu0 0
        %2689 = vmatprep.subr.bf16.mxu0 0
        %2690 = vmatpush1.bf16.msra.mxu0 0
        %2691 = vmatprep.subr.bf16.mxu0 0
        %2692 = vmatpush1.bf16.msra.mxu0 0
        %2693 = vmatprep.subr.bf16.mxu0 0
        %2694 = vmatpush1.bf16.msra.mxu0 0
        %2695 = vmatprep.subr.bf16.mxu0 0
        %2696 = vmatpush1.bf16.msra.mxu0 0
        %2697 = vmatprep.subr.bf16.mxu0 0
        %2698 = vmatpush1.bf16.msra.mxu0 0
        %2699 = vmatprep.mubr.bf16.mxu0 0
        %2700 = vmatmul.mubr.bf16.gmra.mrb[0].mxu0 %v2642
        %v2701 = vpop.f32.mrb[0].mxu0
        %v2702 = vadd.f32 0.0, %v2701
        %v2703 = vpop.f32.mrb[0].mxu0
        %v2704 = vpop.f32.mrb[0].mxu0
        %v2705 = vpop.f32.mrb[0].mxu0
        %2706 = vdwg.mxu0
        %v2707 = vmul.f32 %v2702, %v2641
        %v2708 = vpack.c.bf16 %v2707, %v2707
        %v2710 = vunpack.c.l.b16 %v2708
        %v2711 = vpack.c.b16 %v2710, %v2710
        %2712 = vrot.lane.b32.xlu0 %v2711, 16
        %v2713 = vpop.permute.xlu0 %2712
        %2715 = vst.msk [vmem:[#allocation3] sm:$0xf] %vm1736, %v2713
        // Predicated region
        $region185: #{tpu_custom_call.1} parent=95 // pred_check
          %p2716 = pneg %p1287
        $region186: #{tpu_custom_call.1} parent=95 // pred_check_branch
          %2718 = sbr.rel (%p2716) target = $region188
        $region187: #{tpu_custom_call.1} parent=95 // pred_region
          %v2719 = vmul.f32 %v2638, %v2641
          %s2720 = scalar_lea.vmem %s1284, 16 [#allocation35]
          %2721 = vst [vmem:[%s2720] sm:$0xff] %v2719
        $region188: #{tpu_custom_call.1} parent=95 // pred_fallthru
          _
        %2722 = vrot.lane.b32.xlu0 %v2204, 104
        %v2723 = vpop.permute.xlu0 %2722
        %2724 = vrot.lane.b32.xlu0 %v2205, 104
        %v2725 = vpop.permute.xlu0 %2724
        %2726 = vrot.lane.b32.xlu0 %v2206, 104
        %v2727 = vpop.permute.xlu0 %2726
        %2728 = vrot.lane.b32.xlu0 %v2207, 104
        %v2729 = vpop.permute.xlu0 %2728
        %2730 = vrot.lane.b32.xlu0 %v2208, 104
        %v2731 = vpop.permute.xlu0 %2730
        %2732 = vrot.lane.b32.xlu0 %v2209, 104
        %v2733 = vpop.permute.xlu0 %2732
        %2734 = vrot.lane.b32.xlu0 %v2210, 104
        %v2735 = vpop.permute.xlu0 %2734
        %2736 = vrot.lane.b32.xlu0 %v2211, 104
        %v2737 = vpop.permute.xlu0 %2736
        %2738 = vrot.lane.b32.xlu0 %v2212, 104
        %v2739 = vpop.permute.xlu0 %2738
        %v2741 = vsel %vm1388, %v2723, 0
        %v2744 = vsel %vm1388, %v2725, 0
        %v2747 = vsel %vm1388, %v2727, 0
        %v2750 = vsel %vm1388, %v2729, 0
        %v2753 = vsel %vm1388, %v2731, 0
        %v2756 = vsel %vm1388, %v2733, 0
        %v2759 = vsel %vm1388, %v2735, 0
        %v2762 = vsel %vm1388, %v2737, 0
        %v2765 = vsel %vm1388, %v2739, 0
        %2767 = vmatprep.subr.bf16.mxu0 0
        %2768 = vmatpush1.bf16.xpose.msra.mxu0 %v2744
        %2769 = vmatprep.subr.bf16.mxu0 0
        %2770 = vmatpush1.bf16.xpose.msra.mxu0 %v2747
        %2771 = vmatprep.subr.bf16.mxu0 0
        %2772 = vmatpush1.bf16.xpose.msra.mxu0 %v2750
        %2773 = vmatprep.subr.bf16.mxu0 0
        %2774 = vmatpush1.bf16.xpose.msra.mxu0 %v2753
        %2775 = vmatprep.subr.bf16.mxu0 0
        %2776 = vmatpush1.bf16.xpose.msra.mxu0 %v2756
        %2777 = vmatprep.subr.bf16.mxu0 0
        %2778 = vmatpush1.bf16.xpose.msra.mxu0 %v2759
        %2779 = vmatprep.subr.bf16.mxu0 0
        %2780 = vmatpush1.bf16.xpose.msra.mxu0 %v2762
        %2781 = vmatprep.subr.bf16.mxu0 0
        %2782 = vmatpush1.bf16.xpose.msra.mxu0 %v2765
        %2783 = vmatprep.subr.bf16.mxu0 0
        %2784 = vmatpush1.bf16.xpose.msra.mxu0 0
        %2785 = vmatprep.subr.bf16.mxu0 0
        %2786 = vmatpush1.bf16.xpose.msra.mxu0 0
        %2787 = vmatprep.subr.bf16.mxu0 0
        %2788 = vmatpush1.bf16.xpose.msra.mxu0 0
        %2789 = vmatprep.subr.bf16.mxu0 0
        %2790 = vmatpush1.bf16.xpose.msra.mxu0 0
        %2791 = vmatprep.subr.bf16.mxu0 0
        %2792 = vmatpush1.bf16.xpose.msra.mxu0 0
        %2793 = vmatprep.subr.bf16.mxu0 0
        %2794 = vmatpush1.bf16.xpose.msra.mxu0 0
        %2795 = vmatprep.subr.bf16.mxu0 0
        %2796 = vmatpush1.bf16.xpose.msra.mxu0 0
        %2797 = vmatprep.subr.bf16.mxu0 0
        %2798 = vmatpush1.bf16.xpose.msra.mxu0 0
        %2799 = vmatprep.mubr.bf16.mxu0 0
        %2800 = vmatmul.mubr.bf16.gmra.mrb[0].mxu0 %v2741
        %v2801 = vpop.f32.mrb[0].mxu0
        %v2802 = vadd.f32 %v2217, %v2801
        %v2803 = vpop.f32.mrb[0].mxu0
        %v2804 = vpop.f32.mrb[0].mxu0
        %v2805 = vpop.f32.mrb[0].mxu0
        %2806 = vdwg.mxu0
        %2807 = vmax.xlane.f32.xlu0 %v2802
        %v2808 = vpop.xlane.xlu0 %2807
        %v2809 = vsub.f32 %v2802, %v2808
        %v2810 = vmul.f32 %v2809, 1.442695
        %v2811 = vpow.pop %v2810
        %2812 = vadd.xlane.f32.xlu0 %v2811
        %v2813 = vpop.xlane.xlu0 %2812
        %v2814 = vrcp.pop %v2813
        %v2815 = vpack.c.bf16 %v2811, %v2811
        %2816 = vrot.lane.b32.xlu0 %v2205, 72
        %v2817 = vpop.permute.xlu0 %2816
        %2818 = vrot.lane.b32.xlu0 %v2206, 72
        %v2819 = vpop.permute.xlu0 %2818
        %2820 = vrot.lane.b32.xlu0 %v2207, 72
        %v2821 = vpop.permute.xlu0 %2820
        %2822 = vrot.lane.b32.xlu0 %v2208, 72
        %v2823 = vpop.permute.xlu0 %2822
        %2824 = vrot.lane.b32.xlu0 %v2209, 72
        %v2825 = vpop.permute.xlu0 %2824
        %2826 = vrot.lane.b32.xlu0 %v2210, 72
        %v2827 = vpop.permute.xlu0 %2826
        %2828 = vrot.lane.b32.xlu0 %v2211, 72
        %v2829 = vpop.permute.xlu0 %2828
        %2830 = vrot.lane.b32.xlu0 %v2212, 72
        %v2831 = vpop.permute.xlu0 %2830
        %2840 = vmatprep.subr.bf16.mxu0 0
        %2841 = vmatpush1.bf16.msra.mxu0 %v2817
        %2842 = vmatprep.subr.bf16.mxu0 0
        %2843 = vmatpush1.bf16.msra.mxu0 %v2819
        %2844 = vmatprep.subr.bf16.mxu0 0
        %2845 = vmatpush1.bf16.msra.mxu0 %v2821
        %2846 = vmatprep.subr.bf16.mxu0 0
        %2847 = vmatpush1.bf16.msra.mxu0 %v2823
        %2848 = vmatprep.subr.bf16.mxu0 0
        %2849 = vmatpush1.bf16.msra.mxu0 %v2825
        %2850 = vmatprep.subr.bf16.mxu0 0
        %2851 = vmatpush1.bf16.msra.mxu0 %v2827
        %2852 = vmatprep.subr.bf16.mxu0 0
        %2853 = vmatpush1.bf16.msra.mxu0 %v2829
        %2854 = vmatprep.subr.bf16.mxu0 0
        %2855 = vmatpush1.bf16.msra.mxu0 %v2831
        %2856 = vmatprep.subr.bf16.mxu0 0
        %2857 = vmatpush1.bf16.msra.mxu0 0
        %2858 = vmatprep.subr.bf16.mxu0 0
        %2859 = vmatpush1.bf16.msra.mxu0 0
        %2860 = vmatprep.subr.bf16.mxu0 0
        %2861 = vmatpush1.bf16.msra.mxu0 0
        %2862 = vmatprep.subr.bf16.mxu0 0
        %2863 = vmatpush1.bf16.msra.mxu0 0
        %2864 = vmatprep.subr.bf16.mxu0 0
        %2865 = vmatpush1.bf16.msra.mxu0 0
        %2866 = vmatprep.subr.bf16.mxu0 0
        %2867 = vmatpush1.bf16.msra.mxu0 0
        %2868 = vmatprep.subr.bf16.mxu0 0
        %2869 = vmatpush1.bf16.msra.mxu0 0
        %2870 = vmatprep.subr.bf16.mxu0 0
        %2871 = vmatpush1.bf16.msra.mxu0 0
        %2872 = vmatprep.mubr.bf16.mxu0 0
        %2873 = vmatmul.mubr.bf16.gmra.mrb[0].mxu0 %v2815
        %v2874 = vpop.f32.mrb[0].mxu0
        %v2875 = vadd.f32 0.0, %v2874
        %v2876 = vpop.f32.mrb[0].mxu0
        %v2877 = vpop.f32.mrb[0].mxu0
        %v2878 = vpop.f32.mrb[0].mxu0
        %2879 = vdwg.mxu0
        %v2880 = vmul.f32 %v2875, %v2814
        %v2881 = vpack.c.bf16 %v2880, %v2880
        %v2883 = vunpack.c.l.b16 %v2881
        %v2884 = vpack.c.b16 %v2883, %v2883
        %2885 = vrot.lane.b32.xlu0 %v2884, 24
        %v2886 = vpop.permute.xlu0 %2885
        %2888 = vst.msk [vmem:[#allocation3] sm:$0xf] %vm1855, %v2886
        // Predicated region
        $region189: #{tpu_custom_call.1} parent=95 // pred_check
          %p2889 = pneg %p1287
        $region190: #{tpu_custom_call.1} parent=95 // pred_check_branch
          %2891 = sbr.rel (%p2889) target = $region192
        $region191: #{tpu_custom_call.1} parent=95 // pred_region
          %v2892 = vmul.f32 %v2811, %v2814
          %s2893 = scalar_lea.vmem %s1284, 24 [#allocation35]
          %2894 = vst [vmem:[%s2893] sm:$0xff] %v2892
        $region192: #{tpu_custom_call.1} parent=95 // pred_fallthru
          _
        %v2895 = vld [vmem:[#allocation3] sm:$0xf]
        %v2896 = vld [vmem:[%s1095] sm:$0xf]
        %v2897 = vld [vmem:[%s1095 + $0x4] sm:$0xf]
        %v2898 = vld [vmem:[%s1095 + $0x8] sm:$0xf]
        %v2899 = vld [vmem:[%s1095 + $0xc] sm:$0xf]
        %v2900 = vld [vmem:[%s1103] sm:$0x1]
        %v2902 = vlaneseq
        %v2903 = vshrl.u32 %v2902, 7
        %v2904 = vsub.s32 0, %v2903
        %v2905 = vrot.slane %v2900, %v2904
        %v2911 = vunpack.c.l.b16 %v2896
        %v2912 = vunpack.c.l.b16 %v2897
        %v2913 = vunpack.c.l.b16 %v2898
        %v2914 = vunpack.c.l.b16 %v2899
        %v2915 = vpack.c.b16 %v2912, %v2911
        %v2916 = vpack.c.b16 %v2914, %v2913
        %v2920 = vsel %vm1337, %v2895, 0
        %2922 = vmatprep.subr.bf16.mxu0 0
        %2923 = vmatpush1.bf16.msra.mxu0 %v2915
        %2924 = vmatprep.subr.bf16.mxu0 0
        %2925 = vmatpush1.bf16.msra.mxu0 %v2916
        %2926 = vmatprep.subr.bf16.mxu0 0
        %2927 = vmatpush1.bf16.msra.mxu0 0
        %2928 = vmatprep.subr.bf16.mxu0 0
        %2929 = vmatpush1.bf16.msra.mxu0 0
        %2930 = vmatprep.subr.bf16.mxu0 0
        %2931 = vmatpush1.bf16.msra.mxu0 0
        %2932 = vmatprep.subr.bf16.mxu0 0
        %2933 = vmatpush1.bf16.msra.mxu0 0
        %2934 = vmatprep.subr.bf16.mxu0 0
        %2935 = vmatpush1.bf16.msra.mxu0 0
        %2936 = vmatprep.subr.bf16.mxu0 0
        %2937 = vmatpush1.bf16.msra.mxu0 0
        %2938 = vmatprep.subr.bf16.mxu0 0
        %2939 = vmatpush1.bf16.msra.mxu0 0
        %2940 = vmatprep.subr.bf16.mxu0 0
        %2941 = vmatpush1.bf16.msra.mxu0 0
        %2942 = vmatprep.subr.bf16.mxu0 0
        %2943 = vmatpush1.bf16.msra.mxu0 0
        %2944 = vmatprep.subr.bf16.mxu0 0
        %2945 = vmatpush1.bf16.msra.mxu0 0
        %2946 = vmatprep.subr.bf16.mxu0 0
        %2947 = vmatpush1.bf16.msra.mxu0 0
        %2948 = vmatprep.subr.bf16.mxu0 0
        %2949 = vmatpush1.bf16.msra.mxu0 0
        %2950 = vmatprep.subr.bf16.mxu0 0
        %2951 = vmatpush1.bf16.msra.mxu0 0
        %2952 = vmatprep.subr.bf16.mxu0 0
        %2953 = vmatpush1.bf16.msra.mxu0 0
        %2954 = vmatprep.mubr.bf16.mxu0 0
        %2955 = vmatmul.mubr.bf16.gmra.mrb[0].mxu0 %v2920
        %v2956 = vpop.f32.mrb[0].mxu0
        %v2957 = vadd.f32 %v2905, %v2956
        %v2958 = vpop.f32.mrb[0].mxu0
        %v2959 = vpop.f32.mrb[0].mxu0
        %v2960 = vpop.f32.mrb[0].mxu0
        %2961 = vdwg.mxu0
        %v2962 = vadd.f32 %v1950, %v2957
        %v2963 = vsel %vm1337, %v2962, 0.0
        %2964 = vadd.xlane.f32.xlu0 %v2963
        %v2965 = vpop.xlane.xlu0 %2964
        %v2966 = vmul.f32 %v2962, %v2962
        %v2967 = vsel %vm1337, %v2966, 0.0
        %2968 = vadd.xlane.f32.xlu0 %v2967
        %v2969 = vpop.xlane.xlu0 %2968
        %v2970 = vmul.f32 %v2965, 0.03125
        %v2971 = vmul.f32 %v2969, 0.03125
        %v2972 = vmul.f32 %v2970, %v2970
        %v2973 = vsub.f32 %v2971, %v2972
        %v2974 = vmax.f32 %v2973, 0.0
        %v2975 = vsub.f32 %v2962, %v2970
        %v2976 = vadd.f32 %v2974, 1e-05
        %v2977 = vrsqrt.pop %v2976
        %v2978 = vmul.f32 %v2975, %v2977
        %v2979 = vlaneseq
        %v2980 = vshrl.u32 %v2979, 7
        %v2981 = vsub.s32 2, %v2980
        %v2982 = vrot.slane %v1312, %v2981
        %v2983 = vmul.f32 %v2978, %v2982
        %v2984 = vlaneseq
        %v2985 = vshrl.u32 %v2984, 7
        %v2986 = vsub.s32 3, %v2985
        %v2987 = vrot.slane %v1312, %v2986
        %v2988 = vadd.f32 %v2983, %v2987
        %v2989 = vpack.c.bf16 %v2988, %v2988
        %v2990 = vld [vmem:[%s1121] sm:$0xf]
        %v2991 = vld [vmem:[%s1121 + $0x4] sm:$0xf]
        %v2992 = vld [vmem:[%s1121 + $0x8] sm:$0xf]
        %v2993 = vld [vmem:[%s1121 + $0xc] sm:$0xf]
        %v2994 = vld [vmem:[%s1129] sm:$0x1]
        %v2996 = vlaneseq
        %v2997 = vshrl.u32 %v2996, 7
        %v2998 = vsub.s32 0, %v2997
        %v2999 = vrot.slane %v2994, %v2998
        %v3005 = vunpack.c.l.b16 %v2990
        %v3006 = vunpack.c.l.b16 %v2991
        %v3007 = vunpack.c.l.b16 %v2992
        %v3008 = vunpack.c.l.b16 %v2993
        %v3009 = vpack.c.b16 %v3006, %v3005
        %v3010 = vpack.c.b16 %v3008, %v3007
        %v3014 = vsel %vm1337, %v2989, 0
        %3016 = vmatprep.subr.bf16.mxu0 0
        %3017 = vmatpush1.bf16.msra.mxu0 %v3009
        %3018 = vmatprep.subr.bf16.mxu0 0
        %3019 = vmatpush1.bf16.msra.mxu0 %v3010
        %3020 = vmatprep.subr.bf16.mxu0 0
        %3021 = vmatpush1.bf16.msra.mxu0 0
        %3022 = vmatprep.subr.bf16.mxu0 0
        %3023 = vmatpush1.bf16.msra.mxu0 0
        %3024 = vmatprep.subr.bf16.mxu0 0
        %3025 = vmatpush1.bf16.msra.mxu0 0
        %3026 = vmatprep.subr.bf16.mxu0 0
        %3027 = vmatpush1.bf16.msra.mxu0 0
        %3028 = vmatprep.subr.bf16.mxu0 0
        %3029 = vmatpush1.bf16.msra.mxu0 0
        %3030 = vmatprep.subr.bf16.mxu0 0
        %3031 = vmatpush1.bf16.msra.mxu0 0
        %3032 = vmatprep.subr.bf16.mxu0 0
        %3033 = vmatpush1.bf16.msra.mxu0 0
        %3034 = vmatprep.subr.bf16.mxu0 0
        %3035 = vmatpush1.bf16.msra.mxu0 0
        %3036 = vmatprep.subr.bf16.mxu0 0
        %3037 = vmatpush1.bf16.msra.mxu0 0
        %3038 = vmatprep.subr.bf16.mxu0 0
        %3039 = vmatpush1.bf16.msra.mxu0 0
        %3040 = vmatprep.subr.bf16.mxu0 0
        %3041 = vmatpush1.bf16.msra.mxu0 0
        %3042 = vmatprep.subr.bf16.mxu0 0
        %3043 = vmatpush1.bf16.msra.mxu0 0
        %3044 = vmatprep.subr.bf16.mxu0 0
        %3045 = vmatpush1.bf16.msra.mxu0 0
        %3046 = vmatprep.subr.bf16.mxu0 0
        %3047 = vmatpush1.bf16.msra.mxu0 0
        %3048 = vmatprep.mubr.bf16.mxu0 0
        %3049 = vmatmul.mubr.bf16.gmra.mrb[0].mxu0 %v3014
        %v3050 = vpop.f32.mrb[0].mxu0
        %v3051 = vadd.f32 %v2999, %v3050
        %v3052 = vpop.f32.mrb[0].mxu0
        %v3053 = vpop.f32.mrb[0].mxu0
        %v3054 = vpop.f32.mrb[0].mxu0
        %3055 = vdwg.mxu0
        %v3056 = vmax.f32 %v3051, 0.0
        %v3057 = vpack.c.bf16 %v3056, %v3056
        %v3058 = vld [vmem:[%s1138] sm:$0xf]
        %v3059 = vld [vmem:[%s1138 + $0x4] sm:$0xf]
        %v3060 = vld [vmem:[%s1138 + $0x8] sm:$0xf]
        %v3061 = vld [vmem:[%s1138 + $0xc] sm:$0xf]
        %v3062 = vld [vmem:[%s1138 + $0x10] sm:$0xf]
        %v3063 = vld [vmem:[%s1138 + $0x14] sm:$0xf]
        %v3064 = vld [vmem:[%s1138 + $0x18] sm:$0xf]
        %v3065 = vld [vmem:[%s1138 + $0x1c] sm:$0xf]
        %v3066 = vld [vmem:[%s1146] sm:$0x1]
        %v3068 = vlaneseq
        %v3069 = vshrl.u32 %v3068, 7
        %v3070 = vsub.s32 0, %v3069
        %v3071 = vrot.slane %v3066, %v3070
        %v3081 = vunpack.c.l.b16 %v3058
        %v3082 = vunpack.c.l.b16 %v3059
        %v3083 = vunpack.c.l.b16 %v3060
        %v3084 = vunpack.c.l.b16 %v3061
        %v3085 = vunpack.c.l.b16 %v3062
        %v3086 = vunpack.c.l.b16 %v3063
        %v3087 = vunpack.c.l.b16 %v3064
        %v3088 = vunpack.c.l.b16 %v3065
        %v3089 = vpack.c.b16 %v3082, %v3081
        %v3090 = vpack.c.b16 %v3084, %v3083
        %v3091 = vpack.c.b16 %v3086, %v3085
        %v3092 = vpack.c.b16 %v3088, %v3087
        %vm3097 = vcmask 523264
        %v3099 = vsel %vm3097, %v3057, 0
        %3101 = vmatprep.subr.bf16.mxu0 0
        %3102 = vmatpush1.bf16.msra.mxu0 %v3089
        %3103 = vmatprep.subr.bf16.mxu0 0
        %3104 = vmatpush1.bf16.msra.mxu0 %v3090
        %3105 = vmatprep.subr.bf16.mxu0 0
        %3106 = vmatpush1.bf16.msra.mxu0 %v3091
        %3107 = vmatprep.subr.bf16.mxu0 0
        %3108 = vmatpush1.bf16.msra.mxu0 %v3092
        %3109 = vmatprep.subr.bf16.mxu0 0
        %3110 = vmatpush1.bf16.msra.mxu0 0
        %3111 = vmatprep.subr.bf16.mxu0 0
        %3112 = vmatpush1.bf16.msra.mxu0 0
        %3113 = vmatprep.subr.bf16.mxu0 0
        %3114 = vmatpush1.bf16.msra.mxu0 0
        %3115 = vmatprep.subr.bf16.mxu0 0
        %3116 = vmatpush1.bf16.msra.mxu0 0
        %3117 = vmatprep.subr.bf16.mxu0 0
        %3118 = vmatpush1.bf16.msra.mxu0 0
        %3119 = vmatprep.subr.bf16.mxu0 0
        %3120 = vmatpush1.bf16.msra.mxu0 0
        %3121 = vmatprep.subr.bf16.mxu0 0
        %3122 = vmatpush1.bf16.msra.mxu0 0
        %3123 = vmatprep.subr.bf16.mxu0 0
        %3124 = vmatpush1.bf16.msra.mxu0 0
        %3125 = vmatprep.subr.bf16.mxu0 0
        %3126 = vmatpush1.bf16.msra.mxu0 0
        %3127 = vmatprep.subr.bf16.mxu0 0
        %3128 = vmatpush1.bf16.msra.mxu0 0
        %3129 = vmatprep.subr.bf16.mxu0 0
        %3130 = vmatpush1.bf16.msra.mxu0 0
        %3131 = vmatprep.subr.bf16.mxu0 0
        %3132 = vmatpush1.bf16.msra.mxu0 0
        %3133 = vmatprep.mubr.bf16.mxu0 0
        %3134 = vmatmul.mubr.bf16.gmra.mrb[0].mxu0 %v3099
        %v3135 = vpop.f32.mrb[0].mxu0
        %v3136 = vadd.f32 %v3071, %v3135
        %v3137 = vpop.f32.mrb[0].mxu0
        %v3138 = vpop.f32.mrb[0].mxu0
        %v3139 = vpop.f32.mrb[0].mxu0
        %3140 = vdwg.mxu0
        %v3141 = vadd.f32 %v2988, %v3136
        %v3142 = vsel %vm1337, %v3141, 0.0
        %3143 = vadd.xlane.f32.xlu0 %v3142
        %v3144 = vpop.xlane.xlu0 %3143
        %v3145 = vmul.f32 %v3141, %v3141
        %v3146 = vsel %vm1337, %v3145, 0.0
        %3147 = vadd.xlane.f32.xlu0 %v3146
        %v3148 = vpop.xlane.xlu0 %3147
        %v3149 = vmul.f32 %v3144, 0.03125
        %v3150 = vmul.f32 %v3148, 0.03125
        %v3151 = vmul.f32 %v3149, %v3149
        %v3152 = vsub.f32 %v3150, %v3151
        %v3153 = vmax.f32 %v3152, 0.0
        %v3154 = vsub.f32 %v3141, %v3149
        %v3155 = vadd.f32 %v3153, 1e-05
        %v3156 = vrsqrt.pop %v3155
        %v3157 = vmul.f32 %v3154, %v3156
        %v3158 = vlaneseq
        %v3159 = vshrl.u32 %v3158, 7
        %v3160 = vsub.s32 4, %v3159
        %v3161 = vrot.slane %v1312, %v3160
        %v3162 = vmul.f32 %v3157, %v3161
        %v3163 = vlaneseq
        %v3164 = vshrl.u32 %v3163, 7
        %v3165 = vsub.s32 5, %v3164
        %v3166 = vrot.slane %v1312, %v3165
        %v3167 = vadd.f32 %v3162, %v3166
        %3168 = vst.msk [vmem:[#allocation2] sm:$0xff] %vm1337, %v3167
        // Predicated region
        $region193: #{tpu_custom_call.1} parent=95 // pred_check
          %p3169 = pneg %p1287
        $region194: #{tpu_custom_call.1} parent=95 // pred_check_branch
          %3171 = sbr.rel (%p3169) target = $region196
        $region195: #{tpu_custom_call.1} parent=95 // pred_region
          %3172 = vst.msk [vmem:[%s1277] sm:$0xff] %vm1337, %v3167
        $region196: #{tpu_custom_call.1} parent=95 // pred_fallthru
          _
        %s3173 = sand.u32 %s577, 1
        %s3174 = scalar_lea.sflag [#allocation6], %s3173
        %s3175 = sand.u32 %s577, 1
        %s3176 = smul.addr %s3175, 8
        %s3177 = scalar_lea.vmem [#allocation34], %s3176
        %s3178 = sand.u32 %s603, 1
        %s3179 = scalar_lea.sflag [#allocation36], %s3178
        %s3180 = sand.u32 %s603, 1
        %s3181 = smul.addr %s3180, 32
        %s3182 = scalar_lea.vmem [#allocation35], %s3181
        // Predicated region
        $region197: #{tpu_custom_call.1} parent=95 // pred_check
          %p3183 = pneg %p587
        $region198: #{tpu_custom_call.1} parent=95 // pred_check_branch
          %3185 = sbr.rel (%p3183) target = $region200
        $region199: #{tpu_custom_call.1} parent=95 // pred_region
          %s3187 = ssub.s32 128, 128
          %3188 = vsyncadd %s3174, %s3187
          %s3189 = smul.addr %s72, 128
          %s3190 = scalar_lea.hbm %s19, %s3189
          %s3192 = sshll.u32 %s3177, 4
          %s3193 = int_to_ptr.vmem [resolvable:$true] %s3192
          %3195 = dma.vmem_to_hbm [thread:$0]  %s3193, 128, %s3190, %s3174
        $region200: #{tpu_custom_call.1} parent=95 // pred_fallthru
          _
        // Predicated region
        $region201: #{tpu_custom_call.1} parent=95 // pred_check
          %p3196 = pneg %p613
        $region202: #{tpu_custom_call.1} parent=95 // pred_check_branch
          %3198 = sbr.rel (%p3196) target = $region204
        $region203: #{tpu_custom_call.1} parent=95 // pred_region
          %s3200 = ssub.s32 512, 512
          %3201 = vsyncadd %s3179, %s3200
          %s3202 = smul.addr %s72, 4
          %s3203 = smul.addr %s3202, 128
          %s3204 = scalar_lea.hbm %s20, %s3203
          %s3205 = sshll.u32 %s3182, 4
          %s3206 = int_to_ptr.vmem [resolvable:$true] %s3205
          %3211 = dma.vmem_to_hbm [thread:$0]  %s3206, 512, %s3204, %s3179, 128, 128, 8
        $region204: #{tpu_custom_call.1} parent=95 // pred_fallthru
          _
      $region96: #{tpu_custom_call.1} parent=5 // pred_fallthru
        _
      %p3212 = scmp.le.s32.totalorder 2, %s63
      // Predicated region
      $region205: #{tpu_custom_call.1} parent=5 // pred_check
        %p3213 = pneg %p3212
      $region206: #{tpu_custom_call.1} parent=5 // pred_check_branch
        %3215 = sbr.rel (%p3213) target = $region208
      $region207: #{tpu_custom_call.1} parent=5 // pred_region
        %s3216 = ssub.s32 %s63, 2
        // Predicated region
        $region209: #{tpu_custom_call.1} parent=207 // pred_check
          %p3217 = pneg %p593
        $region210: #{tpu_custom_call.1} parent=207 // pred_check_branch
          %3219 = sbr.rel (%p3217) target = $region212
        $region211: #{tpu_custom_call.1} parent=207 // pred_region
          %s3220 = sand.u32 %s578, 1
          %s3221 = scalar_lea.sflag [#allocation6], %s3220
          %s3222 = sand.u32 %s578, 1
          %s3223 = smul.addr %s3222, 8
          %s3224 = scalar_lea.vmem [#allocation34], %s3223
          %3225 = dma.done %s3221, 128
        $region212: #{tpu_custom_call.1} parent=207 // pred_fallthru
          _
        // Predicated region
        $region213: #{tpu_custom_call.1} parent=207 // pred_check
          %p3226 = pneg %p619
        $region214: #{tpu_custom_call.1} parent=207 // pred_check_branch
          %3228 = sbr.rel (%p3226) target = $region216
        $region215: #{tpu_custom_call.1} parent=207 // pred_region
          %s3229 = sand.u32 %s604, 1
          %s3230 = scalar_lea.sflag [#allocation36], %s3229
          %s3231 = sand.u32 %s604, 1
          %s3232 = smul.addr %s3231, 32
          %s3233 = scalar_lea.vmem [#allocation35], %s3232
          %3234 = dma.done %s3230, 512
        $region216: #{tpu_custom_call.1} parent=207 // pred_fallthru
          _
      $region208: #{tpu_custom_call.1} parent=5 // pred_fallthru
        _
    $region6: #{tpu_custom_call.1} parent=1 // loop_footer
      %s67 = sadd.s32 1, %s63
    $region7: #{tpu_custom_call.1} parent=1 // loop_footer_branch
      %62 = sbr.rel target = $region3
    $region8: #{tpu_custom_call.1} parent=1 // loop_exit
      _
    %3235 = vsyncpa [#allocation5], 1
    %s3236 = scalar_lea.sflag [#allocation5], 1
    %3237 = vsyncpa %s3236, 1
    %3238 = vsyncpa [#allocation8], 1
    %s3239 = scalar_lea.sflag [#allocation8], 1
    %3240 = vsyncpa %s3239, 1
    %3241 = vsyncpa [#allocation11], 1
    %s3242 = scalar_lea.sflag [#allocation11], 1
    %3243 = vsyncpa %s3242, 1
    %3244 = vsyncpa [#allocation14], 1
    %s3245 = scalar_lea.sflag [#allocation14], 1
    %3246 = vsyncpa %s3245, 1
    %3247 = vsyncpa [#allocation17], 1
    %s3248 = scalar_lea.sflag [#allocation17], 1
    %3249 = vsyncpa %s3248, 1
    %3250 = vsyncpa [#allocation20], 1
    %s3251 = scalar_lea.sflag [#allocation20], 1
    %3252 = vsyncpa %s3251, 1
    %3253 = vsyncpa [#allocation23], 1
    %s3254 = scalar_lea.sflag [#allocation23], 1
    %3255 = vsyncpa %s3254, 1
    %3256 = vsyncpa [#allocation26], 1
    %s3257 = scalar_lea.sflag [#allocation26], 1
    %3258 = vsyncpa %s3257, 1
    %3259 = vsyncpa [#allocation29], 1
    %s3260 = scalar_lea.sflag [#allocation29], 1
    %3261 = vsyncpa %s3260, 1
    %3262 = vsyncpa [#allocation32], 1
    %s3263 = scalar_lea.sflag [#allocation32], 1
    %3264 = vsyncpa %s3263, 1
    %3265 = vsyncpa [#allocation6], 1
    %s3266 = scalar_lea.sflag [#allocation6], 1
    %3267 = vsyncpa %s3266, 1
    %3268 = vsyncpa [#allocation36], 1
    %s3269 = scalar_lea.sflag [#allocation36], 1
    %3270 = vsyncpa %s3269, 1

</llo_original>
